<compile_context>
chip_gen: v7x
topology: tpu7x:2x2x1
jax: 0.10.0
libtpu: 0.0.40
codegen_flags: <defaults>
</compile_context>

<pallas_src>
import functools

import jax
import jax.numpy as jnp
from jax.experimental import pallas as pl
from jax.experimental.pallas import tpu as pltpu


def _mha_kernel(xq_ref, xkv_ref, wq_ref, bq_ref, wkv_ref, bkv_ref,
                wout_ref, bout_ref, o_ref, q_ref, kv_ref, ctx_ref, *, num_heads):
    # xq_ref:  (Bt, Tq, C)   query-tile tokens
    # xkv_ref: (Bt, S,  C)   full-sequence tokens (keys/values)
    # wq_ref:  (C, C)        q weight, scaling pre-folded      bq_ref:  (1, C)  f32
    # wkv_ref: (C, 2C)       fused k/v weight                  bkv_ref: (1, 2C) f32
    # wout_ref:(C, Cout)     output projection                 bout_ref:(1, Cout) f32
    # o_ref:   (Bt, Tq, Cout)
    # q_ref / kv_ref / ctx_ref: VMEM scratches in input dtype.
    Bt, Tq, C = xq_ref.shape
    S = xkv_ref.shape[1]
    Cout = o_ref.shape[2]
    D = C // num_heads

    # Q projection for this query tile (f32 accumulation, then downcast).
    xq = xq_ref[...].reshape(Bt * Tq, C)
    q = jnp.dot(xq, wq_ref[...], preferred_element_type=jnp.float32) + bq_ref[...]
    q_ref[...] = q.reshape(Bt, Tq, C).astype(q_ref.dtype)

    # Fused K/V projection for the full sequence, staged in VMEM in input dtype
    # so the MXU sees native-rate (e.g. bf16) operands and the f32 intermediate
    # dies immediately.
    xkv = xkv_ref[...].reshape(Bt * S, C)
    kv = jnp.dot(xkv, wkv_ref[...], preferred_element_type=jnp.float32) + bkv_ref[...]
    kv_ref[...] = kv.reshape(Bt, S, 2 * C).astype(kv_ref.dtype)

    # Per-head attention. Reads go through the VMEM scratches (static lane
    # slices), which bounds live ranges across the unrolled head loop.
    for h in range(num_heads):
        lo = h * D
        q_h = q_ref[:, :, lo:lo + D]              # (Bt, Tq, D)
        k_h = kv_ref[:, :, lo:lo + D]             # (Bt, S, D)
        v_h = kv_ref[:, :, C + lo:C + lo + D]     # (Bt, S, D)

        # (Bt, Tq, S) logits, f32 accumulation on the MXU.
        logits = jnp.einsum('bqd,bkd->bqk', q_h, k_h,
                            preferred_element_type=jnp.float32)

        # Numerically-stable softmax in f32; reciprocal on the EUP.
        m = jnp.max(logits, axis=-1, keepdims=True)
        e = jnp.exp(logits - m)
        inv = pl.reciprocal(jnp.sum(e, axis=-1, keepdims=True), approx=True)
        attn = (e * inv).astype(v_h.dtype)        # cast back, as PyTorch does

        ctx_ref[:, :, lo:lo + D] = jnp.einsum(
            'bqk,bkd->bqd', attn, v_h,
            preferred_element_type=jnp.float32).astype(ctx_ref.dtype)

    # Output projection on the concatenated heads: one matmul.
    ctx = ctx_ref[...].reshape(Bt * Tq, C)
    out = jnp.dot(ctx, wout_ref[...], preferred_element_type=jnp.float32) + bout_ref[...]
    o_ref[...] = out.reshape(Bt, Tq, Cout).astype(o_ref.dtype)


def _pick_tile(total, max_tile, granule=1):
    """Largest tile <= max_tile that divides `total` and is a multiple of
    `granule`; falls back to `total` itself (a full block is always legal)."""
    if total <= max_tile:
        return total
    t = (max_tile // granule) * granule
    while t >= granule:
        if total % t == 0:
            return t
        t -= granule
    return total


def _build_call(N, S, C, Cout, num_heads, Bt, Tq, dtype, single_buffer_weights):
    if single_buffer_weights:
        def const_spec(shape):
            # Constant index map => the block is resident; one buffer suffices.
            return pl.BlockSpec(shape, lambda b, qt: (0,) * len(shape),
                                pipeline_mode=pl.Buffered(1))
    else:
        def const_spec(shape):
            return pl.BlockSpec(shape, lambda b, qt: (0,) * len(shape))

    itemsize = jnp.dtype(dtype).itemsize
    # Per-step VMEM residency estimate (with headroom) for vmem_limit_bytes.
    w_bytes = ((C * C + C * 2 * C + C * Cout) * itemsize
               + (C + 2 * C + Cout) * 4)
    w_bytes *= 1 if single_buffer_weights else 2
    io_bytes = 2 * (Bt * Tq * C + Bt * S * C + Bt * Tq * Cout) * itemsize
    scratch_bytes = (2 * Bt * Tq * C + Bt * S * 2 * C) * itemsize
    transient_bytes = (Bt * Tq * C + Bt * S * 2 * C          # f32 q / kv intermediates
                       + 2 * Bt * Tq * S                     # f32 logits + exp
                       + Bt * Tq * Cout) * 4                 # f32 out before cast
    est = w_bytes + io_bytes + scratch_bytes + transient_bytes
    vmem_limit = int(min(128 * 2**20, max(32 * 2**20, 2 * est)))

    kernel = functools.partial(_mha_kernel, num_heads=num_heads)

    return pl.pallas_call(
        kernel,
        out_shape=jax.ShapeDtypeStruct((N, S, Cout), dtype),
        grid_spec=pltpu.PrefetchScalarGridSpec(
            num_scalar_prefetch=0,
            grid=(N // Bt, S // Tq),
            in_specs=[
                pl.BlockSpec((Bt, Tq, C), lambda b, qt: (b, qt, 0)),   # q tile
                pl.BlockSpec((Bt, S, C), lambda b, qt: (b, 0, 0)),     # full seq for K/V
                const_spec((C, C)),
                const_spec((1, C)),
                const_spec((C, 2 * C)),
                const_spec((1, 2 * C)),
                const_spec((C, Cout)),
                const_spec((1, Cout)),
            ],
            out_specs=pl.BlockSpec((Bt, Tq, Cout), lambda b, qt: (b, qt, 0)),
            scratch_shapes=[
                pltpu.VMEM((Bt, Tq, C), dtype),        # staged (scaled) q
                pltpu.VMEM((Bt, S, 2 * C), dtype),     # staged k|v
                pltpu.VMEM((Bt, Tq, C), dtype),        # concatenated head outputs
            ],
        ),
        compiler_params=pltpu.CompilerParams(
            dimension_semantics=("parallel", "parallel"),
            vmem_limit_bytes=vmem_limit,
        ),
    )


def multi_head_attention(x, w_qkv, b_qkv, w_out, b_out, num_heads):
    """Matches MultiHeadAttention.forward_default with x_kv=None, no masks.

    x:      (N, S, C)
    w_qkv:  (3C, C)   PyTorch Linear weight layout (out_features, in_features)
    b_qkv:  (3C,)
    w_out:  (Cout, C)
    b_out:  (Cout,)
    """
    N, S, C = x.shape
    assert C % num_heads == 0, "embed_dim must be divisible by num_heads"
    Cout = w_out.shape[0]
    D = C // num_heads
    scaling = float(D) ** -0.5

    # Wrapper-side weight prep (hoist out of the hot path when weights are
    # static parameters): transpose to (in, out) and fold the query scaling
    # into the q-projection weight/bias so the kernel never rescales q.
    wq_t = (jnp.transpose(w_qkv[:C], (1, 0)) * scaling).astype(x.dtype)    # (C, C)
    wkv_t = jnp.transpose(w_qkv[C:], (1, 0)).astype(x.dtype)               # (C, 2C)
    bq2 = (b_qkv[:C] * scaling).astype(jnp.float32).reshape(1, C)
    bkv2 = b_qkv[C:].astype(jnp.float32).reshape(1, 2 * C)
    wout_t = jnp.transpose(w_out, (1, 0)).astype(x.dtype)                  # (C, Cout)
    bout2 = b_out.astype(jnp.float32).reshape(1, Cout)

    # Query-row tiling (caps (Tq, S) logits working set; scales to long S) and
    # batch tiling (amortizes per-grid-step overhead at small shapes).
    Tq = _pick_tile(S, 256, 8)
    bytes_per_batch = S * C * x.dtype.itemsize * 8 + 2 * Tq * S * 4
    Bt = _pick_tile(N, max(1, min(N, (4 << 20) // max(1, bytes_per_batch))), 1)

    args = (x, x, wq_t, bq2, wkv_t, bkv2, wout_t, bout2)
    try:
        return _build_call(N, S, C, Cout, num_heads, Bt, Tq, x.dtype,
                           single_buffer_weights=True)(*args)
    except Exception:
        # Fallback if single-buffered (pl.Buffered(1)) broadcast weights are
        # not supported by this jax/Pallas version.
        return _build_call(N, S, C, Cout, num_heads, Bt, Tq, x.dtype,
                           single_buffer_weights=False)(*args)


def _reference(x, w_qkv, b_qkv, w_out, b_out, num_heads):
    """Pure-JAX reference mirroring the PyTorch forward_default path."""
    N, S, C = x.shape
    D = C // num_heads
    scaling = float(D) ** -0.5
    qkv = jnp.einsum('nsc,oc->nso', x, w_qkv) + b_qkv       # (N, S, 3C)
    qkv = qkv.reshape(N, S, 3, num_heads, D)
    qkv = jnp.transpose(qkv, (0, 3, 2, 1, 4))               # (N, H, 3, S, D)
    q, k, v = qkv[:, :, 0], qkv[:, :, 1], qkv[:, :, 2]
    q = q * scaling
    logits = jnp.einsum('nhsd,nhtd->nhst', q, k)
    attn = jax.nn.softmax(logits.astype(jnp.float32), axis=-1)
    out = jnp.einsum('nhst,nhtd->nhsd', attn.astype(v.dtype), v)
    out = jnp.transpose(out, (0, 2, 1, 3)).reshape(N, S, C)
    return jnp.einsum('nsc,oc->nso', out, w_out) + b_out


if __name__ == "__main__":
    key = jax.random.PRNGKey(0)
    N, S, C = 2, 8, 32          # batch=2, seq=8, embed_dim=32
    num_heads = 4               # head_dim = 8

    ks = jax.random.split(key, 5)
    x = jax.random.normal(ks[0], (N, S, C), jnp.float32)
    w_qkv = jax.random.normal(ks[1], (3 * C, C), jnp.float32) * 0.1
    b_qkv = jax.random.normal(ks[2], (3 * C,), jnp.float32) * 0.1
    w_out = jax.random.normal(ks[3], (C, C), jnp.float32) * 0.1
    b_out = jax.random.normal(ks[4], (C,), jnp.float32) * 0.1

    out = multi_head_attention(x, w_qkv, b_qkv, w_out, b_out, num_heads)
    out = jax.block_until_ready(out)

    ref = _reference(x, w_qkv, b_qkv, w_out, b_out, num_heads)
    assert out.shape == (N, S, C)
    # Slightly looser tolerance than exact-divide softmax because the kernel
    # uses the EUP approximate reciprocal for the softmax normalization.
    assert jnp.allclose(out, ref, atol=5e-3, rtol=5e-3), "mismatch vs reference"
    print("KERNEL_OK")
</pallas_src>

<mosaic_0001>
module attributes {stable_mosaic.version = 11 : i64} {
  func.func @_mha_kernel(%arg0: i32, %arg1: i32, %arg2: memref<2x8x32xf32, #tpu.memory_space<vmem>>, %arg3: memref<2x8x32xf32, #tpu.memory_space<vmem>>, %arg4: memref<32x32xf32, #tpu.memory_space<vmem>>, %arg5: memref<1x32xf32, #tpu.memory_space<vmem>>, %arg6: memref<32x64xf32, #tpu.memory_space<vmem>>, %arg7: memref<1x64xf32, #tpu.memory_space<vmem>>, %arg8: memref<32x32xf32, #tpu.memory_space<vmem>>, %arg9: memref<1x32xf32, #tpu.memory_space<vmem>>, %arg10: memref<2x8x32xf32, #tpu.memory_space<vmem>>, %arg11: memref<2x8x32xf32, #tpu.memory_space<vmem>>, %arg12: memref<2x8x64xf32, #tpu.memory_space<vmem>>, %arg13: memref<2x8x32xf32, #tpu.memory_space<vmem>>) attributes {dimension_semantics = [#tpu.dimension_semantics<parallel>, #tpu.dimension_semantics<parallel>], iteration_bounds = array<i64: 1, 1>, scalar_prefetch = 0 : i64, scratch_operands = 3 : i64, tpu.core_type = #tpu.core_type<tc>, window_params = [{transform_indices = @transform_0, window_bounds = array<i64: 2, 8, 32>}, {transform_indices = @transform_1, window_bounds = array<i64: 2, 8, 32>}, {pipeline_mode = #tpu.pipeline_mode<synchronous>, transform_indices = @transform_2, window_bounds = array<i64: 32, 32>}, {pipeline_mode = #tpu.pipeline_mode<synchronous>, transform_indices = @transform_3, window_bounds = array<i64: 1, 32>}, {pipeline_mode = #tpu.pipeline_mode<synchronous>, transform_indices = @transform_4, window_bounds = array<i64: 32, 64>}, {pipeline_mode = #tpu.pipeline_mode<synchronous>, transform_indices = @transform_5, window_bounds = array<i64: 1, 64>}, {pipeline_mode = #tpu.pipeline_mode<synchronous>, transform_indices = @transform_6, window_bounds = array<i64: 32, 32>}, {pipeline_mode = #tpu.pipeline_mode<synchronous>, transform_indices = @transform_7, window_bounds = array<i64: 1, 32>}, {transform_indices = @transform_8, window_bounds = array<i64: 2, 8, 32>}]} {
    %c0 = arith.constant 0 : index
    %c0_0 = arith.constant 0 : index
    %c0_1 = arith.constant 0 : index
    %0 = vector.load %arg2[%c0, %c0_0, %c0_1] : memref<2x8x32xf32, #tpu.memory_space<vmem>>, vector<2x8x32xf32>
    %1 = vector.shape_cast %0 : vector<2x8x32xf32> to vector<16x32xf32>
    %c0_2 = arith.constant 0 : index
    %c0_3 = arith.constant 0 : index
    %2 = vector.load %arg4[%c0_2, %c0_3] : memref<32x32xf32, #tpu.memory_space<vmem>>, vector<32x32xf32>
    %cst = arith.constant dense<0.000000e+00> : vector<16x32xf32>
    %3 = tpu.matmul %1, %2, %cst {dimension_numbers = #tpu.dot_dimension_numbers<[1], [0], [0], [1], [0, 0, 1, 1], [], []>} : vector<16x32xf32>, vector<32x32xf32>, vector<16x32xf32> -> vector<16x32xf32>
    %c0_4 = arith.constant 0 : index
    %c0_5 = arith.constant 0 : index
    %4 = vector.load %arg5[%c0_4, %c0_5] : memref<1x32xf32, #tpu.memory_space<vmem>>, vector<1x32xf32>
    %5 = vector.broadcast %4 : vector<1x32xf32> to vector<16x32xf32>
    %6 = arith.addf %3, %5 : vector<16x32xf32>
    %7 = vector.shape_cast %6 : vector<16x32xf32> to vector<2x8x32xf32>
    %c0_6 = arith.constant 0 : index
    %c0_7 = arith.constant 0 : index
    %c0_8 = arith.constant 0 : index
    %8 = vector.load %arg11[%c0_6, %c0_7, %c0_8] : memref<2x8x32xf32, #tpu.memory_space<vmem>>, vector<2x8x32xf32>
    tpu.vector_store %arg11[%c0_6, %c0_7, %c0_8], %7 {strides = array<i32>} : memref<2x8x32xf32, #tpu.memory_space<vmem>>, vector<2x8x32xf32>,
    %c0_9 = arith.constant 0 : index
    %c0_10 = arith.constant 0 : index
    %c0_11 = arith.constant 0 : index
    %9 = vector.load %arg3[%c0_9, %c0_10, %c0_11] : memref<2x8x32xf32, #tpu.memory_space<vmem>>, vector<2x8x32xf32>
    %10 = vector.shape_cast %9 : vector<2x8x32xf32> to vector<16x32xf32>
    %c0_12 = arith.constant 0 : index
    %c0_13 = arith.constant 0 : index
    %11 = vector.load %arg6[%c0_12, %c0_13] : memref<32x64xf32, #tpu.memory_space<vmem>>, vector<32x64xf32>
    %cst_14 = arith.constant dense<0.000000e+00> : vector<16x64xf32>
    %12 = tpu.matmul %10, %11, %cst_14 {dimension_numbers = #tpu.dot_dimension_numbers<[1], [0], [0], [1], [0, 0, 1, 1], [], []>} : vector<16x32xf32>, vector<32x64xf32>, vector<16x64xf32> -> vector<16x64xf32>
    %c0_15 = arith.constant 0 : index
    %c0_16 = arith.constant 0 : index
    %13 = vector.load %arg7[%c0_15, %c0_16] : memref<1x64xf32, #tpu.memory_space<vmem>>, vector<1x64xf32>
    %14 = vector.broadcast %13 : vector<1x64xf32> to vector<16x64xf32>
    %15 = arith.addf %12, %14 : vector<16x64xf32>
    %16 = vector.shape_cast %15 : vector<16x64xf32> to vector<2x8x64xf32>
    %c0_17 = arith.constant 0 : index
    %c0_18 = arith.constant 0 : index
    %c0_19 = arith.constant 0 : index
    %17 = vector.load %arg12[%c0_17, %c0_18, %c0_19] : memref<2x8x64xf32, #tpu.memory_space<vmem>>, vector<2x8x64xf32>
    tpu.vector_store %arg12[%c0_17, %c0_18, %c0_19], %16 {strides = array<i32>} : memref<2x8x64xf32, #tpu.memory_space<vmem>>, vector<2x8x64xf32>,
    %c0_20 = arith.constant 0 : index
    %c0_21 = arith.constant 0 : index
    %c0_22 = arith.constant 0 : index
    %18 = vector.load %arg11[%c0_20, %c0_21, %c0_22] : memref<2x8x32xf32, #tpu.memory_space<vmem>>, vector<2x8x8xf32>
    %c0_23 = arith.constant 0 : index
    %c0_24 = arith.constant 0 : index
    %c0_25 = arith.constant 0 : index
    %19 = vector.load %arg12[%c0_23, %c0_24, %c0_25] : memref<2x8x64xf32, #tpu.memory_space<vmem>>, vector<2x8x8xf32>
    %c0_26 = arith.constant 0 : index
    %c0_27 = arith.constant 0 : index
    %c32 = arith.constant 32 : index
    %20 = vector.load %arg12[%c0_26, %c0_27, %c32] : memref<2x8x64xf32, #tpu.memory_space<vmem>>, vector<2x8x8xf32>
    "tpu.trace_start"() <{level = 10 : i32, message = "bqd,bkd->bqk"}> : () -> ()
    %cst_28 = arith.constant dense<0.000000e+00> : vector<2x8x8xf32>
    %21 = tpu.matmul %18, %19, %cst_28 {dimension_numbers = #tpu.dot_dimension_numbers<[2], [2], [1], [1], [0, 0, 0, 1, 1, 1], [0], [0]>} : vector<2x8x8xf32>, vector<2x8x8xf32>, vector<2x8x8xf32> -> vector<2x8x8xf32>
    "tpu.trace_stop"() : () -> ()
    %cst_29 = arith.constant dense<0xFF800000> : vector<2x8xf32>
    %22 = vector.multi_reduction <maximumf>, %21, %cst_29 [2] : vector<2x8x8xf32> to vector<2x8xf32>
    %23 = vector.shape_cast %22 : vector<2x8xf32> to vector<2x8x1xf32>
    %24 = vector.broadcast %23 : vector<2x8x1xf32> to vector<2x8x8xf32>
    %25 = arith.subf %21, %24 : vector<2x8x8xf32>
    %26 = math.exp %25 : vector<2x8x8xf32>
    %cst_30 = arith.constant dense<0.000000e+00> : vector<2x8xf32>
    %27 = vector.multi_reduction <add>, %26, %cst_30 [2] : vector<2x8x8xf32> to vector<2x8xf32>
    %28 = vector.shape_cast %27 : vector<2x8xf32> to vector<2x8x1xf32>
    %29 = tpu.reciprocal %28 {approx = true} : vector<2x8x1xf32> -> vector<2x8x1xf32>
    %30 = vector.broadcast %29 : vector<2x8x1xf32> to vector<2x8x8xf32>
    %31 = arith.mulf %26, %30 : vector<2x8x8xf32>
    "tpu.trace_start"() <{level = 10 : i32, message = "bqk,bkd->bqd"}> : () -> ()
    %cst_31 = arith.constant dense<0.000000e+00> : vector<2x8x8xf32>
    %32 = tpu.matmul %31, %20, %cst_31 {dimension_numbers = #tpu.dot_dimension_numbers<[2], [1], [1], [2], [0, 0, 0, 1, 1, 2], [0], [0]>} : vector<2x8x8xf32>, vector<2x8x8xf32>, vector<2x8x8xf32> -> vector<2x8x8xf32>
    "tpu.trace_stop"() : () -> ()
    %c0_32 = arith.constant 0 : index
    %c0_33 = arith.constant 0 : index
    %c0_34 = arith.constant 0 : index
    %33 = vector.load %arg13[%c0_32, %c0_33, %c0_34] : memref<2x8x32xf32, #tpu.memory_space<vmem>>, vector<2x8x8xf32>
    tpu.vector_store %arg13[%c0_32, %c0_33, %c0_34], %32 {strides = array<i32>} : memref<2x8x32xf32, #tpu.memory_space<vmem>>, vector<2x8x8xf32>,
    %c0_35 = arith.constant 0 : index
    %c0_36 = arith.constant 0 : index
    %c8 = arith.constant 8 : index
    %34 = vector.load %arg11[%c0_35, %c0_36, %c8] : memref<2x8x32xf32, #tpu.memory_space<vmem>>, vector<2x8x8xf32>
    %c0_37 = arith.constant 0 : index
    %c0_38 = arith.constant 0 : index
    %c8_39 = arith.constant 8 : index
    %35 = vector.load %arg12[%c0_37, %c0_38, %c8_39] : memref<2x8x64xf32, #tpu.memory_space<vmem>>, vector<2x8x8xf32>
    %c0_40 = arith.constant 0 : index
    %c0_41 = arith.constant 0 : index
    %c40 = arith.constant 40 : index
    %36 = vector.load %arg12[%c0_40, %c0_41, %c40] : memref<2x8x64xf32, #tpu.memory_space<vmem>>, vector<2x8x8xf32>
    "tpu.trace_start"() <{level = 10 : i32, message = "bqd,bkd->bqk"}> : () -> ()
    %cst_42 = arith.constant dense<0.000000e+00> : vector<2x8x8xf32>
    %37 = tpu.matmul %34, %35, %cst_42 {dimension_numbers = #tpu.dot_dimension_numbers<[2], [2], [1], [1], [0, 0, 0, 1, 1, 1], [0], [0]>} : vector<2x8x8xf32>, vector<2x8x8xf32>, vector<2x8x8xf32> -> vector<2x8x8xf32>
    "tpu.trace_stop"() : () -> ()
    %cst_43 = arith.constant dense<0xFF800000> : vector<2x8xf32>
    %38 = vector.multi_reduction <maximumf>, %37, %cst_43 [2] : vector<2x8x8xf32> to vector<2x8xf32>
    %39 = vector.shape_cast %38 : vector<2x8xf32> to vector<2x8x1xf32>
    %40 = vector.broadcast %39 : vector<2x8x1xf32> to vector<2x8x8xf32>
    %41 = arith.subf %37, %40 : vector<2x8x8xf32>
    %42 = math.exp %41 : vector<2x8x8xf32>
    %cst_44 = arith.constant dense<0.000000e+00> : vector<2x8xf32>
    %43 = vector.multi_reduction <add>, %42, %cst_44 [2] : vector<2x8x8xf32> to vector<2x8xf32>
    %44 = vector.shape_cast %43 : vector<2x8xf32> to vector<2x8x1xf32>
    %45 = tpu.reciprocal %44 {approx = true} : vector<2x8x1xf32> -> vector<2x8x1xf32>
    %46 = vector.broadcast %45 : vector<2x8x1xf32> to vector<2x8x8xf32>
    %47 = arith.mulf %42, %46 : vector<2x8x8xf32>
    "tpu.trace_start"() <{level = 10 : i32, message = "bqk,bkd->bqd"}> : () -> ()
    %cst_45 = arith.constant dense<0.000000e+00> : vector<2x8x8xf32>
    %48 = tpu.matmul %47, %36, %cst_45 {dimension_numbers = #tpu.dot_dimension_numbers<[2], [1], [1], [2], [0, 0, 0, 1, 1, 2], [0], [0]>} : vector<2x8x8xf32>, vector<2x8x8xf32>, vector<2x8x8xf32> -> vector<2x8x8xf32>
    "tpu.trace_stop"() : () -> ()
    %c0_46 = arith.constant 0 : index
    %c0_47 = arith.constant 0 : index
    %c8_48 = arith.constant 8 : index
    %49 = vector.load %arg13[%c0_46, %c0_47, %c8_48] : memref<2x8x32xf32, #tpu.memory_space<vmem>>, vector<2x8x8xf32>
    tpu.vector_store %arg13[%c0_46, %c0_47, %c8_48], %48 {strides = array<i32>} : memref<2x8x32xf32, #tpu.memory_space<vmem>>, vector<2x8x8xf32>,
    %c0_49 = arith.constant 0 : index
    %c0_50 = arith.constant 0 : index
    %c16 = arith.constant 16 : index
    %50 = vector.load %arg11[%c0_49, %c0_50, %c16] : memref<2x8x32xf32, #tpu.memory_space<vmem>>, vector<2x8x8xf32>
    %c0_51 = arith.constant 0 : index
    %c0_52 = arith.constant 0 : index
    %c16_53 = arith.constant 16 : index
    %51 = vector.load %arg12[%c0_51, %c0_52, %c16_53] : memref<2x8x64xf32, #tpu.memory_space<vmem>>, vector<2x8x8xf32>
    %c0_54 = arith.constant 0 : index
    %c0_55 = arith.constant 0 : index
    %c48 = arith.constant 48 : index
    %52 = vector.load %arg12[%c0_54, %c0_55, %c48] : memref<2x8x64xf32, #tpu.memory_space<vmem>>, vector<2x8x8xf32>
    "tpu.trace_start"() <{level = 10 : i32, message = "bqd,bkd->bqk"}> : () -> ()
    %cst_56 = arith.constant dense<0.000000e+00> : vector<2x8x8xf32>
    %53 = tpu.matmul %50, %51, %cst_56 {dimension_numbers = #tpu.dot_dimension_numbers<[2], [2], [1], [1], [0, 0, 0, 1, 1, 1], [0], [0]>} : vector<2x8x8xf32>, vector<2x8x8xf32>, vector<2x8x8xf32> -> vector<2x8x8xf32>
    "tpu.trace_stop"() : () -> ()
    %cst_57 = arith.constant dense<0xFF800000> : vector<2x8xf32>
    %54 = vector.multi_reduction <maximumf>, %53, %cst_57 [2] : vector<2x8x8xf32> to vector<2x8xf32>
    %55 = vector.shape_cast %54 : vector<2x8xf32> to vector<2x8x1xf32>
    %56 = vector.broadcast %55 : vector<2x8x1xf32> to vector<2x8x8xf32>
    %57 = arith.subf %53, %56 : vector<2x8x8xf32>
    %58 = math.exp %57 : vector<2x8x8xf32>
    %cst_58 = arith.constant dense<0.000000e+00> : vector<2x8xf32>
    %59 = vector.multi_reduction <add>, %58, %cst_58 [2] : vector<2x8x8xf32> to vector<2x8xf32>
    %60 = vector.shape_cast %59 : vector<2x8xf32> to vector<2x8x1xf32>
    %61 = tpu.reciprocal %60 {approx = true} : vector<2x8x1xf32> -> vector<2x8x1xf32>
    %62 = vector.broadcast %61 : vector<2x8x1xf32> to vector<2x8x8xf32>
    %63 = arith.mulf %58, %62 : vector<2x8x8xf32>
    "tpu.trace_start"() <{level = 10 : i32, message = "bqk,bkd->bqd"}> : () -> ()
    %cst_59 = arith.constant dense<0.000000e+00> : vector<2x8x8xf32>
    %64 = tpu.matmul %63, %52, %cst_59 {dimension_numbers = #tpu.dot_dimension_numbers<[2], [1], [1], [2], [0, 0, 0, 1, 1, 2], [0], [0]>} : vector<2x8x8xf32>, vector<2x8x8xf32>, vector<2x8x8xf32> -> vector<2x8x8xf32>
    "tpu.trace_stop"() : () -> ()
    %c0_60 = arith.constant 0 : index
    %c0_61 = arith.constant 0 : index
    %c16_62 = arith.constant 16 : index
    %65 = vector.load %arg13[%c0_60, %c0_61, %c16_62] : memref<2x8x32xf32, #tpu.memory_space<vmem>>, vector<2x8x8xf32>
    tpu.vector_store %arg13[%c0_60, %c0_61, %c16_62], %64 {strides = array<i32>} : memref<2x8x32xf32, #tpu.memory_space<vmem>>, vector<2x8x8xf32>,
    %c0_63 = arith.constant 0 : index
    %c0_64 = arith.constant 0 : index
    %c24 = arith.constant 24 : index
    %66 = vector.load %arg11[%c0_63, %c0_64, %c24] : memref<2x8x32xf32, #tpu.memory_space<vmem>>, vector<2x8x8xf32>
    %c0_65 = arith.constant 0 : index
    %c0_66 = arith.constant 0 : index
    %c24_67 = arith.constant 24 : index
    %67 = vector.load %arg12[%c0_65, %c0_66, %c24_67] : memref<2x8x64xf32, #tpu.memory_space<vmem>>, vector<2x8x8xf32>
    %c0_68 = arith.constant 0 : index
    %c0_69 = arith.constant 0 : index
    %c56 = arith.constant 56 : index
    %68 = vector.load %arg12[%c0_68, %c0_69, %c56] : memref<2x8x64xf32, #tpu.memory_space<vmem>>, vector<2x8x8xf32>
    "tpu.trace_start"() <{level = 10 : i32, message = "bqd,bkd->bqk"}> : () -> ()
    %cst_70 = arith.constant dense<0.000000e+00> : vector<2x8x8xf32>
    %69 = tpu.matmul %66, %67, %cst_70 {dimension_numbers = #tpu.dot_dimension_numbers<[2], [2], [1], [1], [0, 0, 0, 1, 1, 1], [0], [0]>} : vector<2x8x8xf32>, vector<2x8x8xf32>, vector<2x8x8xf32> -> vector<2x8x8xf32>
    "tpu.trace_stop"() : () -> ()
    %cst_71 = arith.constant dense<0xFF800000> : vector<2x8xf32>
    %70 = vector.multi_reduction <maximumf>, %69, %cst_71 [2] : vector<2x8x8xf32> to vector<2x8xf32>
    %71 = vector.shape_cast %70 : vector<2x8xf32> to vector<2x8x1xf32>
    %72 = vector.broadcast %71 : vector<2x8x1xf32> to vector<2x8x8xf32>
    %73 = arith.subf %69, %72 : vector<2x8x8xf32>
    %74 = math.exp %73 : vector<2x8x8xf32>
    %cst_72 = arith.constant dense<0.000000e+00> : vector<2x8xf32>
    %75 = vector.multi_reduction <add>, %74, %cst_72 [2] : vector<2x8x8xf32> to vector<2x8xf32>
    %76 = vector.shape_cast %75 : vector<2x8xf32> to vector<2x8x1xf32>
    %77 = tpu.reciprocal %76 {approx = true} : vector<2x8x1xf32> -> vector<2x8x1xf32>
    %78 = vector.broadcast %77 : vector<2x8x1xf32> to vector<2x8x8xf32>
    %79 = arith.mulf %74, %78 : vector<2x8x8xf32>
    "tpu.trace_start"() <{level = 10 : i32, message = "bqk,bkd->bqd"}> : () -> ()
    %cst_73 = arith.constant dense<0.000000e+00> : vector<2x8x8xf32>
    %80 = tpu.matmul %79, %68, %cst_73 {dimension_numbers = #tpu.dot_dimension_numbers<[2], [1], [1], [2], [0, 0, 0, 1, 1, 2], [0], [0]>} : vector<2x8x8xf32>, vector<2x8x8xf32>, vector<2x8x8xf32> -> vector<2x8x8xf32>
    "tpu.trace_stop"() : () -> ()
    %c0_74 = arith.constant 0 : index
    %c0_75 = arith.constant 0 : index
    %c24_76 = arith.constant 24 : index
    %81 = vector.load %arg13[%c0_74, %c0_75, %c24_76] : memref<2x8x32xf32, #tpu.memory_space<vmem>>, vector<2x8x8xf32>
    tpu.vector_store %arg13[%c0_74, %c0_75, %c24_76], %80 {strides = array<i32>} : memref<2x8x32xf32, #tpu.memory_space<vmem>>, vector<2x8x8xf32>,
    %c0_77 = arith.constant 0 : index
    %c0_78 = arith.constant 0 : index
    %c0_79 = arith.constant 0 : index
    %82 = vector.load %arg13[%c0_77, %c0_78, %c0_79] : memref<2x8x32xf32, #tpu.memory_space<vmem>>, vector<2x8x32xf32>
    %83 = vector.shape_cast %82 : vector<2x8x32xf32> to vector<16x32xf32>
    %c0_80 = arith.constant 0 : index
    %c0_81 = arith.constant 0 : index
    %84 = vector.load %arg8[%c0_80, %c0_81] : memref<32x32xf32, #tpu.memory_space<vmem>>, vector<32x32xf32>
    %cst_82 = arith.constant dense<0.000000e+00> : vector<16x32xf32>
    %85 = tpu.matmul %83, %84, %cst_82 {dimension_numbers = #tpu.dot_dimension_numbers<[1], [0], [0], [1], [0, 0, 1, 1], [], []>} : vector<16x32xf32>, vector<32x32xf32>, vector<16x32xf32> -> vector<16x32xf32>
    %c0_83 = arith.constant 0 : index
    %c0_84 = arith.constant 0 : index
    %86 = vector.load %arg9[%c0_83, %c0_84] : memref<1x32xf32, #tpu.memory_space<vmem>>, vector<1x32xf32>
    %87 = vector.broadcast %86 : vector<1x32xf32> to vector<16x32xf32>
    %88 = arith.addf %85, %87 : vector<16x32xf32>
    %89 = vector.shape_cast %88 : vector<16x32xf32> to vector<2x8x32xf32>
    %c0_85 = arith.constant 0 : index
    %c0_86 = arith.constant 0 : index
    %c0_87 = arith.constant 0 : index
    %90 = vector.load %arg10[%c0_85, %c0_86, %c0_87] : memref<2x8x32xf32, #tpu.memory_space<vmem>>, vector<2x8x32xf32>
    tpu.vector_store %arg10[%c0_85, %c0_86, %c0_87], %89 {strides = array<i32>} : memref<2x8x32xf32, #tpu.memory_space<vmem>>, vector<2x8x32xf32>,
    return
  }
  func.func @transform_0(%arg0: i32, %arg1: i32) -> (i32, i32, i32) {
    %c0_i32 = arith.constant 0 : i32
    %c0_i32_0 = arith.constant 0 : i32
    return %arg0, %arg1, %c0_i32 : i32, i32, i32
  }
  func.func @transform_1(%arg0: i32, %arg1: i32) -> (i32, i32, i32) {
    %c0_i32 = arith.constant 0 : i32
    %c0_i32_0 = arith.constant 0 : i32
    %c0_i32_1 = arith.constant 0 : i32
    return %arg0, %c0_i32, %c0_i32_0 : i32, i32, i32
  }
  func.func @transform_2(%arg0: i32, %arg1: i32) -> (i32, i32) {
    %c0_i32 = arith.constant 0 : i32
    %c0_i32_0 = arith.constant 0 : i32
    %c0_i32_1 = arith.constant 0 : i32
    return %c0_i32, %c0_i32_0 : i32, i32
  }
  func.func @transform_3(%arg0: i32, %arg1: i32) -> (i32, i32) {
    %c0_i32 = arith.constant 0 : i32
    %c0_i32_0 = arith.constant 0 : i32
    %c0_i32_1 = arith.constant 0 : i32
    return %c0_i32, %c0_i32_0 : i32, i32
  }
  func.func @transform_4(%arg0: i32, %arg1: i32) -> (i32, i32) {
    %c0_i32 = arith.constant 0 : i32
    %c0_i32_0 = arith.constant 0 : i32
    %c0_i32_1 = arith.constant 0 : i32
    return %c0_i32, %c0_i32_0 : i32, i32
  }
  func.func @transform_5(%arg0: i32, %arg1: i32) -> (i32, i32) {
    %c0_i32 = arith.constant 0 : i32
    %c0_i32_0 = arith.constant 0 : i32
    %c0_i32_1 = arith.constant 0 : i32
    return %c0_i32, %c0_i32_0 : i32, i32
  }
  func.func @transform_6(%arg0: i32, %arg1: i32) -> (i32, i32) {
    %c0_i32 = arith.constant 0 : i32
    %c0_i32_0 = arith.constant 0 : i32
    %c0_i32_1 = arith.constant 0 : i32
    return %c0_i32, %c0_i32_0 : i32, i32
  }
  func.func @transform_7(%arg0: i32, %arg1: i32) -> (i32, i32) {
    %c0_i32 = arith.constant 0 : i32
    %c0_i32_0 = arith.constant 0 : i32
    %c0_i32_1 = arith.constant 0 : i32
    return %c0_i32, %c0_i32_0 : i32, i32
  }
  func.func @transform_8(%arg0: i32, %arg1: i32) -> (i32, i32, i32) {
    %c0_i32 = arith.constant 0 : i32
    %c0_i32_0 = arith.constant 0 : i32
    return %arg0, %arg1, %c0_i32 : i32, i32, i32
  }
}

module attributes {stable_mosaic.version = 11 : i64} {
  func.func @_mha_kernel(%arg0: i32, %arg1: i32, %arg2: memref<2x8x32xf32, #tpu.memory_space<vmem>>, %arg3: memref<2x8x32xf32, #tpu.memory_space<vmem>>, %arg4: memref<32x32xf32, #tpu.memory_space<vmem>>, %arg5: memref<1x32xf32, #tpu.memory_space<vmem>>, %arg6: memref<32x64xf32, #tpu.memory_space<vmem>>, %arg7: memref<1x64xf32, #tpu.memory_space<vmem>>, %arg8: memref<32x32xf32, #tpu.memory_space<vmem>>, %arg9: memref<1x32xf32, #tpu.memory_space<vmem>>, %arg10: memref<2x8x32xf32, #tpu.memory_space<vmem>>, %arg11: memref<2x8x32xf32, #tpu.memory_space<vmem>>, %arg12: memref<2x8x64xf32, #tpu.memory_space<vmem>>, %arg13: memref<2x8x32xf32, #tpu.memory_space<vmem>>) attributes {dimension_semantics = [#tpu.dimension_semantics<parallel>, #tpu.dimension_semantics<parallel>], iteration_bounds = array<i64: 1, 1>, scalar_prefetch = 0 : i64, scratch_operands = 3 : i64, tpu.core_type = #tpu.core_type<tc>, window_params = [{transform_indices = @transform_0, window_bounds = array<i64: 2, 8, 32>}, {transform_indices = @transform_1, window_bounds = array<i64: 2, 8, 32>}, {pipeline_mode = #tpu.pipeline_mode<synchronous>, transform_indices = @transform_2, window_bounds = array<i64: 32, 32>}, {pipeline_mode = #tpu.pipeline_mode<synchronous>, transform_indices = @transform_3, window_bounds = array<i64: 1, 32>}, {pipeline_mode = #tpu.pipeline_mode<synchronous>, transform_indices = @transform_4, window_bounds = array<i64: 32, 64>}, {pipeline_mode = #tpu.pipeline_mode<synchronous>, transform_indices = @transform_5, window_bounds = array<i64: 1, 64>}, {pipeline_mode = #tpu.pipeline_mode<synchronous>, transform_indices = @transform_6, window_bounds = array<i64: 32, 32>}, {pipeline_mode = #tpu.pipeline_mode<synchronous>, transform_indices = @transform_7, window_bounds = array<i64: 1, 32>}, {transform_indices = @transform_8, window_bounds = array<i64: 2, 8, 32>}]} {
    %c0 = arith.constant 0 : index
    %c0_0 = arith.constant 0 : index
    %c0_1 = arith.constant 0 : index
    %0 = vector.load %arg2[%c0, %c0_0, %c0_1] : memref<2x8x32xf32, #tpu.memory_space<vmem>>, vector<2x8x32xf32>
    %1 = vector.shape_cast %0 : vector<2x8x32xf32> to vector<16x32xf32>
    %c0_2 = arith.constant 0 : index
    %c0_3 = arith.constant 0 : index
    %2 = vector.load %arg4[%c0_2, %c0_3] : memref<32x32xf32, #tpu.memory_space<vmem>>, vector<32x32xf32>
    %cst = arith.constant dense<0.000000e+00> : vector<16x32xf32>
    %3 = tpu.matmul %1, %2, %cst {dimension_numbers = #tpu.dot_dimension_numbers<[1], [0], [0], [1], [0, 0, 1, 1], [], []>} : vector<16x32xf32>, vector<32x32xf32>, vector<16x32xf32> -> vector<16x32xf32>
    %c0_4 = arith.constant 0 : index
    %c0_5 = arith.constant 0 : index
    %4 = vector.load %arg5[%c0_4, %c0_5] : memref<1x32xf32, #tpu.memory_space<vmem>>, vector<1x32xf32>
    %5 = vector.broadcast %4 : vector<1x32xf32> to vector<16x32xf32>
    %6 = arith.addf %3, %5 : vector<16x32xf32>
    %7 = vector.shape_cast %6 : vector<16x32xf32> to vector<2x8x32xf32>
    %c0_6 = arith.constant 0 : index
    %c0_7 = arith.constant 0 : index
    %c0_8 = arith.constant 0 : index
    %8 = vector.load %arg11[%c0_6, %c0_7, %c0_8] : memref<2x8x32xf32, #tpu.memory_space<vmem>>, vector<2x8x32xf32>
    tpu.vector_store %arg11[%c0_6, %c0_7, %c0_8], %7 {strides = array<i32>} : memref<2x8x32xf32, #tpu.memory_space<vmem>>, vector<2x8x32xf32>,
    %c0_9 = arith.constant 0 : index
    %c0_10 = arith.constant 0 : index
    %c0_11 = arith.constant 0 : index
    %9 = vector.load %arg3[%c0_9, %c0_10, %c0_11] : memref<2x8x32xf32, #tpu.memory_space<vmem>>, vector<2x8x32xf32>
    %10 = vector.shape_cast %9 : vector<2x8x32xf32> to vector<16x32xf32>
    %c0_12 = arith.constant 0 : index
    %c0_13 = arith.constant 0 : index
    %11 = vector.load %arg6[%c0_12, %c0_13] : memref<32x64xf32, #tpu.memory_space<vmem>>, vector<32x64xf32>
    %cst_14 = arith.constant dense<0.000000e+00> : vector<16x64xf32>
    %12 = tpu.matmul %10, %11, %cst_14 {dimension_numbers = #tpu.dot_dimension_numbers<[1], [0], [0], [1], [0, 0, 1, 1], [], []>} : vector<16x32xf32>, vector<32x64xf32>, vector<16x64xf32> -> vector<16x64xf32>
    %c0_15 = arith.constant 0 : index
    %c0_16 = arith.constant 0 : index
    %13 = vector.load %arg7[%c0_15, %c0_16] : memref<1x64xf32, #tpu.memory_space<vmem>>, vector<1x64xf32>
    %14 = vector.broadcast %13 : vector<1x64xf32> to vector<16x64xf32>
    %15 = arith.addf %12, %14 : vector<16x64xf32>
    %16 = vector.shape_cast %15 : vector<16x64xf32> to vector<2x8x64xf32>
    %c0_17 = arith.constant 0 : index
    %c0_18 = arith.constant 0 : index
    %c0_19 = arith.constant 0 : index
    %17 = vector.load %arg12[%c0_17, %c0_18, %c0_19] : memref<2x8x64xf32, #tpu.memory_space<vmem>>, vector<2x8x64xf32>
    tpu.vector_store %arg12[%c0_17, %c0_18, %c0_19], %16 {strides = array<i32>} : memref<2x8x64xf32, #tpu.memory_space<vmem>>, vector<2x8x64xf32>,
    %c0_20 = arith.constant 0 : index
    %c0_21 = arith.constant 0 : index
    %c0_22 = arith.constant 0 : index
    %18 = vector.load %arg11[%c0_20, %c0_21, %c0_22] : memref<2x8x32xf32, #tpu.memory_space<vmem>>, vector<2x8x8xf32>
    %c0_23 = arith.constant 0 : index
    %c0_24 = arith.constant 0 : index
    %c0_25 = arith.constant 0 : index
    %19 = vector.load %arg12[%c0_23, %c0_24, %c0_25] : memref<2x8x64xf32, #tpu.memory_space<vmem>>, vector<2x8x8xf32>
    %c0_26 = arith.constant 0 : index
    %c0_27 = arith.constant 0 : index
    %c32 = arith.constant 32 : index
    %20 = vector.load %arg12[%c0_26, %c0_27, %c32] : memref<2x8x64xf32, #tpu.memory_space<vmem>>, vector<2x8x8xf32>
    "tpu.trace_start"() <{level = 10 : i32, message = "bqd,bkd->bqk"}> : () -> ()
    %cst_28 = arith.constant dense<0.000000e+00> : vector<2x8x8xf32>
    %21 = tpu.matmul %18, %19, %cst_28 {dimension_numbers = #tpu.dot_dimension_numbers<[2], [2], [1], [1], [0, 0, 0, 1, 1, 1], [0], [0]>} : vector<2x8x8xf32>, vector<2x8x8xf32>, vector<2x8x8xf32> -> vector<2x8x8xf32>
    "tpu.trace_stop"() : () -> ()
    %cst_29 = arith.constant dense<0xFF800000> : vector<2x8xf32>
    %22 = vector.multi_reduction <maximumf>, %21, %cst_29 [2] : vector<2x8x8xf32> to vector<2x8xf32>
    %23 = vector.shape_cast %22 : vector<2x8xf32> to vector<2x8x1xf32>
    %24 = vector.broadcast %23 : vector<2x8x1xf32> to vector<2x8x8xf32>
    %25 = arith.subf %21, %24 : vector<2x8x8xf32>
    %26 = math.exp %25 : vector<2x8x8xf32>
    %cst_30 = arith.constant dense<0.000000e+00> : vector<2x8xf32>
    %27 = vector.multi_reduction <add>, %26, %cst_30 [2] : vector<2x8x8xf32> to vector<2x8xf32>
    %28 = vector.shape_cast %27 : vector<2x8xf32> to vector<2x8x1xf32>
    %29 = tpu.reciprocal %28 {approx = true} : vector<2x8x1xf32> -> vector<2x8x1xf32>
    %30 = vector.broadcast %29 : vector<2x8x1xf32> to vector<2x8x8xf32>
    %31 = arith.mulf %26, %30 : vector<2x8x8xf32>
    "tpu.trace_start"() <{level = 10 : i32, message = "bqk,bkd->bqd"}> : () -> ()
    %cst_31 = arith.constant dense<0.000000e+00> : vector<2x8x8xf32>
    %32 = tpu.matmul %31, %20, %cst_31 {dimension_numbers = #tpu.dot_dimension_numbers<[2], [1], [1], [2], [0, 0, 0, 1, 1, 2], [0], [0]>} : vector<2x8x8xf32>, vector<2x8x8xf32>, vector<2x8x8xf32> -> vector<2x8x8xf32>
    "tpu.trace_stop"() : () -> ()
    %c0_32 = arith.constant 0 : index
    %c0_33 = arith.constant 0 : index
    %c0_34 = arith.constant 0 : index
    %33 = vector.load %arg13[%c0_32, %c0_33, %c0_34] : memref<2x8x32xf32, #tpu.memory_space<vmem>>, vector<2x8x8xf32>
    tpu.vector_store %arg13[%c0_32, %c0_33, %c0_34], %32 {strides = array<i32>} : memref<2x8x32xf32, #tpu.memory_space<vmem>>, vector<2x8x8xf32>,
    %c0_35 = arith.constant 0 : index
    %c0_36 = arith.constant 0 : index
    %c8 = arith.constant 8 : index
    %34 = vector.load %arg11[%c0_35, %c0_36, %c8] : memref<2x8x32xf32, #tpu.memory_space<vmem>>, vector<2x8x8xf32>
    %c0_37 = arith.constant 0 : index
    %c0_38 = arith.constant 0 : index
    %c8_39 = arith.constant 8 : index
    %35 = vector.load %arg12[%c0_37, %c0_38, %c8_39] : memref<2x8x64xf32, #tpu.memory_space<vmem>>, vector<2x8x8xf32>
    %c0_40 = arith.constant 0 : index
    %c0_41 = arith.constant 0 : index
    %c40 = arith.constant 40 : index
    %36 = vector.load %arg12[%c0_40, %c0_41, %c40] : memref<2x8x64xf32, #tpu.memory_space<vmem>>, vector<2x8x8xf32>
    "tpu.trace_start"() <{level = 10 : i32, message = "bqd,bkd->bqk"}> : () -> ()
    %cst_42 = arith.constant dense<0.000000e+00> : vector<2x8x8xf32>
    %37 = tpu.matmul %34, %35, %cst_42 {dimension_numbers = #tpu.dot_dimension_numbers<[2], [2], [1], [1], [0, 0, 0, 1, 1, 1], [0], [0]>} : vector<2x8x8xf32>, vector<2x8x8xf32>, vector<2x8x8xf32> -> vector<2x8x8xf32>
    "tpu.trace_stop"() : () -> ()
    %cst_43 = arith.constant dense<0xFF800000> : vector<2x8xf32>
    %38 = vector.multi_reduction <maximumf>, %37, %cst_43 [2] : vector<2x8x8xf32> to vector<2x8xf32>
    %39 = vector.shape_cast %38 : vector<2x8xf32> to vector<2x8x1xf32>
    %40 = vector.broadcast %39 : vector<2x8x1xf32> to vector<2x8x8xf32>
    %41 = arith.subf %37, %40 : vector<2x8x8xf32>
    %42 = math.exp %41 : vector<2x8x8xf32>
    %cst_44 = arith.constant dense<0.000000e+00> : vector<2x8xf32>
    %43 = vector.multi_reduction <add>, %42, %cst_44 [2] : vector<2x8x8xf32> to vector<2x8xf32>
    %44 = vector.shape_cast %43 : vector<2x8xf32> to vector<2x8x1xf32>
    %45 = tpu.reciprocal %44 {approx = true} : vector<2x8x1xf32> -> vector<2x8x1xf32>
    %46 = vector.broadcast %45 : vector<2x8x1xf32> to vector<2x8x8xf32>
    %47 = arith.mulf %42, %46 : vector<2x8x8xf32>
    "tpu.trace_start"() <{level = 10 : i32, message = "bqk,bkd->bqd"}> : () -> ()
    %cst_45 = arith.constant dense<0.000000e+00> : vector<2x8x8xf32>
    %48 = tpu.matmul %47, %36, %cst_45 {dimension_numbers = #tpu.dot_dimension_numbers<[2], [1], [1], [2], [0, 0, 0, 1, 1, 2], [0], [0]>} : vector<2x8x8xf32>, vector<2x8x8xf32>, vector<2x8x8xf32> -> vector<2x8x8xf32>
    "tpu.trace_stop"() : () -> ()
    %c0_46 = arith.constant 0 : index
    %c0_47 = arith.constant 0 : index
    %c8_48 = arith.constant 8 : index
    %49 = vector.load %arg13[%c0_46, %c0_47, %c8_48] : memref<2x8x32xf32, #tpu.memory_space<vmem>>, vector<2x8x8xf32>
    tpu.vector_store %arg13[%c0_46, %c0_47, %c8_48], %48 {strides = array<i32>} : memref<2x8x32xf32, #tpu.memory_space<vmem>>, vector<2x8x8xf32>,
    %c0_49 = arith.constant 0 : index
    %c0_50 = arith.constant 0 : index
    %c16 = arith.constant 16 : index
    %50 = vector.load %arg11[%c0_49, %c0_50, %c16] : memref<2x8x32xf32, #tpu.memory_space<vmem>>, vector<2x8x8xf32>
    %c0_51 = arith.constant 0 : index
    %c0_52 = arith.constant 0 : index
    %c16_53 = arith.constant 16 : index
    %51 = vector.load %arg12[%c0_51, %c0_52, %c16_53] : memref<2x8x64xf32, #tpu.memory_space<vmem>>, vector<2x8x8xf32>
    %c0_54 = arith.constant 0 : index
    %c0_55 = arith.constant 0 : index
    %c48 = arith.constant 48 : index
    %52 = vector.load %arg12[%c0_54, %c0_55, %c48] : memref<2x8x64xf32, #tpu.memory_space<vmem>>, vector<2x8x8xf32>
    "tpu.trace_start"() <{level = 10 : i32, message = "bqd,bkd->bqk"}> : () -> ()
    %cst_56 = arith.constant dense<0.000000e+00> : vector<2x8x8xf32>
    %53 = tpu.matmul %50, %51, %cst_56 {dimension_numbers = #tpu.dot_dimension_numbers<[2], [2], [1], [1], [0, 0, 0, 1, 1, 1], [0], [0]>} : vector<2x8x8xf32>, vector<2x8x8xf32>, vector<2x8x8xf32> -> vector<2x8x8xf32>
    "tpu.trace_stop"() : () -> ()
    %cst_57 = arith.constant dense<0xFF800000> : vector<2x8xf32>
    %54 = vector.multi_reduction <maximumf>, %53, %cst_57 [2] : vector<2x8x8xf32> to vector<2x8xf32>
    %55 = vector.shape_cast %54 : vector<2x8xf32> to vector<2x8x1xf32>
    %56 = vector.broadcast %55 : vector<2x8x1xf32> to vector<2x8x8xf32>
    %57 = arith.subf %53, %56 : vector<2x8x8xf32>
    %58 = math.exp %57 : vector<2x8x8xf32>
    %cst_58 = arith.constant dense<0.000000e+00> : vector<2x8xf32>
    %59 = vector.multi_reduction <add>, %58, %cst_58 [2] : vector<2x8x8xf32> to vector<2x8xf32>
    %60 = vector.shape_cast %59 : vector<2x8xf32> to vector<2x8x1xf32>
    %61 = tpu.reciprocal %60 {approx = true} : vector<2x8x1xf32> -> vector<2x8x1xf32>
    %62 = vector.broadcast %61 : vector<2x8x1xf32> to vector<2x8x8xf32>
    %63 = arith.mulf %58, %62 : vector<2x8x8xf32>
    "tpu.trace_start"() <{level = 10 : i32, message = "bqk,bkd->bqd"}> : () -> ()
    %cst_59 = arith.constant dense<0.000000e+00> : vector<2x8x8xf32>
    %64 = tpu.matmul %63, %52, %cst_59 {dimension_numbers = #tpu.dot_dimension_numbers<[2], [1], [1], [2], [0, 0, 0, 1, 1, 2], [0], [0]>} : vector<2x8x8xf32>, vector<2x8x8xf32>, vector<2x8x8xf32> -> vector<2x8x8xf32>
    "tpu.trace_stop"() : () -> ()
    %c0_60 = arith.constant 0 : index
    %c0_61 = arith.constant 0 : index
    %c16_62 = arith.constant 16 : index
    %65 = vector.load %arg13[%c0_60, %c0_61, %c16_62] : memref<2x8x32xf32, #tpu.memory_space<vmem>>, vector<2x8x8xf32>
    tpu.vector_store %arg13[%c0_60, %c0_61, %c16_62], %64 {strides = array<i32>} : memref<2x8x32xf32, #tpu.memory_space<vmem>>, vector<2x8x8xf32>,
    %c0_63 = arith.constant 0 : index
    %c0_64 = arith.constant 0 : index
    %c24 = arith.constant 24 : index
    %66 = vector.load %arg11[%c0_63, %c0_64, %c24] : memref<2x8x32xf32, #tpu.memory_space<vmem>>, vector<2x8x8xf32>
    %c0_65 = arith.constant 0 : index
    %c0_66 = arith.constant 0 : index
    %c24_67 = arith.constant 24 : index
    %67 = vector.load %arg12[%c0_65, %c0_66, %c24_67] : memref<2x8x64xf32, #tpu.memory_space<vmem>>, vector<2x8x8xf32>
    %c0_68 = arith.constant 0 : index
    %c0_69 = arith.constant 0 : index
    %c56 = arith.constant 56 : index
    %68 = vector.load %arg12[%c0_68, %c0_69, %c56] : memref<2x8x64xf32, #tpu.memory_space<vmem>>, vector<2x8x8xf32>
    "tpu.trace_start"() <{level = 10 : i32, message = "bqd,bkd->bqk"}> : () -> ()
    %cst_70 = arith.constant dense<0.000000e+00> : vector<2x8x8xf32>
    %69 = tpu.matmul %66, %67, %cst_70 {dimension_numbers = #tpu.dot_dimension_numbers<[2], [2], [1], [1], [0, 0, 0, 1, 1, 1], [0], [0]>} : vector<2x8x8xf32>, vector<2x8x8xf32>, vector<2x8x8xf32> -> vector<2x8x8xf32>
    "tpu.trace_stop"() : () -> ()
    %cst_71 = arith.constant dense<0xFF800000> : vector<2x8xf32>
    %70 = vector.multi_reduction <maximumf>, %69, %cst_71 [2] : vector<2x8x8xf32> to vector<2x8xf32>
    %71 = vector.shape_cast %70 : vector<2x8xf32> to vector<2x8x1xf32>
    %72 = vector.broadcast %71 : vector<2x8x1xf32> to vector<2x8x8xf32>
    %73 = arith.subf %69, %72 : vector<2x8x8xf32>
    %74 = math.exp %73 : vector<2x8x8xf32>
    %cst_72 = arith.constant dense<0.000000e+00> : vector<2x8xf32>
    %75 = vector.multi_reduction <add>, %74, %cst_72 [2] : vector<2x8x8xf32> to vector<2x8xf32>
    %76 = vector.shape_cast %75 : vector<2x8xf32> to vector<2x8x1xf32>
    %77 = tpu.reciprocal %76 {approx = true} : vector<2x8x1xf32> -> vector<2x8x1xf32>
    %78 = vector.broadcast %77 : vector<2x8x1xf32> to vector<2x8x8xf32>
    %79 = arith.mulf %74, %78 : vector<2x8x8xf32>
    "tpu.trace_start"() <{level = 10 : i32, message = "bqk,bkd->bqd"}> : () -> ()
    %cst_73 = arith.constant dense<0.000000e+00> : vector<2x8x8xf32>
    %80 = tpu.matmul %79, %68, %cst_73 {dimension_numbers = #tpu.dot_dimension_numbers<[2], [1], [1], [2], [0, 0, 0, 1, 1, 2], [0], [0]>} : vector<2x8x8xf32>, vector<2x8x8xf32>, vector<2x8x8xf32> -> vector<2x8x8xf32>
    "tpu.trace_stop"() : () -> ()
    %c0_74 = arith.constant 0 : index
    %c0_75 = arith.constant 0 : index
    %c24_76 = arith.constant 24 : index
    %81 = vector.load %arg13[%c0_74, %c0_75, %c24_76] : memref<2x8x32xf32, #tpu.memory_space<vmem>>, vector<2x8x8xf32>
    tpu.vector_store %arg13[%c0_74, %c0_75, %c24_76], %80 {strides = array<i32>} : memref<2x8x32xf32, #tpu.memory_space<vmem>>, vector<2x8x8xf32>,
    %c0_77 = arith.constant 0 : index
    %c0_78 = arith.constant 0 : index
    %c0_79 = arith.constant 0 : index
    %82 = vector.load %arg13[%c0_77, %c0_78, %c0_79] : memref<2x8x32xf32, #tpu.memory_space<vmem>>, vector<2x8x32xf32>
    %83 = vector.shape_cast %82 : vector<2x8x32xf32> to vector<16x32xf32>
    %c0_80 = arith.constant 0 : index
    %c0_81 = arith.constant 0 : index
    %84 = vector.load %arg8[%c0_80, %c0_81] : memref<32x32xf32, #tpu.memory_space<vmem>>, vector<32x32xf32>
    %cst_82 = arith.constant dense<0.000000e+00> : vector<16x32xf32>
    %85 = tpu.matmul %83, %84, %cst_82 {dimension_numbers = #tpu.dot_dimension_numbers<[1], [0], [0], [1], [0, 0, 1, 1], [], []>} : vector<16x32xf32>, vector<32x32xf32>, vector<16x32xf32> -> vector<16x32xf32>
    %c0_83 = arith.constant 0 : index
    %c0_84 = arith.constant 0 : index
    %86 = vector.load %arg9[%c0_83, %c0_84] : memref<1x32xf32, #tpu.memory_space<vmem>>, vector<1x32xf32>
    %87 = vector.broadcast %86 : vector<1x32xf32> to vector<16x32xf32>
    %88 = arith.addf %85, %87 : vector<16x32xf32>
    %89 = vector.shape_cast %88 : vector<16x32xf32> to vector<2x8x32xf32>
    %c0_85 = arith.constant 0 : index
    %c0_86 = arith.constant 0 : index
    %c0_87 = arith.constant 0 : index
    %90 = vector.load %arg10[%c0_85, %c0_86, %c0_87] : memref<2x8x32xf32, #tpu.memory_space<vmem>>, vector<2x8x32xf32>
    tpu.vector_store %arg10[%c0_85, %c0_86, %c0_87], %89 {strides = array<i32>} : memref<2x8x32xf32, #tpu.memory_space<vmem>>, vector<2x8x32xf32>,
    return
  }
  func.func @transform_0(%arg0: i32, %arg1: i32) -> (i32, i32, i32) {
    %c0_i32 = arith.constant 0 : i32
    %c0_i32_0 = arith.constant 0 : i32
    return %arg0, %arg1, %c0_i32 : i32, i32, i32
  }
  func.func @transform_1(%arg0: i32, %arg1: i32) -> (i32, i32, i32) {
    %c0_i32 = arith.constant 0 : i32
    %c0_i32_0 = arith.constant 0 : i32
    %c0_i32_1 = arith.constant 0 : i32
    return %arg0, %c0_i32, %c0_i32_0 : i32, i32, i32
  }
  func.func @transform_2(%arg0: i32, %arg1: i32) -> (i32, i32) {
    %c0_i32 = arith.constant 0 : i32
    %c0_i32_0 = arith.constant 0 : i32
    %c0_i32_1 = arith.constant 0 : i32
    return %c0_i32, %c0_i32_0 : i32, i32
  }
  func.func @transform_3(%arg0: i32, %arg1: i32) -> (i32, i32) {
    %c0_i32 = arith.constant 0 : i32
    %c0_i32_0 = arith.constant 0 : i32
    %c0_i32_1 = arith.constant 0 : i32
    return %c0_i32, %c0_i32_0 : i32, i32
  }
  func.func @transform_4(%arg0: i32, %arg1: i32) -> (i32, i32) {
    %c0_i32 = arith.constant 0 : i32
    %c0_i32_0 = arith.constant 0 : i32
    %c0_i32_1 = arith.constant 0 : i32
    return %c0_i32, %c0_i32_0 : i32, i32
  }
  func.func @transform_5(%arg0: i32, %arg1: i32) -> (i32, i32) {
    %c0_i32 = arith.constant 0 : i32
    %c0_i32_0 = arith.constant 0 : i32
    %c0_i32_1 = arith.constant 0 : i32
    return %c0_i32, %c0_i32_0 : i32, i32
  }
  func.func @transform_6(%arg0: i32, %arg1: i32) -> (i32, i32) {
    %c0_i32 = arith.constant 0 : i32
    %c0_i32_0 = arith.constant 0 : i32
    %c0_i32_1 = arith.constant 0 : i32
    return %c0_i32, %c0_i32_0 : i32, i32
  }
  func.func @transform_7(%arg0: i32, %arg1: i32) -> (i32, i32) {
    %c0_i32 = arith.constant 0 : i32
    %c0_i32_0 = arith.constant 0 : i32
    %c0_i32_1 = arith.constant 0 : i32
    return %c0_i32, %c0_i32_0 : i32, i32
  }
  func.func @transform_8(%arg0: i32, %arg1: i32) -> (i32, i32, i32) {
    %c0_i32 = arith.constant 0 : i32
    %c0_i32_0 = arith.constant 0 : i32
    return %arg0, %arg1, %c0_i32 : i32, i32, i32
  }
}

</mosaic_0001>

<llo_original>
// kernel: tpu_custom_call.1
$region0: #{tpu_custom_call.1}
  #allocation0 [shape = 'u32[]', space=smem, size = 0x4, offset = 0x4, fixed_abs, tag = 'smem constant byte address 0x4 - core index']
  #allocation1 [shape = 'u32[144,128]{1,0:T(1,128)}', space=vmem, size = 0x12000, scoped, tag = 'internal scratch']
  #allocation2 [shape = 'f32[2,8,32]{2,1,0:T(8,128)}', space=vmem, size = 0x2000, scoped, tag = 'scratch operand']
  #allocation3 [shape = 'f32[2,8,64]{2,1,0:T(8,128)}', space=vmem, size = 0x2000, scoped, tag = 'scratch operand']
  #allocation4 [shape = 'f32[2,8,32]{2,1,0:T(8,128)}', space=vmem, size = 0x2000, scoped, tag = 'scratch operand']
  %s0 = inlined_call_operand.hbm [shape: f32[2,8,32], index: 0, kind: input, shape index: {}]
  %s1 = inlined_call_operand.hbm [shape: f32[2,8,32], index: 1, kind: input, shape index: {}]
  %s2 = inlined_call_operand.hbm [shape: f32[32,32], index: 2, kind: input, shape index: {}]
  %s3 = inlined_call_operand.vmem [shape: f32[1,32], index: 3, kind: input, shape index: {}]
  %s4 = inlined_call_operand.hbm [shape: f32[32,64], index: 4, kind: input, shape index: {}]
  %s5 = inlined_call_operand.vmem [shape: f32[1,64], index: 5, kind: input, shape index: {}]
  %s6 = inlined_call_operand.hbm [shape: f32[32,32], index: 6, kind: input, shape index: {}]
  %s7 = inlined_call_operand.vmem [shape: f32[1,32], index: 7, kind: input, shape index: {}]
  %s8 = inlined_call_operand.hbm [shape: f32[2,8,32], index: 8, kind: output, shape index: {}]
  %s9 = sld [smem:[#allocation0]]
  $region62: #{tpu_custom_call.1} parent=0
    _
  %s11 = ssub.s32 1, %s9
  %s12 = scalar_select 0, %s11, %s9
  $region1: #{tpu_custom_call.1} parent=0
    #allocation5 [shape = 'u8[8192]{0}', space=vmem, size = 0x2000, scoped, tag = 'input window, operand 0, single buffered']
    #allocation6 [shape = 's32[1]{0}', space=sflag, size = 0x4, scoped, tag = 'scoped memory for tpu_custom_call.1']
    #allocation7 [shape = 's32[1]{0}', space=sflag, size = 0x4, scoped, tag = 'scoped memory for tpu_custom_call.1']
    #allocation8 [shape = 'u8[8192]{0}', space=vmem, size = 0x2000, scoped, tag = 'input window, operand 1, single buffered']
    #allocation9 [shape = 's32[1]{0}', space=sflag, size = 0x4, scoped, tag = 'scoped memory for tpu_custom_call.1']
    #allocation10 [shape = 'u8[16384]{0}', space=vmem, size = 0x4000, scoped, tag = 'input window, operand 2, single buffered']
    #allocation11 [shape = 'u8[16384]{0}', space=vmem, size = 0x4000, scoped, tag = 'input window, operand 4, single buffered']
    #allocation12 [shape = 's32[1]{0}', space=sflag, size = 0x4, scoped, tag = 'scoped memory for tpu_custom_call.1']
    #allocation13 [shape = 'u8[16384]{0}', space=vmem, size = 0x4000, scoped, tag = 'input window, operand 6, single buffered']
    #allocation14 [shape = 'u8[8192]{0}', space=vmem, size = 0x2000, scoped, tag = 'output window, operand 0, single buffered']
    %13 = vsyncpa [#allocation6], 0
    %14 = vsyncpa [#allocation9], 0
    %15 = vsyncpa [#allocation12], 0
    %16 = vsyncpa [#allocation7], 0
    // Predicated region
    $region2: #{tpu_custom_call.1} parent=1 // pred_check
      _
    $region3: #{tpu_custom_call.1} parent=1 // pred_check_branch
      %18 = sbr.rel (0) target = $region5
    $region4: #{tpu_custom_call.1} parent=1 // pred_region
      %s20 = ssub.s32 256, 256
      %21 = vsyncadd [#allocation6], %s20
      %s22 = sshll.u32 [#allocation5], 4
      %s23 = int_to_ptr.vmem [resolvable:$true] %s22
      %28 = dma.hbm_to_vmem [thread:$0]  %s0, 256, %s23, [#allocation6], 128, 128, 8
    $region5: #{tpu_custom_call.1} parent=1 // pred_fallthru
      _
    // Predicated region
    $region6: #{tpu_custom_call.1} parent=1 // pred_check
      _
    $region7: #{tpu_custom_call.1} parent=1 // pred_check_branch
      %30 = sbr.rel (0) target = $region9
    $region8: #{tpu_custom_call.1} parent=1 // pred_region
      %s32 = ssub.s32 256, 256
      %33 = vsyncadd [#allocation9], %s32
      %s34 = sshll.u32 [#allocation8], 4
      %s35 = int_to_ptr.vmem [resolvable:$true] %s34
      %40 = dma.hbm_to_vmem [thread:$0]  %s1, 256, %s35, [#allocation9], 128, 128, 8
    $region9: #{tpu_custom_call.1} parent=1 // pred_fallthru
      _
    // Predicated region
    $region10: #{tpu_custom_call.1} parent=1 // pred_check
      _
    $region11: #{tpu_custom_call.1} parent=1 // pred_check_branch
      %42 = sbr.rel (0) target = $region13
    $region12: #{tpu_custom_call.1} parent=1 // pred_region
      %s44 = ssub.s32 512, 512
      %45 = vsyncadd [#allocation9], %s44
      %s46 = sshll.u32 [#allocation10], 4
      %s47 = int_to_ptr.vmem [resolvable:$true] %s46
      %52 = dma.hbm_to_vmem [thread:$0]  %s2, 512, %s47, [#allocation9], 128, 128, 8
    $region13: #{tpu_custom_call.1} parent=1 // pred_fallthru
      _
    // Predicated region
    $region14: #{tpu_custom_call.1} parent=1 // pred_check
      _
    $region15: #{tpu_custom_call.1} parent=1 // pred_check_branch
      %54 = sbr.rel (0) target = $region17
    $region16: #{tpu_custom_call.1} parent=1 // pred_region
      _
    $region17: #{tpu_custom_call.1} parent=1 // pred_fallthru
      _
    // Predicated region
    $region18: #{tpu_custom_call.1} parent=1 // pred_check
      _
    $region19: #{tpu_custom_call.1} parent=1 // pred_check_branch
      %56 = sbr.rel (0) target = $region21
    $region20: #{tpu_custom_call.1} parent=1 // pred_region
      %s58 = ssub.s32 512, 512
      %59 = vsyncadd [#allocation12], %s58
      %s60 = sshll.u32 [#allocation11], 4
      %s61 = int_to_ptr.vmem [resolvable:$true] %s60
      %66 = dma.hbm_to_vmem [thread:$0]  %s4, 512, %s61, [#allocation12], 128, 128, 8
    $region21: #{tpu_custom_call.1} parent=1 // pred_fallthru
      _
    // Predicated region
    $region22: #{tpu_custom_call.1} parent=1 // pred_check
      _
    $region23: #{tpu_custom_call.1} parent=1 // pred_check_branch
      %68 = sbr.rel (0) target = $region25
    $region24: #{tpu_custom_call.1} parent=1 // pred_region
      _
    $region25: #{tpu_custom_call.1} parent=1 // pred_fallthru
      _
    // Predicated region
    $region26: #{tpu_custom_call.1} parent=1 // pred_check
      _
    $region27: #{tpu_custom_call.1} parent=1 // pred_check_branch
      %70 = sbr.rel (0) target = $region29
    $region28: #{tpu_custom_call.1} parent=1 // pred_region
      %s72 = ssub.s32 512, 512
      %73 = vsyncadd [#allocation12], %s72
      %s74 = sshll.u32 [#allocation13], 4
      %s75 = int_to_ptr.vmem [resolvable:$true] %s74
      %80 = dma.hbm_to_vmem [thread:$0]  %s6, 512, %s75, [#allocation12], 128, 128, 8
    $region29: #{tpu_custom_call.1} parent=1 // pred_fallthru
      _
    // Predicated region
    $region30: #{tpu_custom_call.1} parent=1 // pred_check
      _
    $region31: #{tpu_custom_call.1} parent=1 // pred_check_branch
      %82 = sbr.rel (0) target = $region33
    $region32: #{tpu_custom_call.1} parent=1 // pred_region
      _
    $region33: #{tpu_custom_call.1} parent=1 // pred_fallthru
      _
    // Predicated region
    $region34: #{tpu_custom_call.1} parent=1 // pred_check
      _
    $region35: #{tpu_custom_call.1} parent=1 // pred_check_branch
      %84 = sbr.rel (0) target = $region37
    $region36: #{tpu_custom_call.1} parent=1 // pred_region
      %85 = dma.done [#allocation6], 256
    $region37: #{tpu_custom_call.1} parent=1 // pred_fallthru
      _
    // Predicated region
    $region38: #{tpu_custom_call.1} parent=1 // pred_check
      _
    $region39: #{tpu_custom_call.1} parent=1 // pred_check_branch
      %87 = sbr.rel (0) target = $region41
    $region40: #{tpu_custom_call.1} parent=1 // pred_region
      %88 = dma.done [#allocation9], 256
    $region41: #{tpu_custom_call.1} parent=1 // pred_fallthru
      _
    // Predicated region
    $region42: #{tpu_custom_call.1} parent=1 // pred_check
      _
    $region43: #{tpu_custom_call.1} parent=1 // pred_check_branch
      %90 = sbr.rel (0) target = $region45
    $region44: #{tpu_custom_call.1} parent=1 // pred_region
      %91 = dma.done [#allocation9], 512
    $region45: #{tpu_custom_call.1} parent=1 // pred_fallthru
      _
    // Predicated region
    $region46: #{tpu_custom_call.1} parent=1 // pred_check
      _
    $region47: #{tpu_custom_call.1} parent=1 // pred_check_branch
      %93 = sbr.rel (0) target = $region49
    $region48: #{tpu_custom_call.1} parent=1 // pred_region
      %94 = dma.done [#allocation12], 512
    $region49: #{tpu_custom_call.1} parent=1 // pred_fallthru
      _
    // Predicated region
    $region50: #{tpu_custom_call.1} parent=1 // pred_check
      _
    $region51: #{tpu_custom_call.1} parent=1 // pred_check_branch
      %96 = sbr.rel (0) target = $region53
    $region52: #{tpu_custom_call.1} parent=1 // pred_region
      %97 = dma.done [#allocation12], 512
    $region53: #{tpu_custom_call.1} parent=1 // pred_fallthru
      _
    %v98 = vld [vmem:[#allocation5] sm:$0xff]
    %v99 = vld [vmem:[#allocation5 + $0x8] sm:$0xff]
    %v100 = vld [vmem:[#allocation10] sm:$0xff]
    %v101 = vld [vmem:[#allocation10 + $0x8] sm:$0xff]
    %v102 = vld [vmem:[#allocation10 + $0x10] sm:$0xff]
    %v103 = vld [vmem:[#allocation10 + $0x18] sm:$0xff]
    %v104 = vld [vmem:[%s3] sm:$0x1]
    %v106 = vlaneseq
    %v107 = vshrl.u32 %v106, 7
    %v108 = vsub.s32 0, %v107
    %v109 = vrot.slane %v104, %v108
    %vm111 = vcmask 261120
    %v113 = vsel %vm111, %v98, 0
    %v116 = vsel %vm111, %v99, 0
    %118 = vmatprep.subr.mxu0 0.0
    %119 = vmatpush1.msra.mxu0 %v100
    %120 = vmatprep.subr.mxu0 0.0
    %121 = vmatpush1.msra.mxu0 %v101
    %122 = vmatprep.subr.mxu0 0.0
    %123 = vmatpush1.msra.mxu0 %v102
    %124 = vmatprep.subr.mxu0 0.0
    %125 = vmatpush1.msra.mxu0 %v103
    %126 = vmatprep.subr.mxu0 0.0
    %127 = vmatpush1.msra.mxu0 0.0
    %128 = vmatprep.subr.mxu0 0.0
    %129 = vmatpush1.msra.mxu0 0.0
    %130 = vmatprep.subr.mxu0 0.0
    %131 = vmatpush1.msra.mxu0 0.0
    %132 = vmatprep.subr.mxu0 0.0
    %133 = vmatpush1.msra.mxu0 0.0
    %134 = vmatprep.subr.mxu0 0.0
    %135 = vmatpush1.msra.mxu0 0.0
    %136 = vmatprep.subr.mxu0 0.0
    %137 = vmatpush1.msra.mxu0 0.0
    %138 = vmatprep.subr.mxu0 0.0
    %139 = vmatpush1.msra.mxu0 0.0
    %140 = vmatprep.subr.mxu0 0.0
    %141 = vmatpush1.msra.mxu0 0.0
    %142 = vmatprep.subr.mxu0 0.0
    %143 = vmatpush1.msra.mxu0 0.0
    %144 = vmatprep.subr.mxu0 0.0
    %145 = vmatpush1.msra.mxu0 0.0
    %146 = vmatprep.subr.mxu0 0.0
    %147 = vmatpush1.msra.mxu0 0.0
    %148 = vmatprep.subr.mxu0 0.0
    %149 = vmatpush1.msra.mxu0 0.0
    %150 = vmatprep.subr.mxu0 0.0
    %151 = vmatpush1.msra.mxu0 0.0
    %152 = vmatprep.subr.mxu0 0.0
    %153 = vmatpush1.msra.mxu0 0.0
    %154 = vmatprep.subr.mxu0 0.0
    %155 = vmatpush1.msra.mxu0 0.0
    %156 = vmatprep.subr.mxu0 0.0
    %157 = vmatpush1.msra.mxu0 0.0
    %158 = vmatprep.subr.mxu0 0.0
    %159 = vmatpush1.msra.mxu0 0.0
    %160 = vmatprep.subr.mxu0 0.0
    %161 = vmatpush1.msra.mxu0 0.0
    %162 = vmatprep.subr.mxu0 0.0
    %163 = vmatpush1.msra.mxu0 0.0
    %164 = vmatprep.subr.mxu0 0.0
    %165 = vmatpush1.msra.mxu0 0.0
    %166 = vmatprep.subr.mxu0 0.0
    %167 = vmatpush1.msra.mxu0 0.0
    %168 = vmatprep.subr.mxu0 0.0
    %169 = vmatpush1.msra.mxu0 0.0
    %170 = vmatprep.subr.mxu0 0.0
    %171 = vmatpush1.msra.mxu0 0.0
    %172 = vmatprep.subr.mxu0 0.0
    %173 = vmatpush1.msra.mxu0 0.0
    %174 = vmatprep.subr.mxu0 0.0
    %175 = vmatpush1.msra.mxu0 0.0
    %176 = vmatprep.subr.mxu0 0.0
    %177 = vmatpush1.msra.mxu0 0.0
    %178 = vmatprep.subr.mxu0 0.0
    %179 = vmatpush1.msra.mxu0 0.0
    %180 = vmatprep.subr.mxu0 0.0
    %181 = vmatpush1.msra.mxu0 0.0
    %182 = vmatprep.mubr.f32.mxu0 0.0
    %183 = vmatmul.mubr.f32.gmra.mrb[0].mxu0 %v113
    %v184 = vpop.f32.mrb[0].mxu0
    %v185 = vadd.f32 %v109, %v184
    %v186 = vpop.f32.mrb[0].mxu0
    %187 = vmatprep.mubr.f32.mxu0 0.0
    %188 = vmatmul.mubr.f32.gmra.mrb[0].mxu0 %v116
    %v189 = vpop.f32.mrb[0].mxu0
    %v190 = vadd.f32 %v109, %v189
    %v191 = vpop.f32.mrb[0].mxu0
    %192 = vdwg.mxu0
    %193 = vst.msk [vmem:[#allocation2] sm:$0xff] %vm111, %v185
    %194 = vst.msk [vmem:[#allocation2 + $0x8] sm:$0xff] %vm111, %v190
    %v195 = vld [vmem:[#allocation8] sm:$0xff]
    %v196 = vld [vmem:[#allocation8 + $0x8] sm:$0xff]
    %v197 = vld [vmem:[#allocation11] sm:$0xff]
    %v198 = vld [vmem:[#allocation11 + $0x8] sm:$0xff]
    %v199 = vld [vmem:[#allocation11 + $0x10] sm:$0xff]
    %v200 = vld [vmem:[#allocation11 + $0x18] sm:$0xff]
    %v201 = vld [vmem:[%s5] sm:$0x1]
    %v203 = vlaneseq
    %v204 = vshrl.u32 %v203, 7
    %v205 = vsub.s32 0, %v204
    %v206 = vrot.slane %v201, %v205
    %v209 = vsel %vm111, %v195, 0
    %v212 = vsel %vm111, %v196, 0
    %214 = vmatprep.subr.mxu0 0.0
    %215 = vmatpush1.msra.mxu0 %v197
    %216 = vmatprep.subr.mxu0 0.0
    %217 = vmatpush1.msra.mxu0 %v198
    %218 = vmatprep.subr.mxu0 0.0
    %219 = vmatpush1.msra.mxu0 %v199
    %220 = vmatprep.subr.mxu0 0.0
    %221 = vmatpush1.msra.mxu0 %v200
    %222 = vmatprep.subr.mxu0 0.0
    %223 = vmatpush1.msra.mxu0 0.0
    %224 = vmatprep.subr.mxu0 0.0
    %225 = vmatpush1.msra.mxu0 0.0
    %226 = vmatprep.subr.mxu0 0.0
    %227 = vmatpush1.msra.mxu0 0.0
    %228 = vmatprep.subr.mxu0 0.0
    %229 = vmatpush1.msra.mxu0 0.0
    %230 = vmatprep.subr.mxu0 0.0
    %231 = vmatpush1.msra.mxu0 0.0
    %232 = vmatprep.subr.mxu0 0.0
    %233 = vmatpush1.msra.mxu0 0.0
    %234 = vmatprep.subr.mxu0 0.0
    %235 = vmatpush1.msra.mxu0 0.0
    %236 = vmatprep.subr.mxu0 0.0
    %237 = vmatpush1.msra.mxu0 0.0
    %238 = vmatprep.subr.mxu0 0.0
    %239 = vmatpush1.msra.mxu0 0.0
    %240 = vmatprep.subr.mxu0 0.0
    %241 = vmatpush1.msra.mxu0 0.0
    %242 = vmatprep.subr.mxu0 0.0
    %243 = vmatpush1.msra.mxu0 0.0
    %244 = vmatprep.subr.mxu0 0.0
    %245 = vmatpush1.msra.mxu0 0.0
    %246 = vmatprep.subr.mxu0 0.0
    %247 = vmatpush1.msra.mxu0 0.0
    %248 = vmatprep.subr.mxu0 0.0
    %249 = vmatpush1.msra.mxu0 0.0
    %250 = vmatprep.subr.mxu0 0.0
    %251 = vmatpush1.msra.mxu0 0.0
    %252 = vmatprep.subr.mxu0 0.0
    %253 = vmatpush1.msra.mxu0 0.0
    %254 = vmatprep.subr.mxu0 0.0
    %255 = vmatpush1.msra.mxu0 0.0
    %256 = vmatprep.subr.mxu0 0.0
    %257 = vmatpush1.msra.mxu0 0.0
    %258 = vmatprep.subr.mxu0 0.0
    %259 = vmatpush1.msra.mxu0 0.0
    %260 = vmatprep.subr.mxu0 0.0
    %261 = vmatpush1.msra.mxu0 0.0
    %262 = vmatprep.subr.mxu0 0.0
    %263 = vmatpush1.msra.mxu0 0.0
    %264 = vmatprep.subr.mxu0 0.0
    %265 = vmatpush1.msra.mxu0 0.0
    %266 = vmatprep.subr.mxu0 0.0
    %267 = vmatpush1.msra.mxu0 0.0
    %268 = vmatprep.subr.mxu0 0.0
    %269 = vmatpush1.msra.mxu0 0.0
    %270 = vmatprep.subr.mxu0 0.0
    %271 = vmatpush1.msra.mxu0 0.0
    %272 = vmatprep.subr.mxu0 0.0
    %273 = vmatpush1.msra.mxu0 0.0
    %274 = vmatprep.subr.mxu0 0.0
    %275 = vmatpush1.msra.mxu0 0.0
    %276 = vmatprep.subr.mxu0 0.0
    %277 = vmatpush1.msra.mxu0 0.0
    %278 = vmatprep.mubr.f32.mxu0 0.0
    %279 = vmatmul.mubr.f32.gmra.mrb[0].mxu0 %v209
    %v280 = vpop.f32.mrb[0].mxu0
    %v281 = vadd.f32 %v206, %v280
    %v282 = vpop.f32.mrb[0].mxu0
    %283 = vmatprep.mubr.f32.mxu0 0.0
    %284 = vmatmul.mubr.f32.gmra.mrb[0].mxu0 %v212
    %v285 = vpop.f32.mrb[0].mxu0
    %v286 = vadd.f32 %v206, %v285
    %v287 = vpop.f32.mrb[0].mxu0
    %288 = vdwg.mxu0
    %vm289 = vcmask 523264
    %290 = vst.msk [vmem:[#allocation3] sm:$0xff] %vm289, %v281
    %291 = vst.msk [vmem:[#allocation3 + $0x8] sm:$0xff] %vm289, %v286
    %v292 = vld [vmem:[#allocation2] sm:$0xff]
    %v293 = vld [vmem:[#allocation2 + $0x8] sm:$0xff]
    %v294 = vld [vmem:[#allocation3] sm:$0xff]
    %v295 = vld [vmem:[#allocation3 + $0x8] sm:$0xff]
    %vm296 = vcmask 64512
    %v298 = vsel %vm296, %v292, 0
    %v301 = vsel %vm296, %v294, 0
    %303 = vmatprep.subr.mxu0 0.0
    %304 = vmatpush1.xpose.msra.mxu0 %v301
    %305 = vmatprep.subr.mxu0 0.0
    %306 = vmatpush1.xpose.msra.mxu0 0.0
    %307 = vmatprep.subr.mxu0 0.0
    %308 = vmatpush1.xpose.msra.mxu0 0.0
    %309 = vmatprep.subr.mxu0 0.0
    %310 = vmatpush1.xpose.msra.mxu0 0.0
    %311 = vmatprep.subr.mxu0 0.0
    %312 = vmatpush1.xpose.msra.mxu0 0.0
    %313 = vmatprep.subr.mxu0 0.0
    %314 = vmatpush1.xpose.msra.mxu0 0.0
    %315 = vmatprep.subr.mxu0 0.0
    %316 = vmatpush1.xpose.msra.mxu0 0.0
    %317 = vmatprep.subr.mxu0 0.0
    %318 = vmatpush1.xpose.msra.mxu0 0.0
    %319 = vmatprep.subr.mxu0 0.0
    %320 = vmatpush1.xpose.msra.mxu0 0.0
    %321 = vmatprep.subr.mxu0 0.0
    %322 = vmatpush1.xpose.msra.mxu0 0.0
    %323 = vmatprep.subr.mxu0 0.0
    %324 = vmatpush1.xpose.msra.mxu0 0.0
    %325 = vmatprep.subr.mxu0 0.0
    %326 = vmatpush1.xpose.msra.mxu0 0.0
    %327 = vmatprep.subr.mxu0 0.0
    %328 = vmatpush1.xpose.msra.mxu0 0.0
    %329 = vmatprep.subr.mxu0 0.0
    %330 = vmatpush1.xpose.msra.mxu0 0.0
    %331 = vmatprep.subr.mxu0 0.0
    %332 = vmatpush1.xpose.msra.mxu0 0.0
    %333 = vmatprep.subr.mxu0 0.0
    %334 = vmatpush1.xpose.msra.mxu0 0.0
    %335 = vmatprep.subr.mxu0 0.0
    %336 = vmatpush1.xpose.msra.mxu0 0.0
    %337 = vmatprep.subr.mxu0 0.0
    %338 = vmatpush1.xpose.msra.mxu0 0.0
    %339 = vmatprep.subr.mxu0 0.0
    %340 = vmatpush1.xpose.msra.mxu0 0.0
    %341 = vmatprep.subr.mxu0 0.0
    %342 = vmatpush1.xpose.msra.mxu0 0.0
    %343 = vmatprep.subr.mxu0 0.0
    %344 = vmatpush1.xpose.msra.mxu0 0.0
    %345 = vmatprep.subr.mxu0 0.0
    %346 = vmatpush1.xpose.msra.mxu0 0.0
    %347 = vmatprep.subr.mxu0 0.0
    %348 = vmatpush1.xpose.msra.mxu0 0.0
    %349 = vmatprep.subr.mxu0 0.0
    %350 = vmatpush1.xpose.msra.mxu0 0.0
    %351 = vmatprep.subr.mxu0 0.0
    %352 = vmatpush1.xpose.msra.mxu0 0.0
    %353 = vmatprep.subr.mxu0 0.0
    %354 = vmatpush1.xpose.msra.mxu0 0.0
    %355 = vmatprep.subr.mxu0 0.0
    %356 = vmatpush1.xpose.msra.mxu0 0.0
    %357 = vmatprep.subr.mxu0 0.0
    %358 = vmatpush1.xpose.msra.mxu0 0.0
    %359 = vmatprep.subr.mxu0 0.0
    %360 = vmatpush1.xpose.msra.mxu0 0.0
    %361 = vmatprep.subr.mxu0 0.0
    %362 = vmatpush1.xpose.msra.mxu0 0.0
    %363 = vmatprep.subr.mxu0 0.0
    %364 = vmatpush1.xpose.msra.mxu0 0.0
    %365 = vmatprep.subr.mxu0 0.0
    %366 = vmatpush1.xpose.msra.mxu0 0.0
    %367 = vmatprep.mubr.f32.mxu0 0.0
    %368 = vmatmul.mubr.f32.gmra.mrb[0].mxu0 %v298
    %v369 = vpop.f32.mrb[0].mxu0
    %v370 = vadd.f32 0.0, %v369
    %v371 = vpop.f32.mrb[0].mxu0
    %372 = vdwg.mxu0
    %v374 = vsel %vm296, %v293, 0
    %v377 = vsel %vm296, %v295, 0
    %379 = vmatprep.subr.mxu0 0.0
    %380 = vmatpush1.xpose.msra.mxu0 %v377
    %381 = vmatprep.subr.mxu0 0.0
    %382 = vmatpush1.xpose.msra.mxu0 0.0
    %383 = vmatprep.subr.mxu0 0.0
    %384 = vmatpush1.xpose.msra.mxu0 0.0
    %385 = vmatprep.subr.mxu0 0.0
    %386 = vmatpush1.xpose.msra.mxu0 0.0
    %387 = vmatprep.subr.mxu0 0.0
    %388 = vmatpush1.xpose.msra.mxu0 0.0
    %389 = vmatprep.subr.mxu0 0.0
    %390 = vmatpush1.xpose.msra.mxu0 0.0
    %391 = vmatprep.subr.mxu0 0.0
    %392 = vmatpush1.xpose.msra.mxu0 0.0
    %393 = vmatprep.subr.mxu0 0.0
    %394 = vmatpush1.xpose.msra.mxu0 0.0
    %395 = vmatprep.subr.mxu0 0.0
    %396 = vmatpush1.xpose.msra.mxu0 0.0
    %397 = vmatprep.subr.mxu0 0.0
    %398 = vmatpush1.xpose.msra.mxu0 0.0
    %399 = vmatprep.subr.mxu0 0.0
    %400 = vmatpush1.xpose.msra.mxu0 0.0
    %401 = vmatprep.subr.mxu0 0.0
    %402 = vmatpush1.xpose.msra.mxu0 0.0
    %403 = vmatprep.subr.mxu0 0.0
    %404 = vmatpush1.xpose.msra.mxu0 0.0
    %405 = vmatprep.subr.mxu0 0.0
    %406 = vmatpush1.xpose.msra.mxu0 0.0
    %407 = vmatprep.subr.mxu0 0.0
    %408 = vmatpush1.xpose.msra.mxu0 0.0
    %409 = vmatprep.subr.mxu0 0.0
    %410 = vmatpush1.xpose.msra.mxu0 0.0
    %411 = vmatprep.subr.mxu0 0.0
    %412 = vmatpush1.xpose.msra.mxu0 0.0
    %413 = vmatprep.subr.mxu0 0.0
    %414 = vmatpush1.xpose.msra.mxu0 0.0
    %415 = vmatprep.subr.mxu0 0.0
    %416 = vmatpush1.xpose.msra.mxu0 0.0
    %417 = vmatprep.subr.mxu0 0.0
    %418 = vmatpush1.xpose.msra.mxu0 0.0
    %419 = vmatprep.subr.mxu0 0.0
    %420 = vmatpush1.xpose.msra.mxu0 0.0
    %421 = vmatprep.subr.mxu0 0.0
    %422 = vmatpush1.xpose.msra.mxu0 0.0
    %423 = vmatprep.subr.mxu0 0.0
    %424 = vmatpush1.xpose.msra.mxu0 0.0
    %425 = vmatprep.subr.mxu0 0.0
    %426 = vmatpush1.xpose.msra.mxu0 0.0
    %427 = vmatprep.subr.mxu0 0.0
    %428 = vmatpush1.xpose.msra.mxu0 0.0
    %429 = vmatprep.subr.mxu0 0.0
    %430 = vmatpush1.xpose.msra.mxu0 0.0
    %431 = vmatprep.subr.mxu0 0.0
    %432 = vmatpush1.xpose.msra.mxu0 0.0
    %433 = vmatprep.subr.mxu0 0.0
    %434 = vmatpush1.xpose.msra.mxu0 0.0
    %435 = vmatprep.subr.mxu0 0.0
    %436 = vmatpush1.xpose.msra.mxu0 0.0
    %437 = vmatprep.subr.mxu0 0.0
    %438 = vmatpush1.xpose.msra.mxu0 0.0
    %439 = vmatprep.subr.mxu0 0.0
    %440 = vmatpush1.xpose.msra.mxu0 0.0
    %441 = vmatprep.subr.mxu0 0.0
    %442 = vmatpush1.xpose.msra.mxu0 0.0
    %443 = vmatprep.mubr.f32.mxu0 0.0
    %444 = vmatmul.mubr.f32.gmra.mrb[0].mxu0 %v374
    %v445 = vpop.f32.mrb[0].mxu0
    %v446 = vadd.f32 0.0, %v445
    %v447 = vpop.f32.mrb[0].mxu0
    %448 = vdwg.mxu0
    %v449 = vsel %vm296, %v370, -inf
    %450 = vmax.xlane.f32.xlu0 %v449
    %v451 = vpop.xlane.xlu0 %450
    %v452 = vsel %vm296, %v446, -inf
    %453 = vmax.xlane.f32.xlu0 %v452
    %v454 = vpop.xlane.xlu0 %453
    %v455 = vsub.f32 %v370, %v451
    %v456 = vsub.f32 %v446, %v454
    %v457 = vmul.f32 %v455, 1.442695
    %v458 = vpow.pop %v457
    %v459 = vmul.f32 %v456, 1.442695
    %v460 = vpow.pop %v459
    %v461 = vsel %vm296, %v458, 0.0
    %462 = vadd.xlane.f32.xlu0 %v461
    %v463 = vpop.xlane.xlu0 %462
    %v464 = vsel %vm296, %v460, 0.0
    %465 = vadd.xlane.f32.xlu0 %v464
    %v466 = vpop.xlane.xlu0 %465
    %v467 = vrcp.pop %v463
    %v468 = vrcp.pop %v466
    %v469 = vmul.f32 %v458, %v467
    %v470 = vmul.f32 %v460, %v468
    %471 = vrot.lane.b32.xlu0 %v294, 96
    %v472 = vpop.permute.xlu0 %471
    %v475 = vsel %vm296, %v469, 0
    %477 = vmatprep.subr.mxu0 0.0
    %478 = vmatpush1.msra.mxu0 %v472
    %479 = vmatprep.subr.mxu0 0.0
    %480 = vmatpush1.msra.mxu0 0.0
    %481 = vmatprep.subr.mxu0 0.0
    %482 = vmatpush1.msra.mxu0 0.0
    %483 = vmatprep.subr.mxu0 0.0
    %484 = vmatpush1.msra.mxu0 0.0
    %485 = vmatprep.subr.mxu0 0.0
    %486 = vmatpush1.msra.mxu0 0.0
    %487 = vmatprep.subr.mxu0 0.0
    %488 = vmatpush1.msra.mxu0 0.0
    %489 = vmatprep.subr.mxu0 0.0
    %490 = vmatpush1.msra.mxu0 0.0
    %491 = vmatprep.subr.mxu0 0.0
    %492 = vmatpush1.msra.mxu0 0.0
    %493 = vmatprep.subr.mxu0 0.0
    %494 = vmatpush1.msra.mxu0 0.0
    %495 = vmatprep.subr.mxu0 0.0
    %496 = vmatpush1.msra.mxu0 0.0
    %497 = vmatprep.subr.mxu0 0.0
    %498 = vmatpush1.msra.mxu0 0.0
    %499 = vmatprep.subr.mxu0 0.0
    %500 = vmatpush1.msra.mxu0 0.0
    %501 = vmatprep.subr.mxu0 0.0
    %502 = vmatpush1.msra.mxu0 0.0
    %503 = vmatprep.subr.mxu0 0.0
    %504 = vmatpush1.msra.mxu0 0.0
    %505 = vmatprep.subr.mxu0 0.0
    %506 = vmatpush1.msra.mxu0 0.0
    %507 = vmatprep.subr.mxu0 0.0
    %508 = vmatpush1.msra.mxu0 0.0
    %509 = vmatprep.subr.mxu0 0.0
    %510 = vmatpush1.msra.mxu0 0.0
    %511 = vmatprep.subr.mxu0 0.0
    %512 = vmatpush1.msra.mxu0 0.0
    %513 = vmatprep.subr.mxu0 0.0
    %514 = vmatpush1.msra.mxu0 0.0
    %515 = vmatprep.subr.mxu0 0.0
    %516 = vmatpush1.msra.mxu0 0.0
    %517 = vmatprep.subr.mxu0 0.0
    %518 = vmatpush1.msra.mxu0 0.0
    %519 = vmatprep.subr.mxu0 0.0
    %520 = vmatpush1.msra.mxu0 0.0
    %521 = vmatprep.subr.mxu0 0.0
    %522 = vmatpush1.msra.mxu0 0.0
    %523 = vmatprep.subr.mxu0 0.0
    %524 = vmatpush1.msra.mxu0 0.0
    %525 = vmatprep.subr.mxu0 0.0
    %526 = vmatpush1.msra.mxu0 0.0
    %527 = vmatprep.subr.mxu0 0.0
    %528 = vmatpush1.msra.mxu0 0.0
    %529 = vmatprep.subr.mxu0 0.0
    %530 = vmatpush1.msra.mxu0 0.0
    %531 = vmatprep.subr.mxu0 0.0
    %532 = vmatpush1.msra.mxu0 0.0
    %533 = vmatprep.subr.mxu0 0.0
    %534 = vmatpush1.msra.mxu0 0.0
    %535 = vmatprep.subr.mxu0 0.0
    %536 = vmatpush1.msra.mxu0 0.0
    %537 = vmatprep.subr.mxu0 0.0
    %538 = vmatpush1.msra.mxu0 0.0
    %539 = vmatprep.subr.mxu0 0.0
    %540 = vmatpush1.msra.mxu0 0.0
    %541 = vmatprep.mubr.f32.mxu0 0.0
    %542 = vmatmul.mubr.f32.gmra.mrb[0].mxu0 %v475
    %v543 = vpop.f32.mrb[0].mxu0
    %v544 = vadd.f32 0.0, %v543
    %v545 = vpop.f32.mrb[0].mxu0
    %546 = vdwg.mxu0
    %547 = vrot.lane.b32.xlu0 %v295, 96
    %v548 = vpop.permute.xlu0 %547
    %v551 = vsel %vm296, %v470, 0
    %553 = vmatprep.subr.mxu0 0.0
    %554 = vmatpush1.msra.mxu0 %v548
    %555 = vmatprep.subr.mxu0 0.0
    %556 = vmatpush1.msra.mxu0 0.0
    %557 = vmatprep.subr.mxu0 0.0
    %558 = vmatpush1.msra.mxu0 0.0
    %559 = vmatprep.subr.mxu0 0.0
    %560 = vmatpush1.msra.mxu0 0.0
    %561 = vmatprep.subr.mxu0 0.0
    %562 = vmatpush1.msra.mxu0 0.0
    %563 = vmatprep.subr.mxu0 0.0
    %564 = vmatpush1.msra.mxu0 0.0
    %565 = vmatprep.subr.mxu0 0.0
    %566 = vmatpush1.msra.mxu0 0.0
    %567 = vmatprep.subr.mxu0 0.0
    %568 = vmatpush1.msra.mxu0 0.0
    %569 = vmatprep.subr.mxu0 0.0
    %570 = vmatpush1.msra.mxu0 0.0
    %571 = vmatprep.subr.mxu0 0.0
    %572 = vmatpush1.msra.mxu0 0.0
    %573 = vmatprep.subr.mxu0 0.0
    %574 = vmatpush1.msra.mxu0 0.0
    %575 = vmatprep.subr.mxu0 0.0
    %576 = vmatpush1.msra.mxu0 0.0
    %577 = vmatprep.subr.mxu0 0.0
    %578 = vmatpush1.msra.mxu0 0.0
    %579 = vmatprep.subr.mxu0 0.0
    %580 = vmatpush1.msra.mxu0 0.0
    %581 = vmatprep.subr.mxu0 0.0
    %582 = vmatpush1.msra.mxu0 0.0
    %583 = vmatprep.subr.mxu0 0.0
    %584 = vmatpush1.msra.mxu0 0.0
    %585 = vmatprep.subr.mxu0 0.0
    %586 = vmatpush1.msra.mxu0 0.0
    %587 = vmatprep.subr.mxu0 0.0
    %588 = vmatpush1.msra.mxu0 0.0
    %589 = vmatprep.subr.mxu0 0.0
    %590 = vmatpush1.msra.mxu0 0.0
    %591 = vmatprep.subr.mxu0 0.0
    %592 = vmatpush1.msra.mxu0 0.0
    %593 = vmatprep.subr.mxu0 0.0
    %594 = vmatpush1.msra.mxu0 0.0
    %595 = vmatprep.subr.mxu0 0.0
    %596 = vmatpush1.msra.mxu0 0.0
    %597 = vmatprep.subr.mxu0 0.0
    %598 = vmatpush1.msra.mxu0 0.0
    %599 = vmatprep.subr.mxu0 0.0
    %600 = vmatpush1.msra.mxu0 0.0
    %601 = vmatprep.subr.mxu0 0.0
    %602 = vmatpush1.msra.mxu0 0.0
    %603 = vmatprep.subr.mxu0 0.0
    %604 = vmatpush1.msra.mxu0 0.0
    %605 = vmatprep.subr.mxu0 0.0
    %606 = vmatpush1.msra.mxu0 0.0
    %607 = vmatprep.subr.mxu0 0.0
    %608 = vmatpush1.msra.mxu0 0.0
    %609 = vmatprep.subr.mxu0 0.0
    %610 = vmatpush1.msra.mxu0 0.0
    %611 = vmatprep.subr.mxu0 0.0
    %612 = vmatpush1.msra.mxu0 0.0
    %613 = vmatprep.subr.mxu0 0.0
    %614 = vmatpush1.msra.mxu0 0.0
    %615 = vmatprep.subr.mxu0 0.0
    %616 = vmatpush1.msra.mxu0 0.0
    %617 = vmatprep.mubr.f32.mxu0 0.0
    %618 = vmatmul.mubr.f32.gmra.mrb[0].mxu0 %v551
    %v619 = vpop.f32.mrb[0].mxu0
    %v620 = vadd.f32 0.0, %v619
    %v621 = vpop.f32.mrb[0].mxu0
    %622 = vdwg.mxu0
    %623 = vst.msk [vmem:[#allocation4] sm:$0xff] %vm296, %v544
    %624 = vst.msk [vmem:[#allocation4 + $0x8] sm:$0xff] %vm296, %v620
    %v625 = vld [vmem:[#allocation2] sm:$0xff]
    %v626 = vld [vmem:[#allocation2 + $0x8] sm:$0xff]
    %v627 = vld [vmem:[#allocation3] sm:$0xff]
    %v628 = vld [vmem:[#allocation3 + $0x8] sm:$0xff]
    %630 = vrot.lane.b32.xlu0 %v625, 120
    %v631 = vpop.permute.xlu0 %630
    %633 = vrot.lane.b32.xlu0 %v627, 120
    %v634 = vpop.permute.xlu0 %633
    %v635 = vsel %vm296, %v631, 0
    %v637 = vsel %vm296, %v634, 0
    %639 = vmatprep.subr.mxu0 0.0
    %640 = vmatpush1.xpose.msra.mxu0 %v637
    %641 = vmatprep.subr.mxu0 0.0
    %642 = vmatpush1.xpose.msra.mxu0 0.0
    %643 = vmatprep.subr.mxu0 0.0
    %644 = vmatpush1.xpose.msra.mxu0 0.0
    %645 = vmatprep.subr.mxu0 0.0
    %646 = vmatpush1.xpose.msra.mxu0 0.0
    %647 = vmatprep.subr.mxu0 0.0
    %648 = vmatpush1.xpose.msra.mxu0 0.0
    %649 = vmatprep.subr.mxu0 0.0
    %650 = vmatpush1.xpose.msra.mxu0 0.0
    %651 = vmatprep.subr.mxu0 0.0
    %652 = vmatpush1.xpose.msra.mxu0 0.0
    %653 = vmatprep.subr.mxu0 0.0
    %654 = vmatpush1.xpose.msra.mxu0 0.0
    %655 = vmatprep.subr.mxu0 0.0
    %656 = vmatpush1.xpose.msra.mxu0 0.0
    %657 = vmatprep.subr.mxu0 0.0
    %658 = vmatpush1.xpose.msra.mxu0 0.0
    %659 = vmatprep.subr.mxu0 0.0
    %660 = vmatpush1.xpose.msra.mxu0 0.0
    %661 = vmatprep.subr.mxu0 0.0
    %662 = vmatpush1.xpose.msra.mxu0 0.0
    %663 = vmatprep.subr.mxu0 0.0
    %664 = vmatpush1.xpose.msra.mxu0 0.0
    %665 = vmatprep.subr.mxu0 0.0
    %666 = vmatpush1.xpose.msra.mxu0 0.0
    %667 = vmatprep.subr.mxu0 0.0
    %668 = vmatpush1.xpose.msra.mxu0 0.0
    %669 = vmatprep.subr.mxu0 0.0
    %670 = vmatpush1.xpose.msra.mxu0 0.0
    %671 = vmatprep.subr.mxu0 0.0
    %672 = vmatpush1.xpose.msra.mxu0 0.0
    %673 = vmatprep.subr.mxu0 0.0
    %674 = vmatpush1.xpose.msra.mxu0 0.0
    %675 = vmatprep.subr.mxu0 0.0
    %676 = vmatpush1.xpose.msra.mxu0 0.0
    %677 = vmatprep.subr.mxu0 0.0
    %678 = vmatpush1.xpose.msra.mxu0 0.0
    %679 = vmatprep.subr.mxu0 0.0
    %680 = vmatpush1.xpose.msra.mxu0 0.0
    %681 = vmatprep.subr.mxu0 0.0
    %682 = vmatpush1.xpose.msra.mxu0 0.0
    %683 = vmatprep.subr.mxu0 0.0
    %684 = vmatpush1.xpose.msra.mxu0 0.0
    %685 = vmatprep.subr.mxu0 0.0
    %686 = vmatpush1.xpose.msra.mxu0 0.0
    %687 = vmatprep.subr.mxu0 0.0
    %688 = vmatpush1.xpose.msra.mxu0 0.0
    %689 = vmatprep.subr.mxu0 0.0
    %690 = vmatpush1.xpose.msra.mxu0 0.0
    %691 = vmatprep.subr.mxu0 0.0
    %692 = vmatpush1.xpose.msra.mxu0 0.0
    %693 = vmatprep.subr.mxu0 0.0
    %694 = vmatpush1.xpose.msra.mxu0 0.0
    %695 = vmatprep.subr.mxu0 0.0
    %696 = vmatpush1.xpose.msra.mxu0 0.0
    %697 = vmatprep.subr.mxu0 0.0
    %698 = vmatpush1.xpose.msra.mxu0 0.0
    %699 = vmatprep.subr.mxu0 0.0
    %700 = vmatpush1.xpose.msra.mxu0 0.0
    %701 = vmatprep.subr.mxu0 0.0
    %702 = vmatpush1.xpose.msra.mxu0 0.0
    %703 = vmatprep.mubr.f32.mxu0 0.0
    %704 = vmatmul.mubr.f32.gmra.mrb[0].mxu0 %v635
    %v705 = vpop.f32.mrb[0].mxu0
    %v706 = vadd.f32 0.0, %v705
    %v707 = vpop.f32.mrb[0].mxu0
    %708 = vdwg.mxu0
    %710 = vrot.lane.b32.xlu0 %v626, 120
    %v711 = vpop.permute.xlu0 %710
    %713 = vrot.lane.b32.xlu0 %v628, 120
    %v714 = vpop.permute.xlu0 %713
    %v715 = vsel %vm296, %v711, 0
    %v717 = vsel %vm296, %v714, 0
    %719 = vmatprep.subr.mxu0 0.0
    %720 = vmatpush1.xpose.msra.mxu0 %v717
    %721 = vmatprep.subr.mxu0 0.0
    %722 = vmatpush1.xpose.msra.mxu0 0.0
    %723 = vmatprep.subr.mxu0 0.0
    %724 = vmatpush1.xpose.msra.mxu0 0.0
    %725 = vmatprep.subr.mxu0 0.0
    %726 = vmatpush1.xpose.msra.mxu0 0.0
    %727 = vmatprep.subr.mxu0 0.0
    %728 = vmatpush1.xpose.msra.mxu0 0.0
    %729 = vmatprep.subr.mxu0 0.0
    %730 = vmatpush1.xpose.msra.mxu0 0.0
    %731 = vmatprep.subr.mxu0 0.0
    %732 = vmatpush1.xpose.msra.mxu0 0.0
    %733 = vmatprep.subr.mxu0 0.0
    %734 = vmatpush1.xpose.msra.mxu0 0.0
    %735 = vmatprep.subr.mxu0 0.0
    %736 = vmatpush1.xpose.msra.mxu0 0.0
    %737 = vmatprep.subr.mxu0 0.0
    %738 = vmatpush1.xpose.msra.mxu0 0.0
    %739 = vmatprep.subr.mxu0 0.0
    %740 = vmatpush1.xpose.msra.mxu0 0.0
    %741 = vmatprep.subr.mxu0 0.0
    %742 = vmatpush1.xpose.msra.mxu0 0.0
    %743 = vmatprep.subr.mxu0 0.0
    %744 = vmatpush1.xpose.msra.mxu0 0.0
    %745 = vmatprep.subr.mxu0 0.0
    %746 = vmatpush1.xpose.msra.mxu0 0.0
    %747 = vmatprep.subr.mxu0 0.0
    %748 = vmatpush1.xpose.msra.mxu0 0.0
    %749 = vmatprep.subr.mxu0 0.0
    %750 = vmatpush1.xpose.msra.mxu0 0.0
    %751 = vmatprep.subr.mxu0 0.0
    %752 = vmatpush1.xpose.msra.mxu0 0.0
    %753 = vmatprep.subr.mxu0 0.0
    %754 = vmatpush1.xpose.msra.mxu0 0.0
    %755 = vmatprep.subr.mxu0 0.0
    %756 = vmatpush1.xpose.msra.mxu0 0.0
    %757 = vmatprep.subr.mxu0 0.0
    %758 = vmatpush1.xpose.msra.mxu0 0.0
    %759 = vmatprep.subr.mxu0 0.0
    %760 = vmatpush1.xpose.msra.mxu0 0.0
    %761 = vmatprep.subr.mxu0 0.0
    %762 = vmatpush1.xpose.msra.mxu0 0.0
    %763 = vmatprep.subr.mxu0 0.0
    %764 = vmatpush1.xpose.msra.mxu0 0.0
    %765 = vmatprep.subr.mxu0 0.0
    %766 = vmatpush1.xpose.msra.mxu0 0.0
    %767 = vmatprep.subr.mxu0 0.0
    %768 = vmatpush1.xpose.msra.mxu0 0.0
    %769 = vmatprep.subr.mxu0 0.0
    %770 = vmatpush1.xpose.msra.mxu0 0.0
    %771 = vmatprep.subr.mxu0 0.0
    %772 = vmatpush1.xpose.msra.mxu0 0.0
    %773 = vmatprep.subr.mxu0 0.0
    %774 = vmatpush1.xpose.msra.mxu0 0.0
    %775 = vmatprep.subr.mxu0 0.0
    %776 = vmatpush1.xpose.msra.mxu0 0.0
    %777 = vmatprep.subr.mxu0 0.0
    %778 = vmatpush1.xpose.msra.mxu0 0.0
    %779 = vmatprep.subr.mxu0 0.0
    %780 = vmatpush1.xpose.msra.mxu0 0.0
    %781 = vmatprep.subr.mxu0 0.0
    %782 = vmatpush1.xpose.msra.mxu0 0.0
    %783 = vmatprep.mubr.f32.mxu0 0.0
    %784 = vmatmul.mubr.f32.gmra.mrb[0].mxu0 %v715
    %v785 = vpop.f32.mrb[0].mxu0
    %v786 = vadd.f32 0.0, %v785
    %v787 = vpop.f32.mrb[0].mxu0
    %788 = vdwg.mxu0
    %v789 = vsel %vm296, %v706, -inf
    %790 = vmax.xlane.f32.xlu0 %v789
    %v791 = vpop.xlane.xlu0 %790
    %v792 = vsel %vm296, %v786, -inf
    %793 = vmax.xlane.f32.xlu0 %v792
    %v794 = vpop.xlane.xlu0 %793
    %v795 = vsub.f32 %v706, %v791
    %v796 = vsub.f32 %v786, %v794
    %v797 = vmul.f32 %v795, 1.442695
    %v798 = vpow.pop %v797
    %v799 = vmul.f32 %v796, 1.442695
    %v800 = vpow.pop %v799
    %v801 = vsel %vm296, %v798, 0.0
    %802 = vadd.xlane.f32.xlu0 %v801
    %v803 = vpop.xlane.xlu0 %802
    %v804 = vsel %vm296, %v800, 0.0
    %805 = vadd.xlane.f32.xlu0 %v804
    %v806 = vpop.xlane.xlu0 %805
    %v807 = vrcp.pop %v803
    %v808 = vrcp.pop %v806
    %v809 = vmul.f32 %v798, %v807
    %v810 = vmul.f32 %v800, %v808
    %811 = vrot.lane.b32.xlu0 %v627, 88
    %v812 = vpop.permute.xlu0 %811
    %v815 = vsel %vm296, %v809, 0
    %817 = vmatprep.subr.mxu0 0.0
    %818 = vmatpush1.msra.mxu0 %v812
    %819 = vmatprep.subr.mxu0 0.0
    %820 = vmatpush1.msra.mxu0 0.0
    %821 = vmatprep.subr.mxu0 0.0
    %822 = vmatpush1.msra.mxu0 0.0
    %823 = vmatprep.subr.mxu0 0.0
    %824 = vmatpush1.msra.mxu0 0.0
    %825 = vmatprep.subr.mxu0 0.0
    %826 = vmatpush1.msra.mxu0 0.0
    %827 = vmatprep.subr.mxu0 0.0
    %828 = vmatpush1.msra.mxu0 0.0
    %829 = vmatprep.subr.mxu0 0.0
    %830 = vmatpush1.msra.mxu0 0.0
    %831 = vmatprep.subr.mxu0 0.0
    %832 = vmatpush1.msra.mxu0 0.0
    %833 = vmatprep.subr.mxu0 0.0
    %834 = vmatpush1.msra.mxu0 0.0
    %835 = vmatprep.subr.mxu0 0.0
    %836 = vmatpush1.msra.mxu0 0.0
    %837 = vmatprep.subr.mxu0 0.0
    %838 = vmatpush1.msra.mxu0 0.0
    %839 = vmatprep.subr.mxu0 0.0
    %840 = vmatpush1.msra.mxu0 0.0
    %841 = vmatprep.subr.mxu0 0.0
    %842 = vmatpush1.msra.mxu0 0.0
    %843 = vmatprep.subr.mxu0 0.0
    %844 = vmatpush1.msra.mxu0 0.0
    %845 = vmatprep.subr.mxu0 0.0
    %846 = vmatpush1.msra.mxu0 0.0
    %847 = vmatprep.subr.mxu0 0.0
    %848 = vmatpush1.msra.mxu0 0.0
    %849 = vmatprep.subr.mxu0 0.0
    %850 = vmatpush1.msra.mxu0 0.0
    %851 = vmatprep.subr.mxu0 0.0
    %852 = vmatpush1.msra.mxu0 0.0
    %853 = vmatprep.subr.mxu0 0.0
    %854 = vmatpush1.msra.mxu0 0.0
    %855 = vmatprep.subr.mxu0 0.0
    %856 = vmatpush1.msra.mxu0 0.0
    %857 = vmatprep.subr.mxu0 0.0
    %858 = vmatpush1.msra.mxu0 0.0
    %859 = vmatprep.subr.mxu0 0.0
    %860 = vmatpush1.msra.mxu0 0.0
    %861 = vmatprep.subr.mxu0 0.0
    %862 = vmatpush1.msra.mxu0 0.0
    %863 = vmatprep.subr.mxu0 0.0
    %864 = vmatpush1.msra.mxu0 0.0
    %865 = vmatprep.subr.mxu0 0.0
    %866 = vmatpush1.msra.mxu0 0.0
    %867 = vmatprep.subr.mxu0 0.0
    %868 = vmatpush1.msra.mxu0 0.0
    %869 = vmatprep.subr.mxu0 0.0
    %870 = vmatpush1.msra.mxu0 0.0
    %871 = vmatprep.subr.mxu0 0.0
    %872 = vmatpush1.msra.mxu0 0.0
    %873 = vmatprep.subr.mxu0 0.0
    %874 = vmatpush1.msra.mxu0 0.0
    %875 = vmatprep.subr.mxu0 0.0
    %876 = vmatpush1.msra.mxu0 0.0
    %877 = vmatprep.subr.mxu0 0.0
    %878 = vmatpush1.msra.mxu0 0.0
    %879 = vmatprep.subr.mxu0 0.0
    %880 = vmatpush1.msra.mxu0 0.0
    %881 = vmatprep.mubr.f32.mxu0 0.0
    %882 = vmatmul.mubr.f32.gmra.mrb[0].mxu0 %v815
    %v883 = vpop.f32.mrb[0].mxu0
    %v884 = vadd.f32 0.0, %v883
    %v885 = vpop.f32.mrb[0].mxu0
    %886 = vdwg.mxu0
    %887 = vrot.lane.b32.xlu0 %v628, 88
    %v888 = vpop.permute.xlu0 %887
    %v891 = vsel %vm296, %v810, 0
    %893 = vmatprep.subr.mxu0 0.0
    %894 = vmatpush1.msra.mxu0 %v888
    %895 = vmatprep.subr.mxu0 0.0
    %896 = vmatpush1.msra.mxu0 0.0
    %897 = vmatprep.subr.mxu0 0.0
    %898 = vmatpush1.msra.mxu0 0.0
    %899 = vmatprep.subr.mxu0 0.0
    %900 = vmatpush1.msra.mxu0 0.0
    %901 = vmatprep.subr.mxu0 0.0
    %902 = vmatpush1.msra.mxu0 0.0
    %903 = vmatprep.subr.mxu0 0.0
    %904 = vmatpush1.msra.mxu0 0.0
    %905 = vmatprep.subr.mxu0 0.0
    %906 = vmatpush1.msra.mxu0 0.0
    %907 = vmatprep.subr.mxu0 0.0
    %908 = vmatpush1.msra.mxu0 0.0
    %909 = vmatprep.subr.mxu0 0.0
    %910 = vmatpush1.msra.mxu0 0.0
    %911 = vmatprep.subr.mxu0 0.0
    %912 = vmatpush1.msra.mxu0 0.0
    %913 = vmatprep.subr.mxu0 0.0
    %914 = vmatpush1.msra.mxu0 0.0
    %915 = vmatprep.subr.mxu0 0.0
    %916 = vmatpush1.msra.mxu0 0.0
    %917 = vmatprep.subr.mxu0 0.0
    %918 = vmatpush1.msra.mxu0 0.0
    %919 = vmatprep.subr.mxu0 0.0
    %920 = vmatpush1.msra.mxu0 0.0
    %921 = vmatprep.subr.mxu0 0.0
    %922 = vmatpush1.msra.mxu0 0.0
    %923 = vmatprep.subr.mxu0 0.0
    %924 = vmatpush1.msra.mxu0 0.0
    %925 = vmatprep.subr.mxu0 0.0
    %926 = vmatpush1.msra.mxu0 0.0
    %927 = vmatprep.subr.mxu0 0.0
    %928 = vmatpush1.msra.mxu0 0.0
    %929 = vmatprep.subr.mxu0 0.0
    %930 = vmatpush1.msra.mxu0 0.0
    %931 = vmatprep.subr.mxu0 0.0
    %932 = vmatpush1.msra.mxu0 0.0
    %933 = vmatprep.subr.mxu0 0.0
    %934 = vmatpush1.msra.mxu0 0.0
    %935 = vmatprep.subr.mxu0 0.0
    %936 = vmatpush1.msra.mxu0 0.0
    %937 = vmatprep.subr.mxu0 0.0
    %938 = vmatpush1.msra.mxu0 0.0
    %939 = vmatprep.subr.mxu0 0.0
    %940 = vmatpush1.msra.mxu0 0.0
    %941 = vmatprep.subr.mxu0 0.0
    %942 = vmatpush1.msra.mxu0 0.0
    %943 = vmatprep.subr.mxu0 0.0
    %944 = vmatpush1.msra.mxu0 0.0
    %945 = vmatprep.subr.mxu0 0.0
    %946 = vmatpush1.msra.mxu0 0.0
    %947 = vmatprep.subr.mxu0 0.0
    %948 = vmatpush1.msra.mxu0 0.0
    %949 = vmatprep.subr.mxu0 0.0
    %950 = vmatpush1.msra.mxu0 0.0
    %951 = vmatprep.subr.mxu0 0.0
    %952 = vmatpush1.msra.mxu0 0.0
    %953 = vmatprep.subr.mxu0 0.0
    %954 = vmatpush1.msra.mxu0 0.0
    %955 = vmatprep.subr.mxu0 0.0
    %956 = vmatpush1.msra.mxu0 0.0
    %957 = vmatprep.mubr.f32.mxu0 0.0
    %958 = vmatmul.mubr.f32.gmra.mrb[0].mxu0 %v891
    %v959 = vpop.f32.mrb[0].mxu0
    %v960 = vadd.f32 0.0, %v959
    %v961 = vpop.f32.mrb[0].mxu0
    %962 = vdwg.mxu0
    %965 = vrot.lane.b32.xlu0 %v884, 8
    %v966 = vpop.permute.xlu0 %965
    %967 = vrot.lane.b32.xlu0 %v960, 8
    %v968 = vpop.permute.xlu0 %967
    %vm971 = vcmask 130112
    %972 = vst.msk [vmem:[#allocation4] sm:$0xff] %vm971, %v966
    %973 = vst.msk [vmem:[#allocation4 + $0x8] sm:$0xff] %vm971, %v968
    %v974 = vld [vmem:[#allocation2] sm:$0xff]
    %v975 = vld [vmem:[#allocation2 + $0x8] sm:$0xff]
    %v976 = vld [vmem:[#allocation3] sm:$0xff]
    %v977 = vld [vmem:[#allocation3 + $0x8] sm:$0xff]
    %979 = vrot.lane.b32.xlu0 %v974, 112
    %v980 = vpop.permute.xlu0 %979
    %982 = vrot.lane.b32.xlu0 %v976, 112
    %v983 = vpop.permute.xlu0 %982
    %v984 = vsel %vm296, %v980, 0
    %v986 = vsel %vm296, %v983, 0
    %988 = vmatprep.subr.mxu0 0.0
    %989 = vmatpush1.xpose.msra.mxu0 %v986
    %990 = vmatprep.subr.mxu0 0.0
    %991 = vmatpush1.xpose.msra.mxu0 0.0
    %992 = vmatprep.subr.mxu0 0.0
    %993 = vmatpush1.xpose.msra.mxu0 0.0
    %994 = vmatprep.subr.mxu0 0.0
    %995 = vmatpush1.xpose.msra.mxu0 0.0
    %996 = vmatprep.subr.mxu0 0.0
    %997 = vmatpush1.xpose.msra.mxu0 0.0
    %998 = vmatprep.subr.mxu0 0.0
    %999 = vmatpush1.xpose.msra.mxu0 0.0
    %1000 = vmatprep.subr.mxu0 0.0
    %1001 = vmatpush1.xpose.msra.mxu0 0.0
    %1002 = vmatprep.subr.mxu0 0.0
    %1003 = vmatpush1.xpose.msra.mxu0 0.0
    %1004 = vmatprep.subr.mxu0 0.0
    %1005 = vmatpush1.xpose.msra.mxu0 0.0
    %1006 = vmatprep.subr.mxu0 0.0
    %1007 = vmatpush1.xpose.msra.mxu0 0.0
    %1008 = vmatprep.subr.mxu0 0.0
    %1009 = vmatpush1.xpose.msra.mxu0 0.0
    %1010 = vmatprep.subr.mxu0 0.0
    %1011 = vmatpush1.xpose.msra.mxu0 0.0
    %1012 = vmatprep.subr.mxu0 0.0
    %1013 = vmatpush1.xpose.msra.mxu0 0.0
    %1014 = vmatprep.subr.mxu0 0.0
    %1015 = vmatpush1.xpose.msra.mxu0 0.0
    %1016 = vmatprep.subr.mxu0 0.0
    %1017 = vmatpush1.xpose.msra.mxu0 0.0
    %1018 = vmatprep.subr.mxu0 0.0
    %1019 = vmatpush1.xpose.msra.mxu0 0.0
    %1020 = vmatprep.subr.mxu0 0.0
    %1021 = vmatpush1.xpose.msra.mxu0 0.0
    %1022 = vmatprep.subr.mxu0 0.0
    %1023 = vmatpush1.xpose.msra.mxu0 0.0
    %1024 = vmatprep.subr.mxu0 0.0
    %1025 = vmatpush1.xpose.msra.mxu0 0.0
    %1026 = vmatprep.subr.mxu0 0.0
    %1027 = vmatpush1.xpose.msra.mxu0 0.0
    %1028 = vmatprep.subr.mxu0 0.0
    %1029 = vmatpush1.xpose.msra.mxu0 0.0
    %1030 = vmatprep.subr.mxu0 0.0
    %1031 = vmatpush1.xpose.msra.mxu0 0.0
    %1032 = vmatprep.subr.mxu0 0.0
    %1033 = vmatpush1.xpose.msra.mxu0 0.0
    %1034 = vmatprep.subr.mxu0 0.0
    %1035 = vmatpush1.xpose.msra.mxu0 0.0
    %1036 = vmatprep.subr.mxu0 0.0
    %1037 = vmatpush1.xpose.msra.mxu0 0.0
    %1038 = vmatprep.subr.mxu0 0.0
    %1039 = vmatpush1.xpose.msra.mxu0 0.0
    %1040 = vmatprep.subr.mxu0 0.0
    %1041 = vmatpush1.xpose.msra.mxu0 0.0
    %1042 = vmatprep.subr.mxu0 0.0
    %1043 = vmatpush1.xpose.msra.mxu0 0.0
    %1044 = vmatprep.subr.mxu0 0.0
    %1045 = vmatpush1.xpose.msra.mxu0 0.0
    %1046 = vmatprep.subr.mxu0 0.0
    %1047 = vmatpush1.xpose.msra.mxu0 0.0
    %1048 = vmatprep.subr.mxu0 0.0
    %1049 = vmatpush1.xpose.msra.mxu0 0.0
    %1050 = vmatprep.subr.mxu0 0.0
    %1051 = vmatpush1.xpose.msra.mxu0 0.0
    %1052 = vmatprep.mubr.f32.mxu0 0.0
    %1053 = vmatmul.mubr.f32.gmra.mrb[0].mxu0 %v984
    %v1054 = vpop.f32.mrb[0].mxu0
    %v1055 = vadd.f32 0.0, %v1054
    %v1056 = vpop.f32.mrb[0].mxu0
    %1057 = vdwg.mxu0
    %1059 = vrot.lane.b32.xlu0 %v975, 112
    %v1060 = vpop.permute.xlu0 %1059
    %1062 = vrot.lane.b32.xlu0 %v977, 112
    %v1063 = vpop.permute.xlu0 %1062
    %v1064 = vsel %vm296, %v1060, 0
    %v1066 = vsel %vm296, %v1063, 0
    %1068 = vmatprep.subr.mxu0 0.0
    %1069 = vmatpush1.xpose.msra.mxu0 %v1066
    %1070 = vmatprep.subr.mxu0 0.0
    %1071 = vmatpush1.xpose.msra.mxu0 0.0
    %1072 = vmatprep.subr.mxu0 0.0
    %1073 = vmatpush1.xpose.msra.mxu0 0.0
    %1074 = vmatprep.subr.mxu0 0.0
    %1075 = vmatpush1.xpose.msra.mxu0 0.0
    %1076 = vmatprep.subr.mxu0 0.0
    %1077 = vmatpush1.xpose.msra.mxu0 0.0
    %1078 = vmatprep.subr.mxu0 0.0
    %1079 = vmatpush1.xpose.msra.mxu0 0.0
    %1080 = vmatprep.subr.mxu0 0.0
    %1081 = vmatpush1.xpose.msra.mxu0 0.0
    %1082 = vmatprep.subr.mxu0 0.0
    %1083 = vmatpush1.xpose.msra.mxu0 0.0
    %1084 = vmatprep.subr.mxu0 0.0
    %1085 = vmatpush1.xpose.msra.mxu0 0.0
    %1086 = vmatprep.subr.mxu0 0.0
    %1087 = vmatpush1.xpose.msra.mxu0 0.0
    %1088 = vmatprep.subr.mxu0 0.0
    %1089 = vmatpush1.xpose.msra.mxu0 0.0
    %1090 = vmatprep.subr.mxu0 0.0
    %1091 = vmatpush1.xpose.msra.mxu0 0.0
    %1092 = vmatprep.subr.mxu0 0.0
    %1093 = vmatpush1.xpose.msra.mxu0 0.0
    %1094 = vmatprep.subr.mxu0 0.0
    %1095 = vmatpush1.xpose.msra.mxu0 0.0
    %1096 = vmatprep.subr.mxu0 0.0
    %1097 = vmatpush1.xpose.msra.mxu0 0.0
    %1098 = vmatprep.subr.mxu0 0.0
    %1099 = vmatpush1.xpose.msra.mxu0 0.0
    %1100 = vmatprep.subr.mxu0 0.0
    %1101 = vmatpush1.xpose.msra.mxu0 0.0
    %1102 = vmatprep.subr.mxu0 0.0
    %1103 = vmatpush1.xpose.msra.mxu0 0.0
    %1104 = vmatprep.subr.mxu0 0.0
    %1105 = vmatpush1.xpose.msra.mxu0 0.0
    %1106 = vmatprep.subr.mxu0 0.0
    %1107 = vmatpush1.xpose.msra.mxu0 0.0
    %1108 = vmatprep.subr.mxu0 0.0
    %1109 = vmatpush1.xpose.msra.mxu0 0.0
    %1110 = vmatprep.subr.mxu0 0.0
    %1111 = vmatpush1.xpose.msra.mxu0 0.0
    %1112 = vmatprep.subr.mxu0 0.0
    %1113 = vmatpush1.xpose.msra.mxu0 0.0
    %1114 = vmatprep.subr.mxu0 0.0
    %1115 = vmatpush1.xpose.msra.mxu0 0.0
    %1116 = vmatprep.subr.mxu0 0.0
    %1117 = vmatpush1.xpose.msra.mxu0 0.0
    %1118 = vmatprep.subr.mxu0 0.0
    %1119 = vmatpush1.xpose.msra.mxu0 0.0
    %1120 = vmatprep.subr.mxu0 0.0
    %1121 = vmatpush1.xpose.msra.mxu0 0.0
    %1122 = vmatprep.subr.mxu0 0.0
    %1123 = vmatpush1.xpose.msra.mxu0 0.0
    %1124 = vmatprep.subr.mxu0 0.0
    %1125 = vmatpush1.xpose.msra.mxu0 0.0
    %1126 = vmatprep.subr.mxu0 0.0
    %1127 = vmatpush1.xpose.msra.mxu0 0.0
    %1128 = vmatprep.subr.mxu0 0.0
    %1129 = vmatpush1.xpose.msra.mxu0 0.0
    %1130 = vmatprep.subr.mxu0 0.0
    %1131 = vmatpush1.xpose.msra.mxu0 0.0
    %1132 = vmatprep.mubr.f32.mxu0 0.0
    %1133 = vmatmul.mubr.f32.gmra.mrb[0].mxu0 %v1064
    %v1134 = vpop.f32.mrb[0].mxu0
    %v1135 = vadd.f32 0.0, %v1134
    %v1136 = vpop.f32.mrb[0].mxu0
    %1137 = vdwg.mxu0
    %v1138 = vsel %vm296, %v1055, -inf
    %1139 = vmax.xlane.f32.xlu0 %v1138
    %v1140 = vpop.xlane.xlu0 %1139
    %v1141 = vsel %vm296, %v1135, -inf
    %1142 = vmax.xlane.f32.xlu0 %v1141
    %v1143 = vpop.xlane.xlu0 %1142
    %v1144 = vsub.f32 %v1055, %v1140
    %v1145 = vsub.f32 %v1135, %v1143
    %v1146 = vmul.f32 %v1144, 1.442695
    %v1147 = vpow.pop %v1146
    %v1148 = vmul.f32 %v1145, 1.442695
    %v1149 = vpow.pop %v1148
    %v1150 = vsel %vm296, %v1147, 0.0
    %1151 = vadd.xlane.f32.xlu0 %v1150
    %v1152 = vpop.xlane.xlu0 %1151
    %v1153 = vsel %vm296, %v1149, 0.0
    %1154 = vadd.xlane.f32.xlu0 %v1153
    %v1155 = vpop.xlane.xlu0 %1154
    %v1156 = vrcp.pop %v1152
    %v1157 = vrcp.pop %v1155
    %v1158 = vmul.f32 %v1147, %v1156
    %v1159 = vmul.f32 %v1149, %v1157
    %1160 = vrot.lane.b32.xlu0 %v976, 80
    %v1161 = vpop.permute.xlu0 %1160
    %v1164 = vsel %vm296, %v1158, 0
    %1166 = vmatprep.subr.mxu0 0.0
    %1167 = vmatpush1.msra.mxu0 %v1161
    %1168 = vmatprep.subr.mxu0 0.0
    %1169 = vmatpush1.msra.mxu0 0.0
    %1170 = vmatprep.subr.mxu0 0.0
    %1171 = vmatpush1.msra.mxu0 0.0
    %1172 = vmatprep.subr.mxu0 0.0
    %1173 = vmatpush1.msra.mxu0 0.0
    %1174 = vmatprep.subr.mxu0 0.0
    %1175 = vmatpush1.msra.mxu0 0.0
    %1176 = vmatprep.subr.mxu0 0.0
    %1177 = vmatpush1.msra.mxu0 0.0
    %1178 = vmatprep.subr.mxu0 0.0
    %1179 = vmatpush1.msra.mxu0 0.0
    %1180 = vmatprep.subr.mxu0 0.0
    %1181 = vmatpush1.msra.mxu0 0.0
    %1182 = vmatprep.subr.mxu0 0.0
    %1183 = vmatpush1.msra.mxu0 0.0
    %1184 = vmatprep.subr.mxu0 0.0
    %1185 = vmatpush1.msra.mxu0 0.0
    %1186 = vmatprep.subr.mxu0 0.0
    %1187 = vmatpush1.msra.mxu0 0.0
    %1188 = vmatprep.subr.mxu0 0.0
    %1189 = vmatpush1.msra.mxu0 0.0
    %1190 = vmatprep.subr.mxu0 0.0
    %1191 = vmatpush1.msra.mxu0 0.0
    %1192 = vmatprep.subr.mxu0 0.0
    %1193 = vmatpush1.msra.mxu0 0.0
    %1194 = vmatprep.subr.mxu0 0.0
    %1195 = vmatpush1.msra.mxu0 0.0
    %1196 = vmatprep.subr.mxu0 0.0
    %1197 = vmatpush1.msra.mxu0 0.0
    %1198 = vmatprep.subr.mxu0 0.0
    %1199 = vmatpush1.msra.mxu0 0.0
    %1200 = vmatprep.subr.mxu0 0.0
    %1201 = vmatpush1.msra.mxu0 0.0
    %1202 = vmatprep.subr.mxu0 0.0
    %1203 = vmatpush1.msra.mxu0 0.0
    %1204 = vmatprep.subr.mxu0 0.0
    %1205 = vmatpush1.msra.mxu0 0.0
    %1206 = vmatprep.subr.mxu0 0.0
    %1207 = vmatpush1.msra.mxu0 0.0
    %1208 = vmatprep.subr.mxu0 0.0
    %1209 = vmatpush1.msra.mxu0 0.0
    %1210 = vmatprep.subr.mxu0 0.0
    %1211 = vmatpush1.msra.mxu0 0.0
    %1212 = vmatprep.subr.mxu0 0.0
    %1213 = vmatpush1.msra.mxu0 0.0
    %1214 = vmatprep.subr.mxu0 0.0
    %1215 = vmatpush1.msra.mxu0 0.0
    %1216 = vmatprep.subr.mxu0 0.0
    %1217 = vmatpush1.msra.mxu0 0.0
    %1218 = vmatprep.subr.mxu0 0.0
    %1219 = vmatpush1.msra.mxu0 0.0
    %1220 = vmatprep.subr.mxu0 0.0
    %1221 = vmatpush1.msra.mxu0 0.0
    %1222 = vmatprep.subr.mxu0 0.0
    %1223 = vmatpush1.msra.mxu0 0.0
    %1224 = vmatprep.subr.mxu0 0.0
    %1225 = vmatpush1.msra.mxu0 0.0
    %1226 = vmatprep.subr.mxu0 0.0
    %1227 = vmatpush1.msra.mxu0 0.0
    %1228 = vmatprep.subr.mxu0 0.0
    %1229 = vmatpush1.msra.mxu0 0.0
    %1230 = vmatprep.mubr.f32.mxu0 0.0
    %1231 = vmatmul.mubr.f32.gmra.mrb[0].mxu0 %v1164
    %v1232 = vpop.f32.mrb[0].mxu0
    %v1233 = vadd.f32 0.0, %v1232
    %v1234 = vpop.f32.mrb[0].mxu0
    %1235 = vdwg.mxu0
    %1236 = vrot.lane.b32.xlu0 %v977, 80
    %v1237 = vpop.permute.xlu0 %1236
    %v1240 = vsel %vm296, %v1159, 0
    %1242 = vmatprep.subr.mxu0 0.0
    %1243 = vmatpush1.msra.mxu0 %v1237
    %1244 = vmatprep.subr.mxu0 0.0
    %1245 = vmatpush1.msra.mxu0 0.0
    %1246 = vmatprep.subr.mxu0 0.0
    %1247 = vmatpush1.msra.mxu0 0.0
    %1248 = vmatprep.subr.mxu0 0.0
    %1249 = vmatpush1.msra.mxu0 0.0
    %1250 = vmatprep.subr.mxu0 0.0
    %1251 = vmatpush1.msra.mxu0 0.0
    %1252 = vmatprep.subr.mxu0 0.0
    %1253 = vmatpush1.msra.mxu0 0.0
    %1254 = vmatprep.subr.mxu0 0.0
    %1255 = vmatpush1.msra.mxu0 0.0
    %1256 = vmatprep.subr.mxu0 0.0
    %1257 = vmatpush1.msra.mxu0 0.0
    %1258 = vmatprep.subr.mxu0 0.0
    %1259 = vmatpush1.msra.mxu0 0.0
    %1260 = vmatprep.subr.mxu0 0.0
    %1261 = vmatpush1.msra.mxu0 0.0
    %1262 = vmatprep.subr.mxu0 0.0
    %1263 = vmatpush1.msra.mxu0 0.0
    %1264 = vmatprep.subr.mxu0 0.0
    %1265 = vmatpush1.msra.mxu0 0.0
    %1266 = vmatprep.subr.mxu0 0.0
    %1267 = vmatpush1.msra.mxu0 0.0
    %1268 = vmatprep.subr.mxu0 0.0
    %1269 = vmatpush1.msra.mxu0 0.0
    %1270 = vmatprep.subr.mxu0 0.0
    %1271 = vmatpush1.msra.mxu0 0.0
    %1272 = vmatprep.subr.mxu0 0.0
    %1273 = vmatpush1.msra.mxu0 0.0
    %1274 = vmatprep.subr.mxu0 0.0
    %1275 = vmatpush1.msra.mxu0 0.0
    %1276 = vmatprep.subr.mxu0 0.0
    %1277 = vmatpush1.msra.mxu0 0.0
    %1278 = vmatprep.subr.mxu0 0.0
    %1279 = vmatpush1.msra.mxu0 0.0
    %1280 = vmatprep.subr.mxu0 0.0
    %1281 = vmatpush1.msra.mxu0 0.0
    %1282 = vmatprep.subr.mxu0 0.0
    %1283 = vmatpush1.msra.mxu0 0.0
    %1284 = vmatprep.subr.mxu0 0.0
    %1285 = vmatpush1.msra.mxu0 0.0
    %1286 = vmatprep.subr.mxu0 0.0
    %1287 = vmatpush1.msra.mxu0 0.0
    %1288 = vmatprep.subr.mxu0 0.0
    %1289 = vmatpush1.msra.mxu0 0.0
    %1290 = vmatprep.subr.mxu0 0.0
    %1291 = vmatpush1.msra.mxu0 0.0
    %1292 = vmatprep.subr.mxu0 0.0
    %1293 = vmatpush1.msra.mxu0 0.0
    %1294 = vmatprep.subr.mxu0 0.0
    %1295 = vmatpush1.msra.mxu0 0.0
    %1296 = vmatprep.subr.mxu0 0.0
    %1297 = vmatpush1.msra.mxu0 0.0
    %1298 = vmatprep.subr.mxu0 0.0
    %1299 = vmatpush1.msra.mxu0 0.0
    %1300 = vmatprep.subr.mxu0 0.0
    %1301 = vmatpush1.msra.mxu0 0.0
    %1302 = vmatprep.subr.mxu0 0.0
    %1303 = vmatpush1.msra.mxu0 0.0
    %1304 = vmatprep.subr.mxu0 0.0
    %1305 = vmatpush1.msra.mxu0 0.0
    %1306 = vmatprep.mubr.f32.mxu0 0.0
    %1307 = vmatmul.mubr.f32.gmra.mrb[0].mxu0 %v1240
    %v1308 = vpop.f32.mrb[0].mxu0
    %v1309 = vadd.f32 0.0, %v1308
    %v1310 = vpop.f32.mrb[0].mxu0
    %1311 = vdwg.mxu0
    %1314 = vrot.lane.b32.xlu0 %v1233, 16
    %v1315 = vpop.permute.xlu0 %1314
    %1316 = vrot.lane.b32.xlu0 %v1309, 16
    %v1317 = vpop.permute.xlu0 %1316
    %vm1320 = vcmask 195712
    %1321 = vst.msk [vmem:[#allocation4] sm:$0xff] %vm1320, %v1315
    %1322 = vst.msk [vmem:[#allocation4 + $0x8] sm:$0xff] %vm1320, %v1317
    %v1323 = vld [vmem:[#allocation2] sm:$0xff]
    %v1324 = vld [vmem:[#allocation2 + $0x8] sm:$0xff]
    %v1325 = vld [vmem:[#allocation3] sm:$0xff]
    %v1326 = vld [vmem:[#allocation3 + $0x8] sm:$0xff]
    %1328 = vrot.lane.b32.xlu0 %v1323, 104
    %v1329 = vpop.permute.xlu0 %1328
    %1331 = vrot.lane.b32.xlu0 %v1325, 104
    %v1332 = vpop.permute.xlu0 %1331
    %v1333 = vsel %vm296, %v1329, 0
    %v1335 = vsel %vm296, %v1332, 0
    %1337 = vmatprep.subr.mxu0 0.0
    %1338 = vmatpush1.xpose.msra.mxu0 %v1335
    %1339 = vmatprep.subr.mxu0 0.0
    %1340 = vmatpush1.xpose.msra.mxu0 0.0
    %1341 = vmatprep.subr.mxu0 0.0
    %1342 = vmatpush1.xpose.msra.mxu0 0.0
    %1343 = vmatprep.subr.mxu0 0.0
    %1344 = vmatpush1.xpose.msra.mxu0 0.0
    %1345 = vmatprep.subr.mxu0 0.0
    %1346 = vmatpush1.xpose.msra.mxu0 0.0
    %1347 = vmatprep.subr.mxu0 0.0
    %1348 = vmatpush1.xpose.msra.mxu0 0.0
    %1349 = vmatprep.subr.mxu0 0.0
    %1350 = vmatpush1.xpose.msra.mxu0 0.0
    %1351 = vmatprep.subr.mxu0 0.0
    %1352 = vmatpush1.xpose.msra.mxu0 0.0
    %1353 = vmatprep.subr.mxu0 0.0
    %1354 = vmatpush1.xpose.msra.mxu0 0.0
    %1355 = vmatprep.subr.mxu0 0.0
    %1356 = vmatpush1.xpose.msra.mxu0 0.0
    %1357 = vmatprep.subr.mxu0 0.0
    %1358 = vmatpush1.xpose.msra.mxu0 0.0
    %1359 = vmatprep.subr.mxu0 0.0
    %1360 = vmatpush1.xpose.msra.mxu0 0.0
    %1361 = vmatprep.subr.mxu0 0.0
    %1362 = vmatpush1.xpose.msra.mxu0 0.0
    %1363 = vmatprep.subr.mxu0 0.0
    %1364 = vmatpush1.xpose.msra.mxu0 0.0
    %1365 = vmatprep.subr.mxu0 0.0
    %1366 = vmatpush1.xpose.msra.mxu0 0.0
    %1367 = vmatprep.subr.mxu0 0.0
    %1368 = vmatpush1.xpose.msra.mxu0 0.0
    %1369 = vmatprep.subr.mxu0 0.0
    %1370 = vmatpush1.xpose.msra.mxu0 0.0
    %1371 = vmatprep.subr.mxu0 0.0
    %1372 = vmatpush1.xpose.msra.mxu0 0.0
    %1373 = vmatprep.subr.mxu0 0.0
    %1374 = vmatpush1.xpose.msra.mxu0 0.0
    %1375 = vmatprep.subr.mxu0 0.0
    %1376 = vmatpush1.xpose.msra.mxu0 0.0
    %1377 = vmatprep.subr.mxu0 0.0
    %1378 = vmatpush1.xpose.msra.mxu0 0.0
    %1379 = vmatprep.subr.mxu0 0.0
    %1380 = vmatpush1.xpose.msra.mxu0 0.0
    %1381 = vmatprep.subr.mxu0 0.0
    %1382 = vmatpush1.xpose.msra.mxu0 0.0
    %1383 = vmatprep.subr.mxu0 0.0
    %1384 = vmatpush1.xpose.msra.mxu0 0.0
    %1385 = vmatprep.subr.mxu0 0.0
    %1386 = vmatpush1.xpose.msra.mxu0 0.0
    %1387 = vmatprep.subr.mxu0 0.0
    %1388 = vmatpush1.xpose.msra.mxu0 0.0
    %1389 = vmatprep.subr.mxu0 0.0
    %1390 = vmatpush1.xpose.msra.mxu0 0.0
    %1391 = vmatprep.subr.mxu0 0.0
    %1392 = vmatpush1.xpose.msra.mxu0 0.0
    %1393 = vmatprep.subr.mxu0 0.0
    %1394 = vmatpush1.xpose.msra.mxu0 0.0
    %1395 = vmatprep.subr.mxu0 0.0
    %1396 = vmatpush1.xpose.msra.mxu0 0.0
    %1397 = vmatprep.subr.mxu0 0.0
    %1398 = vmatpush1.xpose.msra.mxu0 0.0
    %1399 = vmatprep.subr.mxu0 0.0
    %1400 = vmatpush1.xpose.msra.mxu0 0.0
    %1401 = vmatprep.mubr.f32.mxu0 0.0
    %1402 = vmatmul.mubr.f32.gmra.mrb[0].mxu0 %v1333
    %v1403 = vpop.f32.mrb[0].mxu0
    %v1404 = vadd.f32 0.0, %v1403
    %v1405 = vpop.f32.mrb[0].mxu0
    %1406 = vdwg.mxu0
    %1408 = vrot.lane.b32.xlu0 %v1324, 104
    %v1409 = vpop.permute.xlu0 %1408
    %1411 = vrot.lane.b32.xlu0 %v1326, 104
    %v1412 = vpop.permute.xlu0 %1411
    %v1413 = vsel %vm296, %v1409, 0
    %v1415 = vsel %vm296, %v1412, 0
    %1417 = vmatprep.subr.mxu0 0.0
    %1418 = vmatpush1.xpose.msra.mxu0 %v1415
    %1419 = vmatprep.subr.mxu0 0.0
    %1420 = vmatpush1.xpose.msra.mxu0 0.0
    %1421 = vmatprep.subr.mxu0 0.0
    %1422 = vmatpush1.xpose.msra.mxu0 0.0
    %1423 = vmatprep.subr.mxu0 0.0
    %1424 = vmatpush1.xpose.msra.mxu0 0.0
    %1425 = vmatprep.subr.mxu0 0.0
    %1426 = vmatpush1.xpose.msra.mxu0 0.0
    %1427 = vmatprep.subr.mxu0 0.0
    %1428 = vmatpush1.xpose.msra.mxu0 0.0
    %1429 = vmatprep.subr.mxu0 0.0
    %1430 = vmatpush1.xpose.msra.mxu0 0.0
    %1431 = vmatprep.subr.mxu0 0.0
    %1432 = vmatpush1.xpose.msra.mxu0 0.0
    %1433 = vmatprep.subr.mxu0 0.0
    %1434 = vmatpush1.xpose.msra.mxu0 0.0
    %1435 = vmatprep.subr.mxu0 0.0
    %1436 = vmatpush1.xpose.msra.mxu0 0.0
    %1437 = vmatprep.subr.mxu0 0.0
    %1438 = vmatpush1.xpose.msra.mxu0 0.0
    %1439 = vmatprep.subr.mxu0 0.0
    %1440 = vmatpush1.xpose.msra.mxu0 0.0
    %1441 = vmatprep.subr.mxu0 0.0
    %1442 = vmatpush1.xpose.msra.mxu0 0.0
    %1443 = vmatprep.subr.mxu0 0.0
    %1444 = vmatpush1.xpose.msra.mxu0 0.0
    %1445 = vmatprep.subr.mxu0 0.0
    %1446 = vmatpush1.xpose.msra.mxu0 0.0
    %1447 = vmatprep.subr.mxu0 0.0
    %1448 = vmatpush1.xpose.msra.mxu0 0.0
    %1449 = vmatprep.subr.mxu0 0.0
    %1450 = vmatpush1.xpose.msra.mxu0 0.0
    %1451 = vmatprep.subr.mxu0 0.0
    %1452 = vmatpush1.xpose.msra.mxu0 0.0
    %1453 = vmatprep.subr.mxu0 0.0
    %1454 = vmatpush1.xpose.msra.mxu0 0.0
    %1455 = vmatprep.subr.mxu0 0.0
    %1456 = vmatpush1.xpose.msra.mxu0 0.0
    %1457 = vmatprep.subr.mxu0 0.0
    %1458 = vmatpush1.xpose.msra.mxu0 0.0
    %1459 = vmatprep.subr.mxu0 0.0
    %1460 = vmatpush1.xpose.msra.mxu0 0.0
    %1461 = vmatprep.subr.mxu0 0.0
    %1462 = vmatpush1.xpose.msra.mxu0 0.0
    %1463 = vmatprep.subr.mxu0 0.0
    %1464 = vmatpush1.xpose.msra.mxu0 0.0
    %1465 = vmatprep.subr.mxu0 0.0
    %1466 = vmatpush1.xpose.msra.mxu0 0.0
    %1467 = vmatprep.subr.mxu0 0.0
    %1468 = vmatpush1.xpose.msra.mxu0 0.0
    %1469 = vmatprep.subr.mxu0 0.0
    %1470 = vmatpush1.xpose.msra.mxu0 0.0
    %1471 = vmatprep.subr.mxu0 0.0
    %1472 = vmatpush1.xpose.msra.mxu0 0.0
    %1473 = vmatprep.subr.mxu0 0.0
    %1474 = vmatpush1.xpose.msra.mxu0 0.0
    %1475 = vmatprep.subr.mxu0 0.0
    %1476 = vmatpush1.xpose.msra.mxu0 0.0
    %1477 = vmatprep.subr.mxu0 0.0
    %1478 = vmatpush1.xpose.msra.mxu0 0.0
    %1479 = vmatprep.subr.mxu0 0.0
    %1480 = vmatpush1.xpose.msra.mxu0 0.0
    %1481 = vmatprep.mubr.f32.mxu0 0.0
    %1482 = vmatmul.mubr.f32.gmra.mrb[0].mxu0 %v1413
    %v1483 = vpop.f32.mrb[0].mxu0
    %v1484 = vadd.f32 0.0, %v1483
    %v1485 = vpop.f32.mrb[0].mxu0
    %1486 = vdwg.mxu0
    %v1487 = vsel %vm296, %v1404, -inf
    %1488 = vmax.xlane.f32.xlu0 %v1487
    %v1489 = vpop.xlane.xlu0 %1488
    %v1490 = vsel %vm296, %v1484, -inf
    %1491 = vmax.xlane.f32.xlu0 %v1490
    %v1492 = vpop.xlane.xlu0 %1491
    %v1493 = vsub.f32 %v1404, %v1489
    %v1494 = vsub.f32 %v1484, %v1492
    %v1495 = vmul.f32 %v1493, 1.442695
    %v1496 = vpow.pop %v1495
    %v1497 = vmul.f32 %v1494, 1.442695
    %v1498 = vpow.pop %v1497
    %v1499 = vsel %vm296, %v1496, 0.0
    %1500 = vadd.xlane.f32.xlu0 %v1499
    %v1501 = vpop.xlane.xlu0 %1500
    %v1502 = vsel %vm296, %v1498, 0.0
    %1503 = vadd.xlane.f32.xlu0 %v1502
    %v1504 = vpop.xlane.xlu0 %1503
    %v1505 = vrcp.pop %v1501
    %v1506 = vrcp.pop %v1504
    %v1507 = vmul.f32 %v1496, %v1505
    %v1508 = vmul.f32 %v1498, %v1506
    %1509 = vrot.lane.b32.xlu0 %v1325, 72
    %v1510 = vpop.permute.xlu0 %1509
    %v1513 = vsel %vm296, %v1507, 0
    %1515 = vmatprep.subr.mxu0 0.0
    %1516 = vmatpush1.msra.mxu0 %v1510
    %1517 = vmatprep.subr.mxu0 0.0
    %1518 = vmatpush1.msra.mxu0 0.0
    %1519 = vmatprep.subr.mxu0 0.0
    %1520 = vmatpush1.msra.mxu0 0.0
    %1521 = vmatprep.subr.mxu0 0.0
    %1522 = vmatpush1.msra.mxu0 0.0
    %1523 = vmatprep.subr.mxu0 0.0
    %1524 = vmatpush1.msra.mxu0 0.0
    %1525 = vmatprep.subr.mxu0 0.0
    %1526 = vmatpush1.msra.mxu0 0.0
    %1527 = vmatprep.subr.mxu0 0.0
    %1528 = vmatpush1.msra.mxu0 0.0
    %1529 = vmatprep.subr.mxu0 0.0
    %1530 = vmatpush1.msra.mxu0 0.0
    %1531 = vmatprep.subr.mxu0 0.0
    %1532 = vmatpush1.msra.mxu0 0.0
    %1533 = vmatprep.subr.mxu0 0.0
    %1534 = vmatpush1.msra.mxu0 0.0
    %1535 = vmatprep.subr.mxu0 0.0
    %1536 = vmatpush1.msra.mxu0 0.0
    %1537 = vmatprep.subr.mxu0 0.0
    %1538 = vmatpush1.msra.mxu0 0.0
    %1539 = vmatprep.subr.mxu0 0.0
    %1540 = vmatpush1.msra.mxu0 0.0
    %1541 = vmatprep.subr.mxu0 0.0
    %1542 = vmatpush1.msra.mxu0 0.0
    %1543 = vmatprep.subr.mxu0 0.0
    %1544 = vmatpush1.msra.mxu0 0.0
    %1545 = vmatprep.subr.mxu0 0.0
    %1546 = vmatpush1.msra.mxu0 0.0
    %1547 = vmatprep.subr.mxu0 0.0
    %1548 = vmatpush1.msra.mxu0 0.0
    %1549 = vmatprep.subr.mxu0 0.0
    %1550 = vmatpush1.msra.mxu0 0.0
    %1551 = vmatprep.subr.mxu0 0.0
    %1552 = vmatpush1.msra.mxu0 0.0
    %1553 = vmatprep.subr.mxu0 0.0
    %1554 = vmatpush1.msra.mxu0 0.0
    %1555 = vmatprep.subr.mxu0 0.0
    %1556 = vmatpush1.msra.mxu0 0.0
    %1557 = vmatprep.subr.mxu0 0.0
    %1558 = vmatpush1.msra.mxu0 0.0
    %1559 = vmatprep.subr.mxu0 0.0
    %1560 = vmatpush1.msra.mxu0 0.0
    %1561 = vmatprep.subr.mxu0 0.0
    %1562 = vmatpush1.msra.mxu0 0.0
    %1563 = vmatprep.subr.mxu0 0.0
    %1564 = vmatpush1.msra.mxu0 0.0
    %1565 = vmatprep.subr.mxu0 0.0
    %1566 = vmatpush1.msra.mxu0 0.0
    %1567 = vmatprep.subr.mxu0 0.0
    %1568 = vmatpush1.msra.mxu0 0.0
    %1569 = vmatprep.subr.mxu0 0.0
    %1570 = vmatpush1.msra.mxu0 0.0
    %1571 = vmatprep.subr.mxu0 0.0
    %1572 = vmatpush1.msra.mxu0 0.0
    %1573 = vmatprep.subr.mxu0 0.0
    %1574 = vmatpush1.msra.mxu0 0.0
    %1575 = vmatprep.subr.mxu0 0.0
    %1576 = vmatpush1.msra.mxu0 0.0
    %1577 = vmatprep.subr.mxu0 0.0
    %1578 = vmatpush1.msra.mxu0 0.0
    %1579 = vmatprep.mubr.f32.mxu0 0.0
    %1580 = vmatmul.mubr.f32.gmra.mrb[0].mxu0 %v1513
    %v1581 = vpop.f32.mrb[0].mxu0
    %v1582 = vadd.f32 0.0, %v1581
    %v1583 = vpop.f32.mrb[0].mxu0
    %1584 = vdwg.mxu0
    %1585 = vrot.lane.b32.xlu0 %v1326, 72
    %v1586 = vpop.permute.xlu0 %1585
    %v1589 = vsel %vm296, %v1508, 0
    %1591 = vmatprep.subr.mxu0 0.0
    %1592 = vmatpush1.msra.mxu0 %v1586
    %1593 = vmatprep.subr.mxu0 0.0
    %1594 = vmatpush1.msra.mxu0 0.0
    %1595 = vmatprep.subr.mxu0 0.0
    %1596 = vmatpush1.msra.mxu0 0.0
    %1597 = vmatprep.subr.mxu0 0.0
    %1598 = vmatpush1.msra.mxu0 0.0
    %1599 = vmatprep.subr.mxu0 0.0
    %1600 = vmatpush1.msra.mxu0 0.0
    %1601 = vmatprep.subr.mxu0 0.0
    %1602 = vmatpush1.msra.mxu0 0.0
    %1603 = vmatprep.subr.mxu0 0.0
    %1604 = vmatpush1.msra.mxu0 0.0
    %1605 = vmatprep.subr.mxu0 0.0
    %1606 = vmatpush1.msra.mxu0 0.0
    %1607 = vmatprep.subr.mxu0 0.0
    %1608 = vmatpush1.msra.mxu0 0.0
    %1609 = vmatprep.subr.mxu0 0.0
    %1610 = vmatpush1.msra.mxu0 0.0
    %1611 = vmatprep.subr.mxu0 0.0
    %1612 = vmatpush1.msra.mxu0 0.0
    %1613 = vmatprep.subr.mxu0 0.0
    %1614 = vmatpush1.msra.mxu0 0.0
    %1615 = vmatprep.subr.mxu0 0.0
    %1616 = vmatpush1.msra.mxu0 0.0
    %1617 = vmatprep.subr.mxu0 0.0
    %1618 = vmatpush1.msra.mxu0 0.0
    %1619 = vmatprep.subr.mxu0 0.0
    %1620 = vmatpush1.msra.mxu0 0.0
    %1621 = vmatprep.subr.mxu0 0.0
    %1622 = vmatpush1.msra.mxu0 0.0
    %1623 = vmatprep.subr.mxu0 0.0
    %1624 = vmatpush1.msra.mxu0 0.0
    %1625 = vmatprep.subr.mxu0 0.0
    %1626 = vmatpush1.msra.mxu0 0.0
    %1627 = vmatprep.subr.mxu0 0.0
    %1628 = vmatpush1.msra.mxu0 0.0
    %1629 = vmatprep.subr.mxu0 0.0
    %1630 = vmatpush1.msra.mxu0 0.0
    %1631 = vmatprep.subr.mxu0 0.0
    %1632 = vmatpush1.msra.mxu0 0.0
    %1633 = vmatprep.subr.mxu0 0.0
    %1634 = vmatpush1.msra.mxu0 0.0
    %1635 = vmatprep.subr.mxu0 0.0
    %1636 = vmatpush1.msra.mxu0 0.0
    %1637 = vmatprep.subr.mxu0 0.0
    %1638 = vmatpush1.msra.mxu0 0.0
    %1639 = vmatprep.subr.mxu0 0.0
    %1640 = vmatpush1.msra.mxu0 0.0
    %1641 = vmatprep.subr.mxu0 0.0
    %1642 = vmatpush1.msra.mxu0 0.0
    %1643 = vmatprep.subr.mxu0 0.0
    %1644 = vmatpush1.msra.mxu0 0.0
    %1645 = vmatprep.subr.mxu0 0.0
    %1646 = vmatpush1.msra.mxu0 0.0
    %1647 = vmatprep.subr.mxu0 0.0
    %1648 = vmatpush1.msra.mxu0 0.0
    %1649 = vmatprep.subr.mxu0 0.0
    %1650 = vmatpush1.msra.mxu0 0.0
    %1651 = vmatprep.subr.mxu0 0.0
    %1652 = vmatpush1.msra.mxu0 0.0
    %1653 = vmatprep.subr.mxu0 0.0
    %1654 = vmatpush1.msra.mxu0 0.0
    %1655 = vmatprep.mubr.f32.mxu0 0.0
    %1656 = vmatmul.mubr.f32.gmra.mrb[0].mxu0 %v1589
    %v1657 = vpop.f32.mrb[0].mxu0
    %v1658 = vadd.f32 0.0, %v1657
    %v1659 = vpop.f32.mrb[0].mxu0
    %1660 = vdwg.mxu0
    %1663 = vrot.lane.b32.xlu0 %v1582, 24
    %v1664 = vpop.permute.xlu0 %1663
    %1665 = vrot.lane.b32.xlu0 %v1658, 24
    %v1666 = vpop.permute.xlu0 %1665
    %vm1669 = vcmask 261312
    %1670 = vst.msk [vmem:[#allocation4] sm:$0xff] %vm1669, %v1664
    %1671 = vst.msk [vmem:[#allocation4 + $0x8] sm:$0xff] %vm1669, %v1666
    %v1672 = vld [vmem:[#allocation4] sm:$0xff]
    %v1673 = vld [vmem:[#allocation4 + $0x8] sm:$0xff]
    %v1674 = vld [vmem:[#allocation13] sm:$0xff]
    %v1675 = vld [vmem:[#allocation13 + $0x8] sm:$0xff]
    %v1676 = vld [vmem:[#allocation13 + $0x10] sm:$0xff]
    %v1677 = vld [vmem:[#allocation13 + $0x18] sm:$0xff]
    %v1678 = vld [vmem:[%s7] sm:$0x1]
    %v1680 = vlaneseq
    %v1681 = vshrl.u32 %v1680, 7
    %v1682 = vsub.s32 0, %v1681
    %v1683 = vrot.slane %v1678, %v1682
    %v1686 = vsel %vm111, %v1672, 0
    %v1689 = vsel %vm111, %v1673, 0
    %1691 = vmatprep.subr.mxu0 0.0
    %1692 = vmatpush1.msra.mxu0 %v1674
    %1693 = vmatprep.subr.mxu0 0.0
    %1694 = vmatpush1.msra.mxu0 %v1675
    %1695 = vmatprep.subr.mxu0 0.0
    %1696 = vmatpush1.msra.mxu0 %v1676
    %1697 = vmatprep.subr.mxu0 0.0
    %1698 = vmatpush1.msra.mxu0 %v1677
    %1699 = vmatprep.subr.mxu0 0.0
    %1700 = vmatpush1.msra.mxu0 0.0
    %1701 = vmatprep.subr.mxu0 0.0
    %1702 = vmatpush1.msra.mxu0 0.0
    %1703 = vmatprep.subr.mxu0 0.0
    %1704 = vmatpush1.msra.mxu0 0.0
    %1705 = vmatprep.subr.mxu0 0.0
    %1706 = vmatpush1.msra.mxu0 0.0
    %1707 = vmatprep.subr.mxu0 0.0
    %1708 = vmatpush1.msra.mxu0 0.0
    %1709 = vmatprep.subr.mxu0 0.0
    %1710 = vmatpush1.msra.mxu0 0.0
    %1711 = vmatprep.subr.mxu0 0.0
    %1712 = vmatpush1.msra.mxu0 0.0
    %1713 = vmatprep.subr.mxu0 0.0
    %1714 = vmatpush1.msra.mxu0 0.0
    %1715 = vmatprep.subr.mxu0 0.0
    %1716 = vmatpush1.msra.mxu0 0.0
    %1717 = vmatprep.subr.mxu0 0.0
    %1718 = vmatpush1.msra.mxu0 0.0
    %1719 = vmatprep.subr.mxu0 0.0
    %1720 = vmatpush1.msra.mxu0 0.0
    %1721 = vmatprep.subr.mxu0 0.0
    %1722 = vmatpush1.msra.mxu0 0.0
    %1723 = vmatprep.subr.mxu0 0.0
    %1724 = vmatpush1.msra.mxu0 0.0
    %1725 = vmatprep.subr.mxu0 0.0
    %1726 = vmatpush1.msra.mxu0 0.0
    %1727 = vmatprep.subr.mxu0 0.0
    %1728 = vmatpush1.msra.mxu0 0.0
    %1729 = vmatprep.subr.mxu0 0.0
    %1730 = vmatpush1.msra.mxu0 0.0
    %1731 = vmatprep.subr.mxu0 0.0
    %1732 = vmatpush1.msra.mxu0 0.0
    %1733 = vmatprep.subr.mxu0 0.0
    %1734 = vmatpush1.msra.mxu0 0.0
    %1735 = vmatprep.subr.mxu0 0.0
    %1736 = vmatpush1.msra.mxu0 0.0
    %1737 = vmatprep.subr.mxu0 0.0
    %1738 = vmatpush1.msra.mxu0 0.0
    %1739 = vmatprep.subr.mxu0 0.0
    %1740 = vmatpush1.msra.mxu0 0.0
    %1741 = vmatprep.subr.mxu0 0.0
    %1742 = vmatpush1.msra.mxu0 0.0
    %1743 = vmatprep.subr.mxu0 0.0
    %1744 = vmatpush1.msra.mxu0 0.0
    %1745 = vmatprep.subr.mxu0 0.0
    %1746 = vmatpush1.msra.mxu0 0.0
    %1747 = vmatprep.subr.mxu0 0.0
    %1748 = vmatpush1.msra.mxu0 0.0
    %1749 = vmatprep.subr.mxu0 0.0
    %1750 = vmatpush1.msra.mxu0 0.0
    %1751 = vmatprep.subr.mxu0 0.0
    %1752 = vmatpush1.msra.mxu0 0.0
    %1753 = vmatprep.subr.mxu0 0.0
    %1754 = vmatpush1.msra.mxu0 0.0
    %1755 = vmatprep.mubr.f32.mxu0 0.0
    %1756 = vmatmul.mubr.f32.gmra.mrb[0].mxu0 %v1686
    %v1757 = vpop.f32.mrb[0].mxu0
    %v1758 = vadd.f32 %v1683, %v1757
    %v1759 = vpop.f32.mrb[0].mxu0
    %1760 = vmatprep.mubr.f32.mxu0 0.0
    %1761 = vmatmul.mubr.f32.gmra.mrb[0].mxu0 %v1689
    %v1762 = vpop.f32.mrb[0].mxu0
    %v1763 = vadd.f32 %v1683, %v1762
    %v1764 = vpop.f32.mrb[0].mxu0
    %1765 = vdwg.mxu0
    %1766 = vst.msk [vmem:[#allocation14] sm:$0xff] %vm111, %v1758
    %1767 = vst.msk [vmem:[#allocation14 + $0x8] sm:$0xff] %vm111, %v1763
    // Predicated region
    $region54: #{tpu_custom_call.1} parent=1 // pred_check
      _
    $region55: #{tpu_custom_call.1} parent=1 // pred_check_branch
      %1769 = sbr.rel (0) target = $region57
    $region56: #{tpu_custom_call.1} parent=1 // pred_region
      %s1771 = ssub.s32 256, 256
      %1772 = vsyncadd [#allocation7], %s1771
      %s1773 = sshll.u32 [#allocation14], 4
      %s1774 = int_to_ptr.vmem [resolvable:$true] %s1773
      %1779 = dma.vmem_to_hbm [thread:$0]  %s1774, 256, %s8, [#allocation7], 128, 128, 8
    $region57: #{tpu_custom_call.1} parent=1 // pred_fallthru
      _
    // Predicated region
    $region58: #{tpu_custom_call.1} parent=1 // pred_check
      _
    $region59: #{tpu_custom_call.1} parent=1 // pred_check_branch
      %1781 = sbr.rel (0) target = $region61
    $region60: #{tpu_custom_call.1} parent=1 // pred_region
      %1782 = dma.done [#allocation7], 256
    $region61: #{tpu_custom_call.1} parent=1 // pred_fallthru
      _
    %1783 = vsyncpa [#allocation6], 1
    %1784 = vsyncpa [#allocation9], 1
    %1785 = vsyncpa [#allocation12], 1
    %1786 = vsyncpa [#allocation7], 1

// kernel: tpu_custom_call.1
$region0: #{tpu_custom_call.1}
  #allocation0 [shape = 'u32[]', space=smem, size = 0x4, offset = 0x4, fixed_abs, tag = 'smem constant byte address 0x4 - core index']
  #allocation1 [shape = 'u32[144,128]{1,0:T(1,128)}', space=vmem, size = 0x12000, scoped, tag = 'internal scratch']
  #allocation2 [shape = 'f32[2,8,32]{2,1,0:T(8,128)}', space=vmem, size = 0x2000, scoped, tag = 'scratch operand']
  #allocation3 [shape = 'f32[2,8,64]{2,1,0:T(8,128)}', space=vmem, size = 0x2000, scoped, tag = 'scratch operand']
  #allocation4 [shape = 'f32[2,8,32]{2,1,0:T(8,128)}', space=vmem, size = 0x2000, scoped, tag = 'scratch operand']
  %s0 = inlined_call_operand.hbm [shape: f32[2,8,32], index: 0, kind: input, shape index: {}]
  %s1 = inlined_call_operand.hbm [shape: f32[2,8,32], index: 1, kind: input, shape index: {}]
  %s2 = inlined_call_operand.hbm [shape: f32[32,32], index: 2, kind: input, shape index: {}]
  %s3 = inlined_call_operand.vmem [shape: f32[1,32], index: 3, kind: input, shape index: {}]
  %s4 = inlined_call_operand.hbm [shape: f32[32,64], index: 4, kind: input, shape index: {}]
  %s5 = inlined_call_operand.vmem [shape: f32[1,64], index: 5, kind: input, shape index: {}]
  %s6 = inlined_call_operand.hbm [shape: f32[32,32], index: 6, kind: input, shape index: {}]
  %s7 = inlined_call_operand.vmem [shape: f32[1,32], index: 7, kind: input, shape index: {}]
  %s8 = inlined_call_operand.hbm [shape: f32[2,8,32], index: 8, kind: output, shape index: {}]
  %s9 = sld [smem:[#allocation0]]
  $region62: #{tpu_custom_call.1} parent=0
    _
  %s11 = ssub.s32 1, %s9
  %s12 = scalar_select 0, %s11, %s9
  $region1: #{tpu_custom_call.1} parent=0
    #allocation5 [shape = 'u8[8192]{0}', space=vmem, size = 0x2000, scoped, tag = 'input window, operand 0, single buffered']
    #allocation6 [shape = 's32[1]{0}', space=sflag, size = 0x4, scoped, tag = 'scoped memory for tpu_custom_call.1']
    #allocation7 [shape = 's32[1]{0}', space=sflag, size = 0x4, scoped, tag = 'scoped memory for tpu_custom_call.1']
    #allocation8 [shape = 'u8[8192]{0}', space=vmem, size = 0x2000, scoped, tag = 'input window, operand 1, single buffered']
    #allocation9 [shape = 's32[1]{0}', space=sflag, size = 0x4, scoped, tag = 'scoped memory for tpu_custom_call.1']
    #allocation10 [shape = 'u8[16384]{0}', space=vmem, size = 0x4000, scoped, tag = 'input window, operand 2, single buffered']
    #allocation11 [shape = 'u8[16384]{0}', space=vmem, size = 0x4000, scoped, tag = 'input window, operand 4, single buffered']
    #allocation12 [shape = 's32[1]{0}', space=sflag, size = 0x4, scoped, tag = 'scoped memory for tpu_custom_call.1']
    #allocation13 [shape = 'u8[16384]{0}', space=vmem, size = 0x4000, scoped, tag = 'input window, operand 6, single buffered']
    #allocation14 [shape = 'u8[8192]{0}', space=vmem, size = 0x2000, scoped, tag = 'output window, operand 0, single buffered']
    %13 = vsyncpa [#allocation6], 0
    %14 = vsyncpa [#allocation9], 0
    %15 = vsyncpa [#allocation12], 0
    %16 = vsyncpa [#allocation7], 0
    // Predicated region
    $region2: #{tpu_custom_call.1} parent=1 // pred_check
      _
    $region3: #{tpu_custom_call.1} parent=1 // pred_check_branch
      %18 = sbr.rel (0) target = $region5
    $region4: #{tpu_custom_call.1} parent=1 // pred_region
      %s20 = ssub.s32 256, 256
      %21 = vsyncadd [#allocation6], %s20
      %s22 = sshll.u32 [#allocation5], 4
      %s23 = int_to_ptr.vmem [resolvable:$true] %s22
      %28 = dma.hbm_to_vmem [thread:$0]  %s0, 256, %s23, [#allocation6], 128, 128, 8
    $region5: #{tpu_custom_call.1} parent=1 // pred_fallthru
      _
    // Predicated region
    $region6: #{tpu_custom_call.1} parent=1 // pred_check
      _
    $region7: #{tpu_custom_call.1} parent=1 // pred_check_branch
      %30 = sbr.rel (0) target = $region9
    $region8: #{tpu_custom_call.1} parent=1 // pred_region
      %s32 = ssub.s32 256, 256
      %33 = vsyncadd [#allocation9], %s32
      %s34 = sshll.u32 [#allocation8], 4
      %s35 = int_to_ptr.vmem [resolvable:$true] %s34
      %40 = dma.hbm_to_vmem [thread:$0]  %s1, 256, %s35, [#allocation9], 128, 128, 8
    $region9: #{tpu_custom_call.1} parent=1 // pred_fallthru
      _
    // Predicated region
    $region10: #{tpu_custom_call.1} parent=1 // pred_check
      _
    $region11: #{tpu_custom_call.1} parent=1 // pred_check_branch
      %42 = sbr.rel (0) target = $region13
    $region12: #{tpu_custom_call.1} parent=1 // pred_region
      %s44 = ssub.s32 512, 512
      %45 = vsyncadd [#allocation9], %s44
      %s46 = sshll.u32 [#allocation10], 4
      %s47 = int_to_ptr.vmem [resolvable:$true] %s46
      %52 = dma.hbm_to_vmem [thread:$0]  %s2, 512, %s47, [#allocation9], 128, 128, 8
    $region13: #{tpu_custom_call.1} parent=1 // pred_fallthru
      _
    // Predicated region
    $region14: #{tpu_custom_call.1} parent=1 // pred_check
      _
    $region15: #{tpu_custom_call.1} parent=1 // pred_check_branch
      %54 = sbr.rel (0) target = $region17
    $region16: #{tpu_custom_call.1} parent=1 // pred_region
      _
    $region17: #{tpu_custom_call.1} parent=1 // pred_fallthru
      _
    // Predicated region
    $region18: #{tpu_custom_call.1} parent=1 // pred_check
      _
    $region19: #{tpu_custom_call.1} parent=1 // pred_check_branch
      %56 = sbr.rel (0) target = $region21
    $region20: #{tpu_custom_call.1} parent=1 // pred_region
      %s58 = ssub.s32 512, 512
      %59 = vsyncadd [#allocation12], %s58
      %s60 = sshll.u32 [#allocation11], 4
      %s61 = int_to_ptr.vmem [resolvable:$true] %s60
      %66 = dma.hbm_to_vmem [thread:$0]  %s4, 512, %s61, [#allocation12], 128, 128, 8
    $region21: #{tpu_custom_call.1} parent=1 // pred_fallthru
      _
    // Predicated region
    $region22: #{tpu_custom_call.1} parent=1 // pred_check
      _
    $region23: #{tpu_custom_call.1} parent=1 // pred_check_branch
      %68 = sbr.rel (0) target = $region25
    $region24: #{tpu_custom_call.1} parent=1 // pred_region
      _
    $region25: #{tpu_custom_call.1} parent=1 // pred_fallthru
      _
    // Predicated region
    $region26: #{tpu_custom_call.1} parent=1 // pred_check
      _
    $region27: #{tpu_custom_call.1} parent=1 // pred_check_branch
      %70 = sbr.rel (0) target = $region29
    $region28: #{tpu_custom_call.1} parent=1 // pred_region
      %s72 = ssub.s32 512, 512
      %73 = vsyncadd [#allocation12], %s72
      %s74 = sshll.u32 [#allocation13], 4
      %s75 = int_to_ptr.vmem [resolvable:$true] %s74
      %80 = dma.hbm_to_vmem [thread:$0]  %s6, 512, %s75, [#allocation12], 128, 128, 8
    $region29: #{tpu_custom_call.1} parent=1 // pred_fallthru
      _
    // Predicated region
    $region30: #{tpu_custom_call.1} parent=1 // pred_check
      _
    $region31: #{tpu_custom_call.1} parent=1 // pred_check_branch
      %82 = sbr.rel (0) target = $region33
    $region32: #{tpu_custom_call.1} parent=1 // pred_region
      _
    $region33: #{tpu_custom_call.1} parent=1 // pred_fallthru
      _
    // Predicated region
    $region34: #{tpu_custom_call.1} parent=1 // pred_check
      _
    $region35: #{tpu_custom_call.1} parent=1 // pred_check_branch
      %84 = sbr.rel (0) target = $region37
    $region36: #{tpu_custom_call.1} parent=1 // pred_region
      %85 = dma.done [#allocation6], 256
    $region37: #{tpu_custom_call.1} parent=1 // pred_fallthru
      _
    // Predicated region
    $region38: #{tpu_custom_call.1} parent=1 // pred_check
      _
    $region39: #{tpu_custom_call.1} parent=1 // pred_check_branch
      %87 = sbr.rel (0) target = $region41
    $region40: #{tpu_custom_call.1} parent=1 // pred_region
      %88 = dma.done [#allocation9], 256
    $region41: #{tpu_custom_call.1} parent=1 // pred_fallthru
      _
    // Predicated region
    $region42: #{tpu_custom_call.1} parent=1 // pred_check
      _
    $region43: #{tpu_custom_call.1} parent=1 // pred_check_branch
      %90 = sbr.rel (0) target = $region45
    $region44: #{tpu_custom_call.1} parent=1 // pred_region
      %91 = dma.done [#allocation9], 512
    $region45: #{tpu_custom_call.1} parent=1 // pred_fallthru
      _
    // Predicated region
    $region46: #{tpu_custom_call.1} parent=1 // pred_check
      _
    $region47: #{tpu_custom_call.1} parent=1 // pred_check_branch
      %93 = sbr.rel (0) target = $region49
    $region48: #{tpu_custom_call.1} parent=1 // pred_region
      %94 = dma.done [#allocation12], 512
    $region49: #{tpu_custom_call.1} parent=1 // pred_fallthru
      _
    // Predicated region
    $region50: #{tpu_custom_call.1} parent=1 // pred_check
      _
    $region51: #{tpu_custom_call.1} parent=1 // pred_check_branch
      %96 = sbr.rel (0) target = $region53
    $region52: #{tpu_custom_call.1} parent=1 // pred_region
      %97 = dma.done [#allocation12], 512
    $region53: #{tpu_custom_call.1} parent=1 // pred_fallthru
      _
    %v98 = vld [vmem:[#allocation5] sm:$0xff]
    %v99 = vld [vmem:[#allocation5 + $0x8] sm:$0xff]
    %v100 = vld [vmem:[#allocation10] sm:$0xff]
    %v101 = vld [vmem:[#allocation10 + $0x8] sm:$0xff]
    %v102 = vld [vmem:[#allocation10 + $0x10] sm:$0xff]
    %v103 = vld [vmem:[#allocation10 + $0x18] sm:$0xff]
    %v104 = vld [vmem:[%s3] sm:$0x1]
    %v106 = vlaneseq
    %v107 = vshrl.u32 %v106, 7
    %v108 = vsub.s32 0, %v107
    %v109 = vrot.slane %v104, %v108
    %vm111 = vcmask 261120
    %v113 = vsel %vm111, %v98, 0
    %v116 = vsel %vm111, %v99, 0
    %118 = vmatprep.subr.mxu0 0.0
    %119 = vmatpush1.msra.mxu0 %v100
    %120 = vmatprep.subr.mxu0 0.0
    %121 = vmatpush1.msra.mxu0 %v101
    %122 = vmatprep.subr.mxu0 0.0
    %123 = vmatpush1.msra.mxu0 %v102
    %124 = vmatprep.subr.mxu0 0.0
    %125 = vmatpush1.msra.mxu0 %v103
    %126 = vmatprep.subr.mxu0 0.0
    %127 = vmatpush1.msra.mxu0 0.0
    %128 = vmatprep.subr.mxu0 0.0
    %129 = vmatpush1.msra.mxu0 0.0
    %130 = vmatprep.subr.mxu0 0.0
    %131 = vmatpush1.msra.mxu0 0.0
    %132 = vmatprep.subr.mxu0 0.0
    %133 = vmatpush1.msra.mxu0 0.0
    %134 = vmatprep.subr.mxu0 0.0
    %135 = vmatpush1.msra.mxu0 0.0
    %136 = vmatprep.subr.mxu0 0.0
    %137 = vmatpush1.msra.mxu0 0.0
    %138 = vmatprep.subr.mxu0 0.0
    %139 = vmatpush1.msra.mxu0 0.0
    %140 = vmatprep.subr.mxu0 0.0
    %141 = vmatpush1.msra.mxu0 0.0
    %142 = vmatprep.subr.mxu0 0.0
    %143 = vmatpush1.msra.mxu0 0.0
    %144 = vmatprep.subr.mxu0 0.0
    %145 = vmatpush1.msra.mxu0 0.0
    %146 = vmatprep.subr.mxu0 0.0
    %147 = vmatpush1.msra.mxu0 0.0
    %148 = vmatprep.subr.mxu0 0.0
    %149 = vmatpush1.msra.mxu0 0.0
    %150 = vmatprep.subr.mxu0 0.0
    %151 = vmatpush1.msra.mxu0 0.0
    %152 = vmatprep.subr.mxu0 0.0
    %153 = vmatpush1.msra.mxu0 0.0
    %154 = vmatprep.subr.mxu0 0.0
    %155 = vmatpush1.msra.mxu0 0.0
    %156 = vmatprep.subr.mxu0 0.0
    %157 = vmatpush1.msra.mxu0 0.0
    %158 = vmatprep.subr.mxu0 0.0
    %159 = vmatpush1.msra.mxu0 0.0
    %160 = vmatprep.subr.mxu0 0.0
    %161 = vmatpush1.msra.mxu0 0.0
    %162 = vmatprep.subr.mxu0 0.0
    %163 = vmatpush1.msra.mxu0 0.0
    %164 = vmatprep.subr.mxu0 0.0
    %165 = vmatpush1.msra.mxu0 0.0
    %166 = vmatprep.subr.mxu0 0.0
    %167 = vmatpush1.msra.mxu0 0.0
    %168 = vmatprep.subr.mxu0 0.0
    %169 = vmatpush1.msra.mxu0 0.0
    %170 = vmatprep.subr.mxu0 0.0
    %171 = vmatpush1.msra.mxu0 0.0
    %172 = vmatprep.subr.mxu0 0.0
    %173 = vmatpush1.msra.mxu0 0.0
    %174 = vmatprep.subr.mxu0 0.0
    %175 = vmatpush1.msra.mxu0 0.0
    %176 = vmatprep.subr.mxu0 0.0
    %177 = vmatpush1.msra.mxu0 0.0
    %178 = vmatprep.subr.mxu0 0.0
    %179 = vmatpush1.msra.mxu0 0.0
    %180 = vmatprep.subr.mxu0 0.0
    %181 = vmatpush1.msra.mxu0 0.0
    %182 = vmatprep.mubr.f32.mxu0 0.0
    %183 = vmatmul.mubr.f32.gmra.mrb[0].mxu0 %v113
    %v184 = vpop.f32.mrb[0].mxu0
    %v185 = vadd.f32 %v109, %v184
    %v186 = vpop.f32.mrb[0].mxu0
    %187 = vmatprep.mubr.f32.mxu0 0.0
    %188 = vmatmul.mubr.f32.gmra.mrb[0].mxu0 %v116
    %v189 = vpop.f32.mrb[0].mxu0
    %v190 = vadd.f32 %v109, %v189
    %v191 = vpop.f32.mrb[0].mxu0
    %192 = vdwg.mxu0
    %193 = vst.msk [vmem:[#allocation2] sm:$0xff] %vm111, %v185
    %194 = vst.msk [vmem:[#allocation2 + $0x8] sm:$0xff] %vm111, %v190
    %v195 = vld [vmem:[#allocation8] sm:$0xff]
    %v196 = vld [vmem:[#allocation8 + $0x8] sm:$0xff]
    %v197 = vld [vmem:[#allocation11] sm:$0xff]
    %v198 = vld [vmem:[#allocation11 + $0x8] sm:$0xff]
    %v199 = vld [vmem:[#allocation11 + $0x10] sm:$0xff]
    %v200 = vld [vmem:[#allocation11 + $0x18] sm:$0xff]
    %v201 = vld [vmem:[%s5] sm:$0x1]
    %v203 = vlaneseq
    %v204 = vshrl.u32 %v203, 7
    %v205 = vsub.s32 0, %v204
    %v206 = vrot.slane %v201, %v205
    %v209 = vsel %vm111, %v195, 0
    %v212 = vsel %vm111, %v196, 0
    %214 = vmatprep.subr.mxu0 0.0
    %215 = vmatpush1.msra.mxu0 %v197
    %216 = vmatprep.subr.mxu0 0.0
    %217 = vmatpush1.msra.mxu0 %v198
    %218 = vmatprep.subr.mxu0 0.0
    %219 = vmatpush1.msra.mxu0 %v199
    %220 = vmatprep.subr.mxu0 0.0
    %221 = vmatpush1.msra.mxu0 %v200
    %222 = vmatprep.subr.mxu0 0.0
    %223 = vmatpush1.msra.mxu0 0.0
    %224 = vmatprep.subr.mxu0 0.0
    %225 = vmatpush1.msra.mxu0 0.0
    %226 = vmatprep.subr.mxu0 0.0
    %227 = vmatpush1.msra.mxu0 0.0
    %228 = vmatprep.subr.mxu0 0.0
    %229 = vmatpush1.msra.mxu0 0.0
    %230 = vmatprep.subr.mxu0 0.0
    %231 = vmatpush1.msra.mxu0 0.0
    %232 = vmatprep.subr.mxu0 0.0
    %233 = vmatpush1.msra.mxu0 0.0
    %234 = vmatprep.subr.mxu0 0.0
    %235 = vmatpush1.msra.mxu0 0.0
    %236 = vmatprep.subr.mxu0 0.0
    %237 = vmatpush1.msra.mxu0 0.0
    %238 = vmatprep.subr.mxu0 0.0
    %239 = vmatpush1.msra.mxu0 0.0
    %240 = vmatprep.subr.mxu0 0.0
    %241 = vmatpush1.msra.mxu0 0.0
    %242 = vmatprep.subr.mxu0 0.0
    %243 = vmatpush1.msra.mxu0 0.0
    %244 = vmatprep.subr.mxu0 0.0
    %245 = vmatpush1.msra.mxu0 0.0
    %246 = vmatprep.subr.mxu0 0.0
    %247 = vmatpush1.msra.mxu0 0.0
    %248 = vmatprep.subr.mxu0 0.0
    %249 = vmatpush1.msra.mxu0 0.0
    %250 = vmatprep.subr.mxu0 0.0
    %251 = vmatpush1.msra.mxu0 0.0
    %252 = vmatprep.subr.mxu0 0.0
    %253 = vmatpush1.msra.mxu0 0.0
    %254 = vmatprep.subr.mxu0 0.0
    %255 = vmatpush1.msra.mxu0 0.0
    %256 = vmatprep.subr.mxu0 0.0
    %257 = vmatpush1.msra.mxu0 0.0
    %258 = vmatprep.subr.mxu0 0.0
    %259 = vmatpush1.msra.mxu0 0.0
    %260 = vmatprep.subr.mxu0 0.0
    %261 = vmatpush1.msra.mxu0 0.0
    %262 = vmatprep.subr.mxu0 0.0
    %263 = vmatpush1.msra.mxu0 0.0
    %264 = vmatprep.subr.mxu0 0.0
    %265 = vmatpush1.msra.mxu0 0.0
    %266 = vmatprep.subr.mxu0 0.0
    %267 = vmatpush1.msra.mxu0 0.0
    %268 = vmatprep.subr.mxu0 0.0
    %269 = vmatpush1.msra.mxu0 0.0
    %270 = vmatprep.subr.mxu0 0.0
    %271 = vmatpush1.msra.mxu0 0.0
    %272 = vmatprep.subr.mxu0 0.0
    %273 = vmatpush1.msra.mxu0 0.0
    %274 = vmatprep.subr.mxu0 0.0
    %275 = vmatpush1.msra.mxu0 0.0
    %276 = vmatprep.subr.mxu0 0.0
    %277 = vmatpush1.msra.mxu0 0.0
    %278 = vmatprep.mubr.f32.mxu0 0.0
    %279 = vmatmul.mubr.f32.gmra.mrb[0].mxu0 %v209
    %v280 = vpop.f32.mrb[0].mxu0
    %v281 = vadd.f32 %v206, %v280
    %v282 = vpop.f32.mrb[0].mxu0
    %283 = vmatprep.mubr.f32.mxu0 0.0
    %284 = vmatmul.mubr.f32.gmra.mrb[0].mxu0 %v212
    %v285 = vpop.f32.mrb[0].mxu0
    %v286 = vadd.f32 %v206, %v285
    %v287 = vpop.f32.mrb[0].mxu0
    %288 = vdwg.mxu0
    %vm289 = vcmask 523264
    %290 = vst.msk [vmem:[#allocation3] sm:$0xff] %vm289, %v281
    %291 = vst.msk [vmem:[#allocation3 + $0x8] sm:$0xff] %vm289, %v286
    %v292 = vld [vmem:[#allocation2] sm:$0xff]
    %v293 = vld [vmem:[#allocation2 + $0x8] sm:$0xff]
    %v294 = vld [vmem:[#allocation3] sm:$0xff]
    %v295 = vld [vmem:[#allocation3 + $0x8] sm:$0xff]
    %vm296 = vcmask 64512
    %v298 = vsel %vm296, %v292, 0
    %v301 = vsel %vm296, %v294, 0
    %303 = vmatprep.subr.mxu0 0.0
    %304 = vmatpush1.xpose.msra.mxu0 %v301
    %305 = vmatprep.subr.mxu0 0.0
    %306 = vmatpush1.xpose.msra.mxu0 0.0
    %307 = vmatprep.subr.mxu0 0.0
    %308 = vmatpush1.xpose.msra.mxu0 0.0
    %309 = vmatprep.subr.mxu0 0.0
    %310 = vmatpush1.xpose.msra.mxu0 0.0
    %311 = vmatprep.subr.mxu0 0.0
    %312 = vmatpush1.xpose.msra.mxu0 0.0
    %313 = vmatprep.subr.mxu0 0.0
    %314 = vmatpush1.xpose.msra.mxu0 0.0
    %315 = vmatprep.subr.mxu0 0.0
    %316 = vmatpush1.xpose.msra.mxu0 0.0
    %317 = vmatprep.subr.mxu0 0.0
    %318 = vmatpush1.xpose.msra.mxu0 0.0
    %319 = vmatprep.subr.mxu0 0.0
    %320 = vmatpush1.xpose.msra.mxu0 0.0
    %321 = vmatprep.subr.mxu0 0.0
    %322 = vmatpush1.xpose.msra.mxu0 0.0
    %323 = vmatprep.subr.mxu0 0.0
    %324 = vmatpush1.xpose.msra.mxu0 0.0
    %325 = vmatprep.subr.mxu0 0.0
    %326 = vmatpush1.xpose.msra.mxu0 0.0
    %327 = vmatprep.subr.mxu0 0.0
    %328 = vmatpush1.xpose.msra.mxu0 0.0
    %329 = vmatprep.subr.mxu0 0.0
    %330 = vmatpush1.xpose.msra.mxu0 0.0
    %331 = vmatprep.subr.mxu0 0.0
    %332 = vmatpush1.xpose.msra.mxu0 0.0
    %333 = vmatprep.subr.mxu0 0.0
    %334 = vmatpush1.xpose.msra.mxu0 0.0
    %335 = vmatprep.subr.mxu0 0.0
    %336 = vmatpush1.xpose.msra.mxu0 0.0
    %337 = vmatprep.subr.mxu0 0.0
    %338 = vmatpush1.xpose.msra.mxu0 0.0
    %339 = vmatprep.subr.mxu0 0.0
    %340 = vmatpush1.xpose.msra.mxu0 0.0
    %341 = vmatprep.subr.mxu0 0.0
    %342 = vmatpush1.xpose.msra.mxu0 0.0
    %343 = vmatprep.subr.mxu0 0.0
    %344 = vmatpush1.xpose.msra.mxu0 0.0
    %345 = vmatprep.subr.mxu0 0.0
    %346 = vmatpush1.xpose.msra.mxu0 0.0
    %347 = vmatprep.subr.mxu0 0.0
    %348 = vmatpush1.xpose.msra.mxu0 0.0
    %349 = vmatprep.subr.mxu0 0.0
    %350 = vmatpush1.xpose.msra.mxu0 0.0
    %351 = vmatprep.subr.mxu0 0.0
    %352 = vmatpush1.xpose.msra.mxu0 0.0
    %353 = vmatprep.subr.mxu0 0.0
    %354 = vmatpush1.xpose.msra.mxu0 0.0
    %355 = vmatprep.subr.mxu0 0.0
    %356 = vmatpush1.xpose.msra.mxu0 0.0
    %357 = vmatprep.subr.mxu0 0.0
    %358 = vmatpush1.xpose.msra.mxu0 0.0
    %359 = vmatprep.subr.mxu0 0.0
    %360 = vmatpush1.xpose.msra.mxu0 0.0
    %361 = vmatprep.subr.mxu0 0.0
    %362 = vmatpush1.xpose.msra.mxu0 0.0
    %363 = vmatprep.subr.mxu0 0.0
    %364 = vmatpush1.xpose.msra.mxu0 0.0
    %365 = vmatprep.subr.mxu0 0.0
    %366 = vmatpush1.xpose.msra.mxu0 0.0
    %367 = vmatprep.mubr.f32.mxu0 0.0
    %368 = vmatmul.mubr.f32.gmra.mrb[0].mxu0 %v298
    %v369 = vpop.f32.mrb[0].mxu0
    %v370 = vadd.f32 0.0, %v369
    %v371 = vpop.f32.mrb[0].mxu0
    %372 = vdwg.mxu0
    %v374 = vsel %vm296, %v293, 0
    %v377 = vsel %vm296, %v295, 0
    %379 = vmatprep.subr.mxu0 0.0
    %380 = vmatpush1.xpose.msra.mxu0 %v377
    %381 = vmatprep.subr.mxu0 0.0
    %382 = vmatpush1.xpose.msra.mxu0 0.0
    %383 = vmatprep.subr.mxu0 0.0
    %384 = vmatpush1.xpose.msra.mxu0 0.0
    %385 = vmatprep.subr.mxu0 0.0
    %386 = vmatpush1.xpose.msra.mxu0 0.0
    %387 = vmatprep.subr.mxu0 0.0
    %388 = vmatpush1.xpose.msra.mxu0 0.0
    %389 = vmatprep.subr.mxu0 0.0
    %390 = vmatpush1.xpose.msra.mxu0 0.0
    %391 = vmatprep.subr.mxu0 0.0
    %392 = vmatpush1.xpose.msra.mxu0 0.0
    %393 = vmatprep.subr.mxu0 0.0
    %394 = vmatpush1.xpose.msra.mxu0 0.0
    %395 = vmatprep.subr.mxu0 0.0
    %396 = vmatpush1.xpose.msra.mxu0 0.0
    %397 = vmatprep.subr.mxu0 0.0
    %398 = vmatpush1.xpose.msra.mxu0 0.0
    %399 = vmatprep.subr.mxu0 0.0
    %400 = vmatpush1.xpose.msra.mxu0 0.0
    %401 = vmatprep.subr.mxu0 0.0
    %402 = vmatpush1.xpose.msra.mxu0 0.0
    %403 = vmatprep.subr.mxu0 0.0
    %404 = vmatpush1.xpose.msra.mxu0 0.0
    %405 = vmatprep.subr.mxu0 0.0
    %406 = vmatpush1.xpose.msra.mxu0 0.0
    %407 = vmatprep.subr.mxu0 0.0
    %408 = vmatpush1.xpose.msra.mxu0 0.0
    %409 = vmatprep.subr.mxu0 0.0
    %410 = vmatpush1.xpose.msra.mxu0 0.0
    %411 = vmatprep.subr.mxu0 0.0
    %412 = vmatpush1.xpose.msra.mxu0 0.0
    %413 = vmatprep.subr.mxu0 0.0
    %414 = vmatpush1.xpose.msra.mxu0 0.0
    %415 = vmatprep.subr.mxu0 0.0
    %416 = vmatpush1.xpose.msra.mxu0 0.0
    %417 = vmatprep.subr.mxu0 0.0
    %418 = vmatpush1.xpose.msra.mxu0 0.0
    %419 = vmatprep.subr.mxu0 0.0
    %420 = vmatpush1.xpose.msra.mxu0 0.0
    %421 = vmatprep.subr.mxu0 0.0
    %422 = vmatpush1.xpose.msra.mxu0 0.0
    %423 = vmatprep.subr.mxu0 0.0
    %424 = vmatpush1.xpose.msra.mxu0 0.0
    %425 = vmatprep.subr.mxu0 0.0
    %426 = vmatpush1.xpose.msra.mxu0 0.0
    %427 = vmatprep.subr.mxu0 0.0
    %428 = vmatpush1.xpose.msra.mxu0 0.0
    %429 = vmatprep.subr.mxu0 0.0
    %430 = vmatpush1.xpose.msra.mxu0 0.0
    %431 = vmatprep.subr.mxu0 0.0
    %432 = vmatpush1.xpose.msra.mxu0 0.0
    %433 = vmatprep.subr.mxu0 0.0
    %434 = vmatpush1.xpose.msra.mxu0 0.0
    %435 = vmatprep.subr.mxu0 0.0
    %436 = vmatpush1.xpose.msra.mxu0 0.0
    %437 = vmatprep.subr.mxu0 0.0
    %438 = vmatpush1.xpose.msra.mxu0 0.0
    %439 = vmatprep.subr.mxu0 0.0
    %440 = vmatpush1.xpose.msra.mxu0 0.0
    %441 = vmatprep.subr.mxu0 0.0
    %442 = vmatpush1.xpose.msra.mxu0 0.0
    %443 = vmatprep.mubr.f32.mxu0 0.0
    %444 = vmatmul.mubr.f32.gmra.mrb[0].mxu0 %v374
    %v445 = vpop.f32.mrb[0].mxu0
    %v446 = vadd.f32 0.0, %v445
    %v447 = vpop.f32.mrb[0].mxu0
    %448 = vdwg.mxu0
    %v449 = vsel %vm296, %v370, -inf
    %450 = vmax.xlane.f32.xlu0 %v449
    %v451 = vpop.xlane.xlu0 %450
    %v452 = vsel %vm296, %v446, -inf
    %453 = vmax.xlane.f32.xlu0 %v452
    %v454 = vpop.xlane.xlu0 %453
    %v455 = vsub.f32 %v370, %v451
    %v456 = vsub.f32 %v446, %v454
    %v457 = vmul.f32 %v455, 1.442695
    %v458 = vpow.pop %v457
    %v459 = vmul.f32 %v456, 1.442695
    %v460 = vpow.pop %v459
    %v461 = vsel %vm296, %v458, 0.0
    %462 = vadd.xlane.f32.xlu0 %v461
    %v463 = vpop.xlane.xlu0 %462
    %v464 = vsel %vm296, %v460, 0.0
    %465 = vadd.xlane.f32.xlu0 %v464
    %v466 = vpop.xlane.xlu0 %465
    %v467 = vrcp.pop %v463
    %v468 = vrcp.pop %v466
    %v469 = vmul.f32 %v458, %v467
    %v470 = vmul.f32 %v460, %v468
    %471 = vrot.lane.b32.xlu0 %v294, 96
    %v472 = vpop.permute.xlu0 %471
    %v475 = vsel %vm296, %v469, 0
    %477 = vmatprep.subr.mxu0 0.0
    %478 = vmatpush1.msra.mxu0 %v472
    %479 = vmatprep.subr.mxu0 0.0
    %480 = vmatpush1.msra.mxu0 0.0
    %481 = vmatprep.subr.mxu0 0.0
    %482 = vmatpush1.msra.mxu0 0.0
    %483 = vmatprep.subr.mxu0 0.0
    %484 = vmatpush1.msra.mxu0 0.0
    %485 = vmatprep.subr.mxu0 0.0
    %486 = vmatpush1.msra.mxu0 0.0
    %487 = vmatprep.subr.mxu0 0.0
    %488 = vmatpush1.msra.mxu0 0.0
    %489 = vmatprep.subr.mxu0 0.0
    %490 = vmatpush1.msra.mxu0 0.0
    %491 = vmatprep.subr.mxu0 0.0
    %492 = vmatpush1.msra.mxu0 0.0
    %493 = vmatprep.subr.mxu0 0.0
    %494 = vmatpush1.msra.mxu0 0.0
    %495 = vmatprep.subr.mxu0 0.0
    %496 = vmatpush1.msra.mxu0 0.0
    %497 = vmatprep.subr.mxu0 0.0
    %498 = vmatpush1.msra.mxu0 0.0
    %499 = vmatprep.subr.mxu0 0.0
    %500 = vmatpush1.msra.mxu0 0.0
    %501 = vmatprep.subr.mxu0 0.0
    %502 = vmatpush1.msra.mxu0 0.0
    %503 = vmatprep.subr.mxu0 0.0
    %504 = vmatpush1.msra.mxu0 0.0
    %505 = vmatprep.subr.mxu0 0.0
    %506 = vmatpush1.msra.mxu0 0.0
    %507 = vmatprep.subr.mxu0 0.0
    %508 = vmatpush1.msra.mxu0 0.0
    %509 = vmatprep.subr.mxu0 0.0
    %510 = vmatpush1.msra.mxu0 0.0
    %511 = vmatprep.subr.mxu0 0.0
    %512 = vmatpush1.msra.mxu0 0.0
    %513 = vmatprep.subr.mxu0 0.0
    %514 = vmatpush1.msra.mxu0 0.0
    %515 = vmatprep.subr.mxu0 0.0
    %516 = vmatpush1.msra.mxu0 0.0
    %517 = vmatprep.subr.mxu0 0.0
    %518 = vmatpush1.msra.mxu0 0.0
    %519 = vmatprep.subr.mxu0 0.0
    %520 = vmatpush1.msra.mxu0 0.0
    %521 = vmatprep.subr.mxu0 0.0
    %522 = vmatpush1.msra.mxu0 0.0
    %523 = vmatprep.subr.mxu0 0.0
    %524 = vmatpush1.msra.mxu0 0.0
    %525 = vmatprep.subr.mxu0 0.0
    %526 = vmatpush1.msra.mxu0 0.0
    %527 = vmatprep.subr.mxu0 0.0
    %528 = vmatpush1.msra.mxu0 0.0
    %529 = vmatprep.subr.mxu0 0.0
    %530 = vmatpush1.msra.mxu0 0.0
    %531 = vmatprep.subr.mxu0 0.0
    %532 = vmatpush1.msra.mxu0 0.0
    %533 = vmatprep.subr.mxu0 0.0
    %534 = vmatpush1.msra.mxu0 0.0
    %535 = vmatprep.subr.mxu0 0.0
    %536 = vmatpush1.msra.mxu0 0.0
    %537 = vmatprep.subr.mxu0 0.0
    %538 = vmatpush1.msra.mxu0 0.0
    %539 = vmatprep.subr.mxu0 0.0
    %540 = vmatpush1.msra.mxu0 0.0
    %541 = vmatprep.mubr.f32.mxu0 0.0
    %542 = vmatmul.mubr.f32.gmra.mrb[0].mxu0 %v475
    %v543 = vpop.f32.mrb[0].mxu0
    %v544 = vadd.f32 0.0, %v543
    %v545 = vpop.f32.mrb[0].mxu0
    %546 = vdwg.mxu0
    %547 = vrot.lane.b32.xlu0 %v295, 96
    %v548 = vpop.permute.xlu0 %547
    %v551 = vsel %vm296, %v470, 0
    %553 = vmatprep.subr.mxu0 0.0
    %554 = vmatpush1.msra.mxu0 %v548
    %555 = vmatprep.subr.mxu0 0.0
    %556 = vmatpush1.msra.mxu0 0.0
    %557 = vmatprep.subr.mxu0 0.0
    %558 = vmatpush1.msra.mxu0 0.0
    %559 = vmatprep.subr.mxu0 0.0
    %560 = vmatpush1.msra.mxu0 0.0
    %561 = vmatprep.subr.mxu0 0.0
    %562 = vmatpush1.msra.mxu0 0.0
    %563 = vmatprep.subr.mxu0 0.0
    %564 = vmatpush1.msra.mxu0 0.0
    %565 = vmatprep.subr.mxu0 0.0
    %566 = vmatpush1.msra.mxu0 0.0
    %567 = vmatprep.subr.mxu0 0.0
    %568 = vmatpush1.msra.mxu0 0.0
    %569 = vmatprep.subr.mxu0 0.0
    %570 = vmatpush1.msra.mxu0 0.0
    %571 = vmatprep.subr.mxu0 0.0
    %572 = vmatpush1.msra.mxu0 0.0
    %573 = vmatprep.subr.mxu0 0.0
    %574 = vmatpush1.msra.mxu0 0.0
    %575 = vmatprep.subr.mxu0 0.0
    %576 = vmatpush1.msra.mxu0 0.0
    %577 = vmatprep.subr.mxu0 0.0
    %578 = vmatpush1.msra.mxu0 0.0
    %579 = vmatprep.subr.mxu0 0.0
    %580 = vmatpush1.msra.mxu0 0.0
    %581 = vmatprep.subr.mxu0 0.0
    %582 = vmatpush1.msra.mxu0 0.0
    %583 = vmatprep.subr.mxu0 0.0
    %584 = vmatpush1.msra.mxu0 0.0
    %585 = vmatprep.subr.mxu0 0.0
    %586 = vmatpush1.msra.mxu0 0.0
    %587 = vmatprep.subr.mxu0 0.0
    %588 = vmatpush1.msra.mxu0 0.0
    %589 = vmatprep.subr.mxu0 0.0
    %590 = vmatpush1.msra.mxu0 0.0
    %591 = vmatprep.subr.mxu0 0.0
    %592 = vmatpush1.msra.mxu0 0.0
    %593 = vmatprep.subr.mxu0 0.0
    %594 = vmatpush1.msra.mxu0 0.0
    %595 = vmatprep.subr.mxu0 0.0
    %596 = vmatpush1.msra.mxu0 0.0
    %597 = vmatprep.subr.mxu0 0.0
    %598 = vmatpush1.msra.mxu0 0.0
    %599 = vmatprep.subr.mxu0 0.0
    %600 = vmatpush1.msra.mxu0 0.0
    %601 = vmatprep.subr.mxu0 0.0
    %602 = vmatpush1.msra.mxu0 0.0
    %603 = vmatprep.subr.mxu0 0.0
    %604 = vmatpush1.msra.mxu0 0.0
    %605 = vmatprep.subr.mxu0 0.0
    %606 = vmatpush1.msra.mxu0 0.0
    %607 = vmatprep.subr.mxu0 0.0
    %608 = vmatpush1.msra.mxu0 0.0
    %609 = vmatprep.subr.mxu0 0.0
    %610 = vmatpush1.msra.mxu0 0.0
    %611 = vmatprep.subr.mxu0 0.0
    %612 = vmatpush1.msra.mxu0 0.0
    %613 = vmatprep.subr.mxu0 0.0
    %614 = vmatpush1.msra.mxu0 0.0
    %615 = vmatprep.subr.mxu0 0.0
    %616 = vmatpush1.msra.mxu0 0.0
    %617 = vmatprep.mubr.f32.mxu0 0.0
    %618 = vmatmul.mubr.f32.gmra.mrb[0].mxu0 %v551
    %v619 = vpop.f32.mrb[0].mxu0
    %v620 = vadd.f32 0.0, %v619
    %v621 = vpop.f32.mrb[0].mxu0
    %622 = vdwg.mxu0
    %623 = vst.msk [vmem:[#allocation4] sm:$0xff] %vm296, %v544
    %624 = vst.msk [vmem:[#allocation4 + $0x8] sm:$0xff] %vm296, %v620
    %v625 = vld [vmem:[#allocation2] sm:$0xff]
    %v626 = vld [vmem:[#allocation2 + $0x8] sm:$0xff]
    %v627 = vld [vmem:[#allocation3] sm:$0xff]
    %v628 = vld [vmem:[#allocation3 + $0x8] sm:$0xff]
    %630 = vrot.lane.b32.xlu0 %v625, 120
    %v631 = vpop.permute.xlu0 %630
    %633 = vrot.lane.b32.xlu0 %v627, 120
    %v634 = vpop.permute.xlu0 %633
    %v635 = vsel %vm296, %v631, 0
    %v637 = vsel %vm296, %v634, 0
    %639 = vmatprep.subr.mxu0 0.0
    %640 = vmatpush1.xpose.msra.mxu0 %v637
    %641 = vmatprep.subr.mxu0 0.0
    %642 = vmatpush1.xpose.msra.mxu0 0.0
    %643 = vmatprep.subr.mxu0 0.0
    %644 = vmatpush1.xpose.msra.mxu0 0.0
    %645 = vmatprep.subr.mxu0 0.0
    %646 = vmatpush1.xpose.msra.mxu0 0.0
    %647 = vmatprep.subr.mxu0 0.0
    %648 = vmatpush1.xpose.msra.mxu0 0.0
    %649 = vmatprep.subr.mxu0 0.0
    %650 = vmatpush1.xpose.msra.mxu0 0.0
    %651 = vmatprep.subr.mxu0 0.0
    %652 = vmatpush1.xpose.msra.mxu0 0.0
    %653 = vmatprep.subr.mxu0 0.0
    %654 = vmatpush1.xpose.msra.mxu0 0.0
    %655 = vmatprep.subr.mxu0 0.0
    %656 = vmatpush1.xpose.msra.mxu0 0.0
    %657 = vmatprep.subr.mxu0 0.0
    %658 = vmatpush1.xpose.msra.mxu0 0.0
    %659 = vmatprep.subr.mxu0 0.0
    %660 = vmatpush1.xpose.msra.mxu0 0.0
    %661 = vmatprep.subr.mxu0 0.0
    %662 = vmatpush1.xpose.msra.mxu0 0.0
    %663 = vmatprep.subr.mxu0 0.0
    %664 = vmatpush1.xpose.msra.mxu0 0.0
    %665 = vmatprep.subr.mxu0 0.0
    %666 = vmatpush1.xpose.msra.mxu0 0.0
    %667 = vmatprep.subr.mxu0 0.0
    %668 = vmatpush1.xpose.msra.mxu0 0.0
    %669 = vmatprep.subr.mxu0 0.0
    %670 = vmatpush1.xpose.msra.mxu0 0.0
    %671 = vmatprep.subr.mxu0 0.0
    %672 = vmatpush1.xpose.msra.mxu0 0.0
    %673 = vmatprep.subr.mxu0 0.0
    %674 = vmatpush1.xpose.msra.mxu0 0.0
    %675 = vmatprep.subr.mxu0 0.0
    %676 = vmatpush1.xpose.msra.mxu0 0.0
    %677 = vmatprep.subr.mxu0 0.0
    %678 = vmatpush1.xpose.msra.mxu0 0.0
    %679 = vmatprep.subr.mxu0 0.0
    %680 = vmatpush1.xpose.msra.mxu0 0.0
    %681 = vmatprep.subr.mxu0 0.0
    %682 = vmatpush1.xpose.msra.mxu0 0.0
    %683 = vmatprep.subr.mxu0 0.0
    %684 = vmatpush1.xpose.msra.mxu0 0.0
    %685 = vmatprep.subr.mxu0 0.0
    %686 = vmatpush1.xpose.msra.mxu0 0.0
    %687 = vmatprep.subr.mxu0 0.0
    %688 = vmatpush1.xpose.msra.mxu0 0.0
    %689 = vmatprep.subr.mxu0 0.0
    %690 = vmatpush1.xpose.msra.mxu0 0.0
    %691 = vmatprep.subr.mxu0 0.0
    %692 = vmatpush1.xpose.msra.mxu0 0.0
    %693 = vmatprep.subr.mxu0 0.0
    %694 = vmatpush1.xpose.msra.mxu0 0.0
    %695 = vmatprep.subr.mxu0 0.0
    %696 = vmatpush1.xpose.msra.mxu0 0.0
    %697 = vmatprep.subr.mxu0 0.0
    %698 = vmatpush1.xpose.msra.mxu0 0.0
    %699 = vmatprep.subr.mxu0 0.0
    %700 = vmatpush1.xpose.msra.mxu0 0.0
    %701 = vmatprep.subr.mxu0 0.0
    %702 = vmatpush1.xpose.msra.mxu0 0.0
    %703 = vmatprep.mubr.f32.mxu0 0.0
    %704 = vmatmul.mubr.f32.gmra.mrb[0].mxu0 %v635
    %v705 = vpop.f32.mrb[0].mxu0
    %v706 = vadd.f32 0.0, %v705
    %v707 = vpop.f32.mrb[0].mxu0
    %708 = vdwg.mxu0
    %710 = vrot.lane.b32.xlu0 %v626, 120
    %v711 = vpop.permute.xlu0 %710
    %713 = vrot.lane.b32.xlu0 %v628, 120
    %v714 = vpop.permute.xlu0 %713
    %v715 = vsel %vm296, %v711, 0
    %v717 = vsel %vm296, %v714, 0
    %719 = vmatprep.subr.mxu0 0.0
    %720 = vmatpush1.xpose.msra.mxu0 %v717
    %721 = vmatprep.subr.mxu0 0.0
    %722 = vmatpush1.xpose.msra.mxu0 0.0
    %723 = vmatprep.subr.mxu0 0.0
    %724 = vmatpush1.xpose.msra.mxu0 0.0
    %725 = vmatprep.subr.mxu0 0.0
    %726 = vmatpush1.xpose.msra.mxu0 0.0
    %727 = vmatprep.subr.mxu0 0.0
    %728 = vmatpush1.xpose.msra.mxu0 0.0
    %729 = vmatprep.subr.mxu0 0.0
    %730 = vmatpush1.xpose.msra.mxu0 0.0
    %731 = vmatprep.subr.mxu0 0.0
    %732 = vmatpush1.xpose.msra.mxu0 0.0
    %733 = vmatprep.subr.mxu0 0.0
    %734 = vmatpush1.xpose.msra.mxu0 0.0
    %735 = vmatprep.subr.mxu0 0.0
    %736 = vmatpush1.xpose.msra.mxu0 0.0
    %737 = vmatprep.subr.mxu0 0.0
    %738 = vmatpush1.xpose.msra.mxu0 0.0
    %739 = vmatprep.subr.mxu0 0.0
    %740 = vmatpush1.xpose.msra.mxu0 0.0
    %741 = vmatprep.subr.mxu0 0.0
    %742 = vmatpush1.xpose.msra.mxu0 0.0
    %743 = vmatprep.subr.mxu0 0.0
    %744 = vmatpush1.xpose.msra.mxu0 0.0
    %745 = vmatprep.subr.mxu0 0.0
    %746 = vmatpush1.xpose.msra.mxu0 0.0
    %747 = vmatprep.subr.mxu0 0.0
    %748 = vmatpush1.xpose.msra.mxu0 0.0
    %749 = vmatprep.subr.mxu0 0.0
    %750 = vmatpush1.xpose.msra.mxu0 0.0
    %751 = vmatprep.subr.mxu0 0.0
    %752 = vmatpush1.xpose.msra.mxu0 0.0
    %753 = vmatprep.subr.mxu0 0.0
    %754 = vmatpush1.xpose.msra.mxu0 0.0
    %755 = vmatprep.subr.mxu0 0.0
    %756 = vmatpush1.xpose.msra.mxu0 0.0
    %757 = vmatprep.subr.mxu0 0.0
    %758 = vmatpush1.xpose.msra.mxu0 0.0
    %759 = vmatprep.subr.mxu0 0.0
    %760 = vmatpush1.xpose.msra.mxu0 0.0
    %761 = vmatprep.subr.mxu0 0.0
    %762 = vmatpush1.xpose.msra.mxu0 0.0
    %763 = vmatprep.subr.mxu0 0.0
    %764 = vmatpush1.xpose.msra.mxu0 0.0
    %765 = vmatprep.subr.mxu0 0.0
    %766 = vmatpush1.xpose.msra.mxu0 0.0
    %767 = vmatprep.subr.mxu0 0.0
    %768 = vmatpush1.xpose.msra.mxu0 0.0
    %769 = vmatprep.subr.mxu0 0.0
    %770 = vmatpush1.xpose.msra.mxu0 0.0
    %771 = vmatprep.subr.mxu0 0.0
    %772 = vmatpush1.xpose.msra.mxu0 0.0
    %773 = vmatprep.subr.mxu0 0.0
    %774 = vmatpush1.xpose.msra.mxu0 0.0
    %775 = vmatprep.subr.mxu0 0.0
    %776 = vmatpush1.xpose.msra.mxu0 0.0
    %777 = vmatprep.subr.mxu0 0.0
    %778 = vmatpush1.xpose.msra.mxu0 0.0
    %779 = vmatprep.subr.mxu0 0.0
    %780 = vmatpush1.xpose.msra.mxu0 0.0
    %781 = vmatprep.subr.mxu0 0.0
    %782 = vmatpush1.xpose.msra.mxu0 0.0
    %783 = vmatprep.mubr.f32.mxu0 0.0
    %784 = vmatmul.mubr.f32.gmra.mrb[0].mxu0 %v715
    %v785 = vpop.f32.mrb[0].mxu0
    %v786 = vadd.f32 0.0, %v785
    %v787 = vpop.f32.mrb[0].mxu0
    %788 = vdwg.mxu0
    %v789 = vsel %vm296, %v706, -inf
    %790 = vmax.xlane.f32.xlu0 %v789
    %v791 = vpop.xlane.xlu0 %790
    %v792 = vsel %vm296, %v786, -inf
    %793 = vmax.xlane.f32.xlu0 %v792
    %v794 = vpop.xlane.xlu0 %793
    %v795 = vsub.f32 %v706, %v791
    %v796 = vsub.f32 %v786, %v794
    %v797 = vmul.f32 %v795, 1.442695
    %v798 = vpow.pop %v797
    %v799 = vmul.f32 %v796, 1.442695
    %v800 = vpow.pop %v799
    %v801 = vsel %vm296, %v798, 0.0
    %802 = vadd.xlane.f32.xlu0 %v801
    %v803 = vpop.xlane.xlu0 %802
    %v804 = vsel %vm296, %v800, 0.0
    %805 = vadd.xlane.f32.xlu0 %v804
    %v806 = vpop.xlane.xlu0 %805
    %v807 = vrcp.pop %v803
    %v808 = vrcp.pop %v806
    %v809 = vmul.f32 %v798, %v807
    %v810 = vmul.f32 %v800, %v808
    %811 = vrot.lane.b32.xlu0 %v627, 88
    %v812 = vpop.permute.xlu0 %811
    %v815 = vsel %vm296, %v809, 0
    %817 = vmatprep.subr.mxu0 0.0
    %818 = vmatpush1.msra.mxu0 %v812
    %819 = vmatprep.subr.mxu0 0.0
    %820 = vmatpush1.msra.mxu0 0.0
    %821 = vmatprep.subr.mxu0 0.0
    %822 = vmatpush1.msra.mxu0 0.0
    %823 = vmatprep.subr.mxu0 0.0
    %824 = vmatpush1.msra.mxu0 0.0
    %825 = vmatprep.subr.mxu0 0.0
    %826 = vmatpush1.msra.mxu0 0.0
    %827 = vmatprep.subr.mxu0 0.0
    %828 = vmatpush1.msra.mxu0 0.0
    %829 = vmatprep.subr.mxu0 0.0
    %830 = vmatpush1.msra.mxu0 0.0
    %831 = vmatprep.subr.mxu0 0.0
    %832 = vmatpush1.msra.mxu0 0.0
    %833 = vmatprep.subr.mxu0 0.0
    %834 = vmatpush1.msra.mxu0 0.0
    %835 = vmatprep.subr.mxu0 0.0
    %836 = vmatpush1.msra.mxu0 0.0
    %837 = vmatprep.subr.mxu0 0.0
    %838 = vmatpush1.msra.mxu0 0.0
    %839 = vmatprep.subr.mxu0 0.0
    %840 = vmatpush1.msra.mxu0 0.0
    %841 = vmatprep.subr.mxu0 0.0
    %842 = vmatpush1.msra.mxu0 0.0
    %843 = vmatprep.subr.mxu0 0.0
    %844 = vmatpush1.msra.mxu0 0.0
    %845 = vmatprep.subr.mxu0 0.0
    %846 = vmatpush1.msra.mxu0 0.0
    %847 = vmatprep.subr.mxu0 0.0
    %848 = vmatpush1.msra.mxu0 0.0
    %849 = vmatprep.subr.mxu0 0.0
    %850 = vmatpush1.msra.mxu0 0.0
    %851 = vmatprep.subr.mxu0 0.0
    %852 = vmatpush1.msra.mxu0 0.0
    %853 = vmatprep.subr.mxu0 0.0
    %854 = vmatpush1.msra.mxu0 0.0
    %855 = vmatprep.subr.mxu0 0.0
    %856 = vmatpush1.msra.mxu0 0.0
    %857 = vmatprep.subr.mxu0 0.0
    %858 = vmatpush1.msra.mxu0 0.0
    %859 = vmatprep.subr.mxu0 0.0
    %860 = vmatpush1.msra.mxu0 0.0
    %861 = vmatprep.subr.mxu0 0.0
    %862 = vmatpush1.msra.mxu0 0.0
    %863 = vmatprep.subr.mxu0 0.0
    %864 = vmatpush1.msra.mxu0 0.0
    %865 = vmatprep.subr.mxu0 0.0
    %866 = vmatpush1.msra.mxu0 0.0
    %867 = vmatprep.subr.mxu0 0.0
    %868 = vmatpush1.msra.mxu0 0.0
    %869 = vmatprep.subr.mxu0 0.0
    %870 = vmatpush1.msra.mxu0 0.0
    %871 = vmatprep.subr.mxu0 0.0
    %872 = vmatpush1.msra.mxu0 0.0
    %873 = vmatprep.subr.mxu0 0.0
    %874 = vmatpush1.msra.mxu0 0.0
    %875 = vmatprep.subr.mxu0 0.0
    %876 = vmatpush1.msra.mxu0 0.0
    %877 = vmatprep.subr.mxu0 0.0
    %878 = vmatpush1.msra.mxu0 0.0
    %879 = vmatprep.subr.mxu0 0.0
    %880 = vmatpush1.msra.mxu0 0.0
    %881 = vmatprep.mubr.f32.mxu0 0.0
    %882 = vmatmul.mubr.f32.gmra.mrb[0].mxu0 %v815
    %v883 = vpop.f32.mrb[0].mxu0
    %v884 = vadd.f32 0.0, %v883
    %v885 = vpop.f32.mrb[0].mxu0
    %886 = vdwg.mxu0
    %887 = vrot.lane.b32.xlu0 %v628, 88
    %v888 = vpop.permute.xlu0 %887
    %v891 = vsel %vm296, %v810, 0
    %893 = vmatprep.subr.mxu0 0.0
    %894 = vmatpush1.msra.mxu0 %v888
    %895 = vmatprep.subr.mxu0 0.0
    %896 = vmatpush1.msra.mxu0 0.0
    %897 = vmatprep.subr.mxu0 0.0
    %898 = vmatpush1.msra.mxu0 0.0
    %899 = vmatprep.subr.mxu0 0.0
    %900 = vmatpush1.msra.mxu0 0.0
    %901 = vmatprep.subr.mxu0 0.0
    %902 = vmatpush1.msra.mxu0 0.0
    %903 = vmatprep.subr.mxu0 0.0
    %904 = vmatpush1.msra.mxu0 0.0
    %905 = vmatprep.subr.mxu0 0.0
    %906 = vmatpush1.msra.mxu0 0.0
    %907 = vmatprep.subr.mxu0 0.0
    %908 = vmatpush1.msra.mxu0 0.0
    %909 = vmatprep.subr.mxu0 0.0
    %910 = vmatpush1.msra.mxu0 0.0
    %911 = vmatprep.subr.mxu0 0.0
    %912 = vmatpush1.msra.mxu0 0.0
    %913 = vmatprep.subr.mxu0 0.0
    %914 = vmatpush1.msra.mxu0 0.0
    %915 = vmatprep.subr.mxu0 0.0
    %916 = vmatpush1.msra.mxu0 0.0
    %917 = vmatprep.subr.mxu0 0.0
    %918 = vmatpush1.msra.mxu0 0.0
    %919 = vmatprep.subr.mxu0 0.0
    %920 = vmatpush1.msra.mxu0 0.0
    %921 = vmatprep.subr.mxu0 0.0
    %922 = vmatpush1.msra.mxu0 0.0
    %923 = vmatprep.subr.mxu0 0.0
    %924 = vmatpush1.msra.mxu0 0.0
    %925 = vmatprep.subr.mxu0 0.0
    %926 = vmatpush1.msra.mxu0 0.0
    %927 = vmatprep.subr.mxu0 0.0
    %928 = vmatpush1.msra.mxu0 0.0
    %929 = vmatprep.subr.mxu0 0.0
    %930 = vmatpush1.msra.mxu0 0.0
    %931 = vmatprep.subr.mxu0 0.0
    %932 = vmatpush1.msra.mxu0 0.0
    %933 = vmatprep.subr.mxu0 0.0
    %934 = vmatpush1.msra.mxu0 0.0
    %935 = vmatprep.subr.mxu0 0.0
    %936 = vmatpush1.msra.mxu0 0.0
    %937 = vmatprep.subr.mxu0 0.0
    %938 = vmatpush1.msra.mxu0 0.0
    %939 = vmatprep.subr.mxu0 0.0
    %940 = vmatpush1.msra.mxu0 0.0
    %941 = vmatprep.subr.mxu0 0.0
    %942 = vmatpush1.msra.mxu0 0.0
    %943 = vmatprep.subr.mxu0 0.0
    %944 = vmatpush1.msra.mxu0 0.0
    %945 = vmatprep.subr.mxu0 0.0
    %946 = vmatpush1.msra.mxu0 0.0
    %947 = vmatprep.subr.mxu0 0.0
    %948 = vmatpush1.msra.mxu0 0.0
    %949 = vmatprep.subr.mxu0 0.0
    %950 = vmatpush1.msra.mxu0 0.0
    %951 = vmatprep.subr.mxu0 0.0
    %952 = vmatpush1.msra.mxu0 0.0
    %953 = vmatprep.subr.mxu0 0.0
    %954 = vmatpush1.msra.mxu0 0.0
    %955 = vmatprep.subr.mxu0 0.0
    %956 = vmatpush1.msra.mxu0 0.0
    %957 = vmatprep.mubr.f32.mxu0 0.0
    %958 = vmatmul.mubr.f32.gmra.mrb[0].mxu0 %v891
    %v959 = vpop.f32.mrb[0].mxu0
    %v960 = vadd.f32 0.0, %v959
    %v961 = vpop.f32.mrb[0].mxu0
    %962 = vdwg.mxu0
    %965 = vrot.lane.b32.xlu0 %v884, 8
    %v966 = vpop.permute.xlu0 %965
    %967 = vrot.lane.b32.xlu0 %v960, 8
    %v968 = vpop.permute.xlu0 %967
    %vm971 = vcmask 130112
    %972 = vst.msk [vmem:[#allocation4] sm:$0xff] %vm971, %v966
    %973 = vst.msk [vmem:[#allocation4 + $0x8] sm:$0xff] %vm971, %v968
    %v974 = vld [vmem:[#allocation2] sm:$0xff]
    %v975 = vld [vmem:[#allocation2 + $0x8] sm:$0xff]
    %v976 = vld [vmem:[#allocation3] sm:$0xff]
    %v977 = vld [vmem:[#allocation3 + $0x8] sm:$0xff]
    %979 = vrot.lane.b32.xlu0 %v974, 112
    %v980 = vpop.permute.xlu0 %979
    %982 = vrot.lane.b32.xlu0 %v976, 112
    %v983 = vpop.permute.xlu0 %982
    %v984 = vsel %vm296, %v980, 0
    %v986 = vsel %vm296, %v983, 0
    %988 = vmatprep.subr.mxu0 0.0
    %989 = vmatpush1.xpose.msra.mxu0 %v986
    %990 = vmatprep.subr.mxu0 0.0
    %991 = vmatpush1.xpose.msra.mxu0 0.0
    %992 = vmatprep.subr.mxu0 0.0
    %993 = vmatpush1.xpose.msra.mxu0 0.0
    %994 = vmatprep.subr.mxu0 0.0
    %995 = vmatpush1.xpose.msra.mxu0 0.0
    %996 = vmatprep.subr.mxu0 0.0
    %997 = vmatpush1.xpose.msra.mxu0 0.0
    %998 = vmatprep.subr.mxu0 0.0
    %999 = vmatpush1.xpose.msra.mxu0 0.0
    %1000 = vmatprep.subr.mxu0 0.0
    %1001 = vmatpush1.xpose.msra.mxu0 0.0
    %1002 = vmatprep.subr.mxu0 0.0
    %1003 = vmatpush1.xpose.msra.mxu0 0.0
    %1004 = vmatprep.subr.mxu0 0.0
    %1005 = vmatpush1.xpose.msra.mxu0 0.0
    %1006 = vmatprep.subr.mxu0 0.0
    %1007 = vmatpush1.xpose.msra.mxu0 0.0
    %1008 = vmatprep.subr.mxu0 0.0
    %1009 = vmatpush1.xpose.msra.mxu0 0.0
    %1010 = vmatprep.subr.mxu0 0.0
    %1011 = vmatpush1.xpose.msra.mxu0 0.0
    %1012 = vmatprep.subr.mxu0 0.0
    %1013 = vmatpush1.xpose.msra.mxu0 0.0
    %1014 = vmatprep.subr.mxu0 0.0
    %1015 = vmatpush1.xpose.msra.mxu0 0.0
    %1016 = vmatprep.subr.mxu0 0.0
    %1017 = vmatpush1.xpose.msra.mxu0 0.0
    %1018 = vmatprep.subr.mxu0 0.0
    %1019 = vmatpush1.xpose.msra.mxu0 0.0
    %1020 = vmatprep.subr.mxu0 0.0
    %1021 = vmatpush1.xpose.msra.mxu0 0.0
    %1022 = vmatprep.subr.mxu0 0.0
    %1023 = vmatpush1.xpose.msra.mxu0 0.0
    %1024 = vmatprep.subr.mxu0 0.0
    %1025 = vmatpush1.xpose.msra.mxu0 0.0
    %1026 = vmatprep.subr.mxu0 0.0
    %1027 = vmatpush1.xpose.msra.mxu0 0.0
    %1028 = vmatprep.subr.mxu0 0.0
    %1029 = vmatpush1.xpose.msra.mxu0 0.0
    %1030 = vmatprep.subr.mxu0 0.0
    %1031 = vmatpush1.xpose.msra.mxu0 0.0
    %1032 = vmatprep.subr.mxu0 0.0
    %1033 = vmatpush1.xpose.msra.mxu0 0.0
    %1034 = vmatprep.subr.mxu0 0.0
    %1035 = vmatpush1.xpose.msra.mxu0 0.0
    %1036 = vmatprep.subr.mxu0 0.0
    %1037 = vmatpush1.xpose.msra.mxu0 0.0
    %1038 = vmatprep.subr.mxu0 0.0
    %1039 = vmatpush1.xpose.msra.mxu0 0.0
    %1040 = vmatprep.subr.mxu0 0.0
    %1041 = vmatpush1.xpose.msra.mxu0 0.0
    %1042 = vmatprep.subr.mxu0 0.0
    %1043 = vmatpush1.xpose.msra.mxu0 0.0
    %1044 = vmatprep.subr.mxu0 0.0
    %1045 = vmatpush1.xpose.msra.mxu0 0.0
    %1046 = vmatprep.subr.mxu0 0.0
    %1047 = vmatpush1.xpose.msra.mxu0 0.0
    %1048 = vmatprep.subr.mxu0 0.0
    %1049 = vmatpush1.xpose.msra.mxu0 0.0
    %1050 = vmatprep.subr.mxu0 0.0
    %1051 = vmatpush1.xpose.msra.mxu0 0.0
    %1052 = vmatprep.mubr.f32.mxu0 0.0
    %1053 = vmatmul.mubr.f32.gmra.mrb[0].mxu0 %v984
    %v1054 = vpop.f32.mrb[0].mxu0
    %v1055 = vadd.f32 0.0, %v1054
    %v1056 = vpop.f32.mrb[0].mxu0
    %1057 = vdwg.mxu0
    %1059 = vrot.lane.b32.xlu0 %v975, 112
    %v1060 = vpop.permute.xlu0 %1059
    %1062 = vrot.lane.b32.xlu0 %v977, 112
    %v1063 = vpop.permute.xlu0 %1062
    %v1064 = vsel %vm296, %v1060, 0
    %v1066 = vsel %vm296, %v1063, 0
    %1068 = vmatprep.subr.mxu0 0.0
    %1069 = vmatpush1.xpose.msra.mxu0 %v1066
    %1070 = vmatprep.subr.mxu0 0.0
    %1071 = vmatpush1.xpose.msra.mxu0 0.0
    %1072 = vmatprep.subr.mxu0 0.0
    %1073 = vmatpush1.xpose.msra.mxu0 0.0
    %1074 = vmatprep.subr.mxu0 0.0
    %1075 = vmatpush1.xpose.msra.mxu0 0.0
    %1076 = vmatprep.subr.mxu0 0.0
    %1077 = vmatpush1.xpose.msra.mxu0 0.0
    %1078 = vmatprep.subr.mxu0 0.0
    %1079 = vmatpush1.xpose.msra.mxu0 0.0
    %1080 = vmatprep.subr.mxu0 0.0
    %1081 = vmatpush1.xpose.msra.mxu0 0.0
    %1082 = vmatprep.subr.mxu0 0.0
    %1083 = vmatpush1.xpose.msra.mxu0 0.0
    %1084 = vmatprep.subr.mxu0 0.0
    %1085 = vmatpush1.xpose.msra.mxu0 0.0
    %1086 = vmatprep.subr.mxu0 0.0
    %1087 = vmatpush1.xpose.msra.mxu0 0.0
    %1088 = vmatprep.subr.mxu0 0.0
    %1089 = vmatpush1.xpose.msra.mxu0 0.0
    %1090 = vmatprep.subr.mxu0 0.0
    %1091 = vmatpush1.xpose.msra.mxu0 0.0
    %1092 = vmatprep.subr.mxu0 0.0
    %1093 = vmatpush1.xpose.msra.mxu0 0.0
    %1094 = vmatprep.subr.mxu0 0.0
    %1095 = vmatpush1.xpose.msra.mxu0 0.0
    %1096 = vmatprep.subr.mxu0 0.0
    %1097 = vmatpush1.xpose.msra.mxu0 0.0
    %1098 = vmatprep.subr.mxu0 0.0
    %1099 = vmatpush1.xpose.msra.mxu0 0.0
    %1100 = vmatprep.subr.mxu0 0.0
    %1101 = vmatpush1.xpose.msra.mxu0 0.0
    %1102 = vmatprep.subr.mxu0 0.0
    %1103 = vmatpush1.xpose.msra.mxu0 0.0
    %1104 = vmatprep.subr.mxu0 0.0
    %1105 = vmatpush1.xpose.msra.mxu0 0.0
    %1106 = vmatprep.subr.mxu0 0.0
    %1107 = vmatpush1.xpose.msra.mxu0 0.0
    %1108 = vmatprep.subr.mxu0 0.0
    %1109 = vmatpush1.xpose.msra.mxu0 0.0
    %1110 = vmatprep.subr.mxu0 0.0
    %1111 = vmatpush1.xpose.msra.mxu0 0.0
    %1112 = vmatprep.subr.mxu0 0.0
    %1113 = vmatpush1.xpose.msra.mxu0 0.0
    %1114 = vmatprep.subr.mxu0 0.0
    %1115 = vmatpush1.xpose.msra.mxu0 0.0
    %1116 = vmatprep.subr.mxu0 0.0
    %1117 = vmatpush1.xpose.msra.mxu0 0.0
    %1118 = vmatprep.subr.mxu0 0.0
    %1119 = vmatpush1.xpose.msra.mxu0 0.0
    %1120 = vmatprep.subr.mxu0 0.0
    %1121 = vmatpush1.xpose.msra.mxu0 0.0
    %1122 = vmatprep.subr.mxu0 0.0
    %1123 = vmatpush1.xpose.msra.mxu0 0.0
    %1124 = vmatprep.subr.mxu0 0.0
    %1125 = vmatpush1.xpose.msra.mxu0 0.0
    %1126 = vmatprep.subr.mxu0 0.0
    %1127 = vmatpush1.xpose.msra.mxu0 0.0
    %1128 = vmatprep.subr.mxu0 0.0
    %1129 = vmatpush1.xpose.msra.mxu0 0.0
    %1130 = vmatprep.subr.mxu0 0.0
    %1131 = vmatpush1.xpose.msra.mxu0 0.0
    %1132 = vmatprep.mubr.f32.mxu0 0.0
    %1133 = vmatmul.mubr.f32.gmra.mrb[0].mxu0 %v1064
    %v1134 = vpop.f32.mrb[0].mxu0
    %v1135 = vadd.f32 0.0, %v1134
    %v1136 = vpop.f32.mrb[0].mxu0
    %1137 = vdwg.mxu0
    %v1138 = vsel %vm296, %v1055, -inf
    %1139 = vmax.xlane.f32.xlu0 %v1138
    %v1140 = vpop.xlane.xlu0 %1139
    %v1141 = vsel %vm296, %v1135, -inf
    %1142 = vmax.xlane.f32.xlu0 %v1141
    %v1143 = vpop.xlane.xlu0 %1142
    %v1144 = vsub.f32 %v1055, %v1140
    %v1145 = vsub.f32 %v1135, %v1143
    %v1146 = vmul.f32 %v1144, 1.442695
    %v1147 = vpow.pop %v1146
    %v1148 = vmul.f32 %v1145, 1.442695
    %v1149 = vpow.pop %v1148
    %v1150 = vsel %vm296, %v1147, 0.0
    %1151 = vadd.xlane.f32.xlu0 %v1150
    %v1152 = vpop.xlane.xlu0 %1151
    %v1153 = vsel %vm296, %v1149, 0.0
    %1154 = vadd.xlane.f32.xlu0 %v1153
    %v1155 = vpop.xlane.xlu0 %1154
    %v1156 = vrcp.pop %v1152
    %v1157 = vrcp.pop %v1155
    %v1158 = vmul.f32 %v1147, %v1156
    %v1159 = vmul.f32 %v1149, %v1157
    %1160 = vrot.lane.b32.xlu0 %v976, 80
    %v1161 = vpop.permute.xlu0 %1160
    %v1164 = vsel %vm296, %v1158, 0
    %1166 = vmatprep.subr.mxu0 0.0
    %1167 = vmatpush1.msra.mxu0 %v1161
    %1168 = vmatprep.subr.mxu0 0.0
    %1169 = vmatpush1.msra.mxu0 0.0
    %1170 = vmatprep.subr.mxu0 0.0
    %1171 = vmatpush1.msra.mxu0 0.0
    %1172 = vmatprep.subr.mxu0 0.0
    %1173 = vmatpush1.msra.mxu0 0.0
    %1174 = vmatprep.subr.mxu0 0.0
    %1175 = vmatpush1.msra.mxu0 0.0
    %1176 = vmatprep.subr.mxu0 0.0
    %1177 = vmatpush1.msra.mxu0 0.0
    %1178 = vmatprep.subr.mxu0 0.0
    %1179 = vmatpush1.msra.mxu0 0.0
    %1180 = vmatprep.subr.mxu0 0.0
    %1181 = vmatpush1.msra.mxu0 0.0
    %1182 = vmatprep.subr.mxu0 0.0
    %1183 = vmatpush1.msra.mxu0 0.0
    %1184 = vmatprep.subr.mxu0 0.0
    %1185 = vmatpush1.msra.mxu0 0.0
    %1186 = vmatprep.subr.mxu0 0.0
    %1187 = vmatpush1.msra.mxu0 0.0
    %1188 = vmatprep.subr.mxu0 0.0
    %1189 = vmatpush1.msra.mxu0 0.0
    %1190 = vmatprep.subr.mxu0 0.0
    %1191 = vmatpush1.msra.mxu0 0.0
    %1192 = vmatprep.subr.mxu0 0.0
    %1193 = vmatpush1.msra.mxu0 0.0
    %1194 = vmatprep.subr.mxu0 0.0
    %1195 = vmatpush1.msra.mxu0 0.0
    %1196 = vmatprep.subr.mxu0 0.0
    %1197 = vmatpush1.msra.mxu0 0.0
    %1198 = vmatprep.subr.mxu0 0.0
    %1199 = vmatpush1.msra.mxu0 0.0
    %1200 = vmatprep.subr.mxu0 0.0
    %1201 = vmatpush1.msra.mxu0 0.0
    %1202 = vmatprep.subr.mxu0 0.0
    %1203 = vmatpush1.msra.mxu0 0.0
    %1204 = vmatprep.subr.mxu0 0.0
    %1205 = vmatpush1.msra.mxu0 0.0
    %1206 = vmatprep.subr.mxu0 0.0
    %1207 = vmatpush1.msra.mxu0 0.0
    %1208 = vmatprep.subr.mxu0 0.0
    %1209 = vmatpush1.msra.mxu0 0.0
    %1210 = vmatprep.subr.mxu0 0.0
    %1211 = vmatpush1.msra.mxu0 0.0
    %1212 = vmatprep.subr.mxu0 0.0
    %1213 = vmatpush1.msra.mxu0 0.0
    %1214 = vmatprep.subr.mxu0 0.0
    %1215 = vmatpush1.msra.mxu0 0.0
    %1216 = vmatprep.subr.mxu0 0.0
    %1217 = vmatpush1.msra.mxu0 0.0
    %1218 = vmatprep.subr.mxu0 0.0
    %1219 = vmatpush1.msra.mxu0 0.0
    %1220 = vmatprep.subr.mxu0 0.0
    %1221 = vmatpush1.msra.mxu0 0.0
    %1222 = vmatprep.subr.mxu0 0.0
    %1223 = vmatpush1.msra.mxu0 0.0
    %1224 = vmatprep.subr.mxu0 0.0
    %1225 = vmatpush1.msra.mxu0 0.0
    %1226 = vmatprep.subr.mxu0 0.0
    %1227 = vmatpush1.msra.mxu0 0.0
    %1228 = vmatprep.subr.mxu0 0.0
    %1229 = vmatpush1.msra.mxu0 0.0
    %1230 = vmatprep.mubr.f32.mxu0 0.0
    %1231 = vmatmul.mubr.f32.gmra.mrb[0].mxu0 %v1164
    %v1232 = vpop.f32.mrb[0].mxu0
    %v1233 = vadd.f32 0.0, %v1232
    %v1234 = vpop.f32.mrb[0].mxu0
    %1235 = vdwg.mxu0
    %1236 = vrot.lane.b32.xlu0 %v977, 80
    %v1237 = vpop.permute.xlu0 %1236
    %v1240 = vsel %vm296, %v1159, 0
    %1242 = vmatprep.subr.mxu0 0.0
    %1243 = vmatpush1.msra.mxu0 %v1237
    %1244 = vmatprep.subr.mxu0 0.0
    %1245 = vmatpush1.msra.mxu0 0.0
    %1246 = vmatprep.subr.mxu0 0.0
    %1247 = vmatpush1.msra.mxu0 0.0
    %1248 = vmatprep.subr.mxu0 0.0
    %1249 = vmatpush1.msra.mxu0 0.0
    %1250 = vmatprep.subr.mxu0 0.0
    %1251 = vmatpush1.msra.mxu0 0.0
    %1252 = vmatprep.subr.mxu0 0.0
    %1253 = vmatpush1.msra.mxu0 0.0
    %1254 = vmatprep.subr.mxu0 0.0
    %1255 = vmatpush1.msra.mxu0 0.0
    %1256 = vmatprep.subr.mxu0 0.0
    %1257 = vmatpush1.msra.mxu0 0.0
    %1258 = vmatprep.subr.mxu0 0.0
    %1259 = vmatpush1.msra.mxu0 0.0
    %1260 = vmatprep.subr.mxu0 0.0
    %1261 = vmatpush1.msra.mxu0 0.0
    %1262 = vmatprep.subr.mxu0 0.0
    %1263 = vmatpush1.msra.mxu0 0.0
    %1264 = vmatprep.subr.mxu0 0.0
    %1265 = vmatpush1.msra.mxu0 0.0
    %1266 = vmatprep.subr.mxu0 0.0
    %1267 = vmatpush1.msra.mxu0 0.0
    %1268 = vmatprep.subr.mxu0 0.0
    %1269 = vmatpush1.msra.mxu0 0.0
    %1270 = vmatprep.subr.mxu0 0.0
    %1271 = vmatpush1.msra.mxu0 0.0
    %1272 = vmatprep.subr.mxu0 0.0
    %1273 = vmatpush1.msra.mxu0 0.0
    %1274 = vmatprep.subr.mxu0 0.0
    %1275 = vmatpush1.msra.mxu0 0.0
    %1276 = vmatprep.subr.mxu0 0.0
    %1277 = vmatpush1.msra.mxu0 0.0
    %1278 = vmatprep.subr.mxu0 0.0
    %1279 = vmatpush1.msra.mxu0 0.0
    %1280 = vmatprep.subr.mxu0 0.0
    %1281 = vmatpush1.msra.mxu0 0.0
    %1282 = vmatprep.subr.mxu0 0.0
    %1283 = vmatpush1.msra.mxu0 0.0
    %1284 = vmatprep.subr.mxu0 0.0
    %1285 = vmatpush1.msra.mxu0 0.0
    %1286 = vmatprep.subr.mxu0 0.0
    %1287 = vmatpush1.msra.mxu0 0.0
    %1288 = vmatprep.subr.mxu0 0.0
    %1289 = vmatpush1.msra.mxu0 0.0
    %1290 = vmatprep.subr.mxu0 0.0
    %1291 = vmatpush1.msra.mxu0 0.0
    %1292 = vmatprep.subr.mxu0 0.0
    %1293 = vmatpush1.msra.mxu0 0.0
    %1294 = vmatprep.subr.mxu0 0.0
    %1295 = vmatpush1.msra.mxu0 0.0
    %1296 = vmatprep.subr.mxu0 0.0
    %1297 = vmatpush1.msra.mxu0 0.0
    %1298 = vmatprep.subr.mxu0 0.0
    %1299 = vmatpush1.msra.mxu0 0.0
    %1300 = vmatprep.subr.mxu0 0.0
    %1301 = vmatpush1.msra.mxu0 0.0
    %1302 = vmatprep.subr.mxu0 0.0
    %1303 = vmatpush1.msra.mxu0 0.0
    %1304 = vmatprep.subr.mxu0 0.0
    %1305 = vmatpush1.msra.mxu0 0.0
    %1306 = vmatprep.mubr.f32.mxu0 0.0
    %1307 = vmatmul.mubr.f32.gmra.mrb[0].mxu0 %v1240
    %v1308 = vpop.f32.mrb[0].mxu0
    %v1309 = vadd.f32 0.0, %v1308
    %v1310 = vpop.f32.mrb[0].mxu0
    %1311 = vdwg.mxu0
    %1314 = vrot.lane.b32.xlu0 %v1233, 16
    %v1315 = vpop.permute.xlu0 %1314
    %1316 = vrot.lane.b32.xlu0 %v1309, 16
    %v1317 = vpop.permute.xlu0 %1316
    %vm1320 = vcmask 195712
    %1321 = vst.msk [vmem:[#allocation4] sm:$0xff] %vm1320, %v1315
    %1322 = vst.msk [vmem:[#allocation4 + $0x8] sm:$0xff] %vm1320, %v1317
    %v1323 = vld [vmem:[#allocation2] sm:$0xff]
    %v1324 = vld [vmem:[#allocation2 + $0x8] sm:$0xff]
    %v1325 = vld [vmem:[#allocation3] sm:$0xff]
    %v1326 = vld [vmem:[#allocation3 + $0x8] sm:$0xff]
    %1328 = vrot.lane.b32.xlu0 %v1323, 104
    %v1329 = vpop.permute.xlu0 %1328
    %1331 = vrot.lane.b32.xlu0 %v1325, 104
    %v1332 = vpop.permute.xlu0 %1331
    %v1333 = vsel %vm296, %v1329, 0
    %v1335 = vsel %vm296, %v1332, 0
    %1337 = vmatprep.subr.mxu0 0.0
    %1338 = vmatpush1.xpose.msra.mxu0 %v1335
    %1339 = vmatprep.subr.mxu0 0.0
    %1340 = vmatpush1.xpose.msra.mxu0 0.0
    %1341 = vmatprep.subr.mxu0 0.0
    %1342 = vmatpush1.xpose.msra.mxu0 0.0
    %1343 = vmatprep.subr.mxu0 0.0
    %1344 = vmatpush1.xpose.msra.mxu0 0.0
    %1345 = vmatprep.subr.mxu0 0.0
    %1346 = vmatpush1.xpose.msra.mxu0 0.0
    %1347 = vmatprep.subr.mxu0 0.0
    %1348 = vmatpush1.xpose.msra.mxu0 0.0
    %1349 = vmatprep.subr.mxu0 0.0
    %1350 = vmatpush1.xpose.msra.mxu0 0.0
    %1351 = vmatprep.subr.mxu0 0.0
    %1352 = vmatpush1.xpose.msra.mxu0 0.0
    %1353 = vmatprep.subr.mxu0 0.0
    %1354 = vmatpush1.xpose.msra.mxu0 0.0
    %1355 = vmatprep.subr.mxu0 0.0
    %1356 = vmatpush1.xpose.msra.mxu0 0.0
    %1357 = vmatprep.subr.mxu0 0.0
    %1358 = vmatpush1.xpose.msra.mxu0 0.0
    %1359 = vmatprep.subr.mxu0 0.0
    %1360 = vmatpush1.xpose.msra.mxu0 0.0
    %1361 = vmatprep.subr.mxu0 0.0
    %1362 = vmatpush1.xpose.msra.mxu0 0.0
    %1363 = vmatprep.subr.mxu0 0.0
    %1364 = vmatpush1.xpose.msra.mxu0 0.0
    %1365 = vmatprep.subr.mxu0 0.0
    %1366 = vmatpush1.xpose.msra.mxu0 0.0
    %1367 = vmatprep.subr.mxu0 0.0
    %1368 = vmatpush1.xpose.msra.mxu0 0.0
    %1369 = vmatprep.subr.mxu0 0.0
    %1370 = vmatpush1.xpose.msra.mxu0 0.0
    %1371 = vmatprep.subr.mxu0 0.0
    %1372 = vmatpush1.xpose.msra.mxu0 0.0
    %1373 = vmatprep.subr.mxu0 0.0
    %1374 = vmatpush1.xpose.msra.mxu0 0.0
    %1375 = vmatprep.subr.mxu0 0.0
    %1376 = vmatpush1.xpose.msra.mxu0 0.0
    %1377 = vmatprep.subr.mxu0 0.0
    %1378 = vmatpush1.xpose.msra.mxu0 0.0
    %1379 = vmatprep.subr.mxu0 0.0
    %1380 = vmatpush1.xpose.msra.mxu0 0.0
    %1381 = vmatprep.subr.mxu0 0.0
    %1382 = vmatpush1.xpose.msra.mxu0 0.0
    %1383 = vmatprep.subr.mxu0 0.0
    %1384 = vmatpush1.xpose.msra.mxu0 0.0
    %1385 = vmatprep.subr.mxu0 0.0
    %1386 = vmatpush1.xpose.msra.mxu0 0.0
    %1387 = vmatprep.subr.mxu0 0.0
    %1388 = vmatpush1.xpose.msra.mxu0 0.0
    %1389 = vmatprep.subr.mxu0 0.0
    %1390 = vmatpush1.xpose.msra.mxu0 0.0
    %1391 = vmatprep.subr.mxu0 0.0
    %1392 = vmatpush1.xpose.msra.mxu0 0.0
    %1393 = vmatprep.subr.mxu0 0.0
    %1394 = vmatpush1.xpose.msra.mxu0 0.0
    %1395 = vmatprep.subr.mxu0 0.0
    %1396 = vmatpush1.xpose.msra.mxu0 0.0
    %1397 = vmatprep.subr.mxu0 0.0
    %1398 = vmatpush1.xpose.msra.mxu0 0.0
    %1399 = vmatprep.subr.mxu0 0.0
    %1400 = vmatpush1.xpose.msra.mxu0 0.0
    %1401 = vmatprep.mubr.f32.mxu0 0.0
    %1402 = vmatmul.mubr.f32.gmra.mrb[0].mxu0 %v1333
    %v1403 = vpop.f32.mrb[0].mxu0
    %v1404 = vadd.f32 0.0, %v1403
    %v1405 = vpop.f32.mrb[0].mxu0
    %1406 = vdwg.mxu0
    %1408 = vrot.lane.b32.xlu0 %v1324, 104
    %v1409 = vpop.permute.xlu0 %1408
    %1411 = vrot.lane.b32.xlu0 %v1326, 104
    %v1412 = vpop.permute.xlu0 %1411
    %v1413 = vsel %vm296, %v1409, 0
    %v1415 = vsel %vm296, %v1412, 0
    %1417 = vmatprep.subr.mxu0 0.0
    %1418 = vmatpush1.xpose.msra.mxu0 %v1415
    %1419 = vmatprep.subr.mxu0 0.0
    %1420 = vmatpush1.xpose.msra.mxu0 0.0
    %1421 = vmatprep.subr.mxu0 0.0
    %1422 = vmatpush1.xpose.msra.mxu0 0.0
    %1423 = vmatprep.subr.mxu0 0.0
    %1424 = vmatpush1.xpose.msra.mxu0 0.0
    %1425 = vmatprep.subr.mxu0 0.0
    %1426 = vmatpush1.xpose.msra.mxu0 0.0
    %1427 = vmatprep.subr.mxu0 0.0
    %1428 = vmatpush1.xpose.msra.mxu0 0.0
    %1429 = vmatprep.subr.mxu0 0.0
    %1430 = vmatpush1.xpose.msra.mxu0 0.0
    %1431 = vmatprep.subr.mxu0 0.0
    %1432 = vmatpush1.xpose.msra.mxu0 0.0
    %1433 = vmatprep.subr.mxu0 0.0
    %1434 = vmatpush1.xpose.msra.mxu0 0.0
    %1435 = vmatprep.subr.mxu0 0.0
    %1436 = vmatpush1.xpose.msra.mxu0 0.0
    %1437 = vmatprep.subr.mxu0 0.0
    %1438 = vmatpush1.xpose.msra.mxu0 0.0
    %1439 = vmatprep.subr.mxu0 0.0
    %1440 = vmatpush1.xpose.msra.mxu0 0.0
    %1441 = vmatprep.subr.mxu0 0.0
    %1442 = vmatpush1.xpose.msra.mxu0 0.0
    %1443 = vmatprep.subr.mxu0 0.0
    %1444 = vmatpush1.xpose.msra.mxu0 0.0
    %1445 = vmatprep.subr.mxu0 0.0
    %1446 = vmatpush1.xpose.msra.mxu0 0.0
    %1447 = vmatprep.subr.mxu0 0.0
    %1448 = vmatpush1.xpose.msra.mxu0 0.0
    %1449 = vmatprep.subr.mxu0 0.0
    %1450 = vmatpush1.xpose.msra.mxu0 0.0
    %1451 = vmatprep.subr.mxu0 0.0
    %1452 = vmatpush1.xpose.msra.mxu0 0.0
    %1453 = vmatprep.subr.mxu0 0.0
    %1454 = vmatpush1.xpose.msra.mxu0 0.0
    %1455 = vmatprep.subr.mxu0 0.0
    %1456 = vmatpush1.xpose.msra.mxu0 0.0
    %1457 = vmatprep.subr.mxu0 0.0
    %1458 = vmatpush1.xpose.msra.mxu0 0.0
    %1459 = vmatprep.subr.mxu0 0.0
    %1460 = vmatpush1.xpose.msra.mxu0 0.0
    %1461 = vmatprep.subr.mxu0 0.0
    %1462 = vmatpush1.xpose.msra.mxu0 0.0
    %1463 = vmatprep.subr.mxu0 0.0
    %1464 = vmatpush1.xpose.msra.mxu0 0.0
    %1465 = vmatprep.subr.mxu0 0.0
    %1466 = vmatpush1.xpose.msra.mxu0 0.0
    %1467 = vmatprep.subr.mxu0 0.0
    %1468 = vmatpush1.xpose.msra.mxu0 0.0
    %1469 = vmatprep.subr.mxu0 0.0
    %1470 = vmatpush1.xpose.msra.mxu0 0.0
    %1471 = vmatprep.subr.mxu0 0.0
    %1472 = vmatpush1.xpose.msra.mxu0 0.0
    %1473 = vmatprep.subr.mxu0 0.0
    %1474 = vmatpush1.xpose.msra.mxu0 0.0
    %1475 = vmatprep.subr.mxu0 0.0
    %1476 = vmatpush1.xpose.msra.mxu0 0.0
    %1477 = vmatprep.subr.mxu0 0.0
    %1478 = vmatpush1.xpose.msra.mxu0 0.0
    %1479 = vmatprep.subr.mxu0 0.0
    %1480 = vmatpush1.xpose.msra.mxu0 0.0
    %1481 = vmatprep.mubr.f32.mxu0 0.0
    %1482 = vmatmul.mubr.f32.gmra.mrb[0].mxu0 %v1413
    %v1483 = vpop.f32.mrb[0].mxu0
    %v1484 = vadd.f32 0.0, %v1483
    %v1485 = vpop.f32.mrb[0].mxu0
    %1486 = vdwg.mxu0
    %v1487 = vsel %vm296, %v1404, -inf
    %1488 = vmax.xlane.f32.xlu0 %v1487
    %v1489 = vpop.xlane.xlu0 %1488
    %v1490 = vsel %vm296, %v1484, -inf
    %1491 = vmax.xlane.f32.xlu0 %v1490
    %v1492 = vpop.xlane.xlu0 %1491
    %v1493 = vsub.f32 %v1404, %v1489
    %v1494 = vsub.f32 %v1484, %v1492
    %v1495 = vmul.f32 %v1493, 1.442695
    %v1496 = vpow.pop %v1495
    %v1497 = vmul.f32 %v1494, 1.442695
    %v1498 = vpow.pop %v1497
    %v1499 = vsel %vm296, %v1496, 0.0
    %1500 = vadd.xlane.f32.xlu0 %v1499
    %v1501 = vpop.xlane.xlu0 %1500
    %v1502 = vsel %vm296, %v1498, 0.0
    %1503 = vadd.xlane.f32.xlu0 %v1502
    %v1504 = vpop.xlane.xlu0 %1503
    %v1505 = vrcp.pop %v1501
    %v1506 = vrcp.pop %v1504
    %v1507 = vmul.f32 %v1496, %v1505
    %v1508 = vmul.f32 %v1498, %v1506
    %1509 = vrot.lane.b32.xlu0 %v1325, 72
    %v1510 = vpop.permute.xlu0 %1509
    %v1513 = vsel %vm296, %v1507, 0
    %1515 = vmatprep.subr.mxu0 0.0
    %1516 = vmatpush1.msra.mxu0 %v1510
    %1517 = vmatprep.subr.mxu0 0.0
    %1518 = vmatpush1.msra.mxu0 0.0
    %1519 = vmatprep.subr.mxu0 0.0
    %1520 = vmatpush1.msra.mxu0 0.0
    %1521 = vmatprep.subr.mxu0 0.0
    %1522 = vmatpush1.msra.mxu0 0.0
    %1523 = vmatprep.subr.mxu0 0.0
    %1524 = vmatpush1.msra.mxu0 0.0
    %1525 = vmatprep.subr.mxu0 0.0
    %1526 = vmatpush1.msra.mxu0 0.0
    %1527 = vmatprep.subr.mxu0 0.0
    %1528 = vmatpush1.msra.mxu0 0.0
    %1529 = vmatprep.subr.mxu0 0.0
    %1530 = vmatpush1.msra.mxu0 0.0
    %1531 = vmatprep.subr.mxu0 0.0
    %1532 = vmatpush1.msra.mxu0 0.0
    %1533 = vmatprep.subr.mxu0 0.0
    %1534 = vmatpush1.msra.mxu0 0.0
    %1535 = vmatprep.subr.mxu0 0.0
    %1536 = vmatpush1.msra.mxu0 0.0
    %1537 = vmatprep.subr.mxu0 0.0
    %1538 = vmatpush1.msra.mxu0 0.0
    %1539 = vmatprep.subr.mxu0 0.0
    %1540 = vmatpush1.msra.mxu0 0.0
    %1541 = vmatprep.subr.mxu0 0.0
    %1542 = vmatpush1.msra.mxu0 0.0
    %1543 = vmatprep.subr.mxu0 0.0
    %1544 = vmatpush1.msra.mxu0 0.0
    %1545 = vmatprep.subr.mxu0 0.0
    %1546 = vmatpush1.msra.mxu0 0.0
    %1547 = vmatprep.subr.mxu0 0.0
    %1548 = vmatpush1.msra.mxu0 0.0
    %1549 = vmatprep.subr.mxu0 0.0
    %1550 = vmatpush1.msra.mxu0 0.0
    %1551 = vmatprep.subr.mxu0 0.0
    %1552 = vmatpush1.msra.mxu0 0.0
    %1553 = vmatprep.subr.mxu0 0.0
    %1554 = vmatpush1.msra.mxu0 0.0
    %1555 = vmatprep.subr.mxu0 0.0
    %1556 = vmatpush1.msra.mxu0 0.0
    %1557 = vmatprep.subr.mxu0 0.0
    %1558 = vmatpush1.msra.mxu0 0.0
    %1559 = vmatprep.subr.mxu0 0.0
    %1560 = vmatpush1.msra.mxu0 0.0
    %1561 = vmatprep.subr.mxu0 0.0
    %1562 = vmatpush1.msra.mxu0 0.0
    %1563 = vmatprep.subr.mxu0 0.0
    %1564 = vmatpush1.msra.mxu0 0.0
    %1565 = vmatprep.subr.mxu0 0.0
    %1566 = vmatpush1.msra.mxu0 0.0
    %1567 = vmatprep.subr.mxu0 0.0
    %1568 = vmatpush1.msra.mxu0 0.0
    %1569 = vmatprep.subr.mxu0 0.0
    %1570 = vmatpush1.msra.mxu0 0.0
    %1571 = vmatprep.subr.mxu0 0.0
    %1572 = vmatpush1.msra.mxu0 0.0
    %1573 = vmatprep.subr.mxu0 0.0
    %1574 = vmatpush1.msra.mxu0 0.0
    %1575 = vmatprep.subr.mxu0 0.0
    %1576 = vmatpush1.msra.mxu0 0.0
    %1577 = vmatprep.subr.mxu0 0.0
    %1578 = vmatpush1.msra.mxu0 0.0
    %1579 = vmatprep.mubr.f32.mxu0 0.0
    %1580 = vmatmul.mubr.f32.gmra.mrb[0].mxu0 %v1513
    %v1581 = vpop.f32.mrb[0].mxu0
    %v1582 = vadd.f32 0.0, %v1581
    %v1583 = vpop.f32.mrb[0].mxu0
    %1584 = vdwg.mxu0
    %1585 = vrot.lane.b32.xlu0 %v1326, 72
    %v1586 = vpop.permute.xlu0 %1585
    %v1589 = vsel %vm296, %v1508, 0
    %1591 = vmatprep.subr.mxu0 0.0
    %1592 = vmatpush1.msra.mxu0 %v1586
    %1593 = vmatprep.subr.mxu0 0.0
    %1594 = vmatpush1.msra.mxu0 0.0
    %1595 = vmatprep.subr.mxu0 0.0
    %1596 = vmatpush1.msra.mxu0 0.0
    %1597 = vmatprep.subr.mxu0 0.0
    %1598 = vmatpush1.msra.mxu0 0.0
    %1599 = vmatprep.subr.mxu0 0.0
    %1600 = vmatpush1.msra.mxu0 0.0
    %1601 = vmatprep.subr.mxu0 0.0
    %1602 = vmatpush1.msra.mxu0 0.0
    %1603 = vmatprep.subr.mxu0 0.0
    %1604 = vmatpush1.msra.mxu0 0.0
    %1605 = vmatprep.subr.mxu0 0.0
    %1606 = vmatpush1.msra.mxu0 0.0
    %1607 = vmatprep.subr.mxu0 0.0
    %1608 = vmatpush1.msra.mxu0 0.0
    %1609 = vmatprep.subr.mxu0 0.0
    %1610 = vmatpush1.msra.mxu0 0.0
    %1611 = vmatprep.subr.mxu0 0.0
    %1612 = vmatpush1.msra.mxu0 0.0
    %1613 = vmatprep.subr.mxu0 0.0
    %1614 = vmatpush1.msra.mxu0 0.0
    %1615 = vmatprep.subr.mxu0 0.0
    %1616 = vmatpush1.msra.mxu0 0.0
    %1617 = vmatprep.subr.mxu0 0.0
    %1618 = vmatpush1.msra.mxu0 0.0
    %1619 = vmatprep.subr.mxu0 0.0
    %1620 = vmatpush1.msra.mxu0 0.0
    %1621 = vmatprep.subr.mxu0 0.0
    %1622 = vmatpush1.msra.mxu0 0.0
    %1623 = vmatprep.subr.mxu0 0.0
    %1624 = vmatpush1.msra.mxu0 0.0
    %1625 = vmatprep.subr.mxu0 0.0
    %1626 = vmatpush1.msra.mxu0 0.0
    %1627 = vmatprep.subr.mxu0 0.0
    %1628 = vmatpush1.msra.mxu0 0.0
    %1629 = vmatprep.subr.mxu0 0.0
    %1630 = vmatpush1.msra.mxu0 0.0
    %1631 = vmatprep.subr.mxu0 0.0
    %1632 = vmatpush1.msra.mxu0 0.0
    %1633 = vmatprep.subr.mxu0 0.0
    %1634 = vmatpush1.msra.mxu0 0.0
    %1635 = vmatprep.subr.mxu0 0.0
    %1636 = vmatpush1.msra.mxu0 0.0
    %1637 = vmatprep.subr.mxu0 0.0
    %1638 = vmatpush1.msra.mxu0 0.0
    %1639 = vmatprep.subr.mxu0 0.0
    %1640 = vmatpush1.msra.mxu0 0.0
    %1641 = vmatprep.subr.mxu0 0.0
    %1642 = vmatpush1.msra.mxu0 0.0
    %1643 = vmatprep.subr.mxu0 0.0
    %1644 = vmatpush1.msra.mxu0 0.0
    %1645 = vmatprep.subr.mxu0 0.0
    %1646 = vmatpush1.msra.mxu0 0.0
    %1647 = vmatprep.subr.mxu0 0.0
    %1648 = vmatpush1.msra.mxu0 0.0
    %1649 = vmatprep.subr.mxu0 0.0
    %1650 = vmatpush1.msra.mxu0 0.0
    %1651 = vmatprep.subr.mxu0 0.0
    %1652 = vmatpush1.msra.mxu0 0.0
    %1653 = vmatprep.subr.mxu0 0.0
    %1654 = vmatpush1.msra.mxu0 0.0
    %1655 = vmatprep.mubr.f32.mxu0 0.0
    %1656 = vmatmul.mubr.f32.gmra.mrb[0].mxu0 %v1589
    %v1657 = vpop.f32.mrb[0].mxu0
    %v1658 = vadd.f32 0.0, %v1657
    %v1659 = vpop.f32.mrb[0].mxu0
    %1660 = vdwg.mxu0
    %1663 = vrot.lane.b32.xlu0 %v1582, 24
    %v1664 = vpop.permute.xlu0 %1663
    %1665 = vrot.lane.b32.xlu0 %v1658, 24
    %v1666 = vpop.permute.xlu0 %1665
    %vm1669 = vcmask 261312
    %1670 = vst.msk [vmem:[#allocation4] sm:$0xff] %vm1669, %v1664
    %1671 = vst.msk [vmem:[#allocation4 + $0x8] sm:$0xff] %vm1669, %v1666
    %v1672 = vld [vmem:[#allocation4] sm:$0xff]
    %v1673 = vld [vmem:[#allocation4 + $0x8] sm:$0xff]
    %v1674 = vld [vmem:[#allocation13] sm:$0xff]
    %v1675 = vld [vmem:[#allocation13 + $0x8] sm:$0xff]
    %v1676 = vld [vmem:[#allocation13 + $0x10] sm:$0xff]
    %v1677 = vld [vmem:[#allocation13 + $0x18] sm:$0xff]
    %v1678 = vld [vmem:[%s7] sm:$0x1]
    %v1680 = vlaneseq
    %v1681 = vshrl.u32 %v1680, 7
    %v1682 = vsub.s32 0, %v1681
    %v1683 = vrot.slane %v1678, %v1682
    %v1686 = vsel %vm111, %v1672, 0
    %v1689 = vsel %vm111, %v1673, 0
    %1691 = vmatprep.subr.mxu0 0.0
    %1692 = vmatpush1.msra.mxu0 %v1674
    %1693 = vmatprep.subr.mxu0 0.0
    %1694 = vmatpush1.msra.mxu0 %v1675
    %1695 = vmatprep.subr.mxu0 0.0
    %1696 = vmatpush1.msra.mxu0 %v1676
    %1697 = vmatprep.subr.mxu0 0.0
    %1698 = vmatpush1.msra.mxu0 %v1677
    %1699 = vmatprep.subr.mxu0 0.0
    %1700 = vmatpush1.msra.mxu0 0.0
    %1701 = vmatprep.subr.mxu0 0.0
    %1702 = vmatpush1.msra.mxu0 0.0
    %1703 = vmatprep.subr.mxu0 0.0
    %1704 = vmatpush1.msra.mxu0 0.0
    %1705 = vmatprep.subr.mxu0 0.0
    %1706 = vmatpush1.msra.mxu0 0.0
    %1707 = vmatprep.subr.mxu0 0.0
    %1708 = vmatpush1.msra.mxu0 0.0
    %1709 = vmatprep.subr.mxu0 0.0
    %1710 = vmatpush1.msra.mxu0 0.0
    %1711 = vmatprep.subr.mxu0 0.0
    %1712 = vmatpush1.msra.mxu0 0.0
    %1713 = vmatprep.subr.mxu0 0.0
    %1714 = vmatpush1.msra.mxu0 0.0
    %1715 = vmatprep.subr.mxu0 0.0
    %1716 = vmatpush1.msra.mxu0 0.0
    %1717 = vmatprep.subr.mxu0 0.0
    %1718 = vmatpush1.msra.mxu0 0.0
    %1719 = vmatprep.subr.mxu0 0.0
    %1720 = vmatpush1.msra.mxu0 0.0
    %1721 = vmatprep.subr.mxu0 0.0
    %1722 = vmatpush1.msra.mxu0 0.0
    %1723 = vmatprep.subr.mxu0 0.0
    %1724 = vmatpush1.msra.mxu0 0.0
    %1725 = vmatprep.subr.mxu0 0.0
    %1726 = vmatpush1.msra.mxu0 0.0
    %1727 = vmatprep.subr.mxu0 0.0
    %1728 = vmatpush1.msra.mxu0 0.0
    %1729 = vmatprep.subr.mxu0 0.0
    %1730 = vmatpush1.msra.mxu0 0.0
    %1731 = vmatprep.subr.mxu0 0.0
    %1732 = vmatpush1.msra.mxu0 0.0
    %1733 = vmatprep.subr.mxu0 0.0
    %1734 = vmatpush1.msra.mxu0 0.0
    %1735 = vmatprep.subr.mxu0 0.0
    %1736 = vmatpush1.msra.mxu0 0.0
    %1737 = vmatprep.subr.mxu0 0.0
    %1738 = vmatpush1.msra.mxu0 0.0
    %1739 = vmatprep.subr.mxu0 0.0
    %1740 = vmatpush1.msra.mxu0 0.0
    %1741 = vmatprep.subr.mxu0 0.0
    %1742 = vmatpush1.msra.mxu0 0.0
    %1743 = vmatprep.subr.mxu0 0.0
    %1744 = vmatpush1.msra.mxu0 0.0
    %1745 = vmatprep.subr.mxu0 0.0
    %1746 = vmatpush1.msra.mxu0 0.0
    %1747 = vmatprep.subr.mxu0 0.0
    %1748 = vmatpush1.msra.mxu0 0.0
    %1749 = vmatprep.subr.mxu0 0.0
    %1750 = vmatpush1.msra.mxu0 0.0
    %1751 = vmatprep.subr.mxu0 0.0
    %1752 = vmatpush1.msra.mxu0 0.0
    %1753 = vmatprep.subr.mxu0 0.0
    %1754 = vmatpush1.msra.mxu0 0.0
    %1755 = vmatprep.mubr.f32.mxu0 0.0
    %1756 = vmatmul.mubr.f32.gmra.mrb[0].mxu0 %v1686
    %v1757 = vpop.f32.mrb[0].mxu0
    %v1758 = vadd.f32 %v1683, %v1757
    %v1759 = vpop.f32.mrb[0].mxu0
    %1760 = vmatprep.mubr.f32.mxu0 0.0
    %1761 = vmatmul.mubr.f32.gmra.mrb[0].mxu0 %v1689
    %v1762 = vpop.f32.mrb[0].mxu0
    %v1763 = vadd.f32 %v1683, %v1762
    %v1764 = vpop.f32.mrb[0].mxu0
    %1765 = vdwg.mxu0
    %1766 = vst.msk [vmem:[#allocation14] sm:$0xff] %vm111, %v1758
    %1767 = vst.msk [vmem:[#allocation14 + $0x8] sm:$0xff] %vm111, %v1763
    // Predicated region
    $region54: #{tpu_custom_call.1} parent=1 // pred_check
      _
    $region55: #{tpu_custom_call.1} parent=1 // pred_check_branch
      %1769 = sbr.rel (0) target = $region57
    $region56: #{tpu_custom_call.1} parent=1 // pred_region
      %s1771 = ssub.s32 256, 256
      %1772 = vsyncadd [#allocation7], %s1771
      %s1773 = sshll.u32 [#allocation14], 4
      %s1774 = int_to_ptr.vmem [resolvable:$true] %s1773
      %1779 = dma.vmem_to_hbm [thread:$0]  %s1774, 256, %s8, [#allocation7], 128, 128, 8
    $region57: #{tpu_custom_call.1} parent=1 // pred_fallthru
      _
    // Predicated region
    $region58: #{tpu_custom_call.1} parent=1 // pred_check
      _
    $region59: #{tpu_custom_call.1} parent=1 // pred_check_branch
      %1781 = sbr.rel (0) target = $region61
    $region60: #{tpu_custom_call.1} parent=1 // pred_region
      %1782 = dma.done [#allocation7], 256
    $region61: #{tpu_custom_call.1} parent=1 // pred_fallthru
      _
    %1783 = vsyncpa [#allocation6], 1
    %1784 = vsyncpa [#allocation9], 1
    %1785 = vsyncpa [#allocation12], 1
    %1786 = vsyncpa [#allocation7], 1

</llo_original>
